<compile_context>
chip_gen: v7x
topology: tpu7x:2x2x1
jax: 0.10.0
libtpu: 0.0.40
codegen_flags: <defaults>
</compile_context>

<pallas_src>
import jax
import jax.numpy as jnp
from jax import lax
from jax.experimental import pallas as pl
from jax.experimental.pallas import tpu as pltpu


def cona_kernel(scale_ref,   # SMEM  (1,)            logit scale (scalar prefetch)
                base_ref,    # VMEM  [Ct, L, Dwp]    concat(name[:s], context, name[s:])
                pert_ref,    # VMEM  [Ct, L, Dwp]    masked perturbation (ctx rows zero)
                wts_ref,     # VMEM  [Ct, L]         pooling weights = amask / sum(amask)
                w_ref,       # VMEM  [Dwp, Ep] bf16  text projection weight
                vid_ref,     # VMEM  [B, Ep]  f32    L2-normalized video embeddings
                out_ref):    # VMEM  [B, Ct]  f32    logits tile
    # tuned_class_input_word_embeds: (pre-masked) perturbation + word embeds.
    embeds = base_ref[...] + pert_ref[...]                             # [Ct, L, Dwp] f32

    # Synthetic text encoder: masked mean-pool over tokens + linear projection.
    # TODO(synk): the real VLM text encoder is a transformer; approximated here.
    pooled = jnp.sum(embeds * wts_ref[...][:, :, None], axis=1)        # [Ct, Dwp] f32
    text = jnp.dot(pooled.astype(jnp.bfloat16), w_ref[...],
                   preferred_element_type=jnp.float32)                 # [Ct, Ep]  f32

    # Cosine branch: F.normalize(dim=1) via EUP rsqrt, with the logit scale
    # folded into the text operand (saves a [B, Ct] VPU pass after the matmul).
    eps = 1e-12
    t_inv = lax.rsqrt(jnp.maximum(jnp.sum(text * text, axis=1, keepdims=True),
                                  eps * eps))                          # [Ct, 1]
    text_sn = (text * (t_inv * scale_ref[0])).astype(jnp.bfloat16)     # [Ct, Ep]

    # logits tile = vid_n @ (scale * text_n).T, contracted over the embed dim.
    out_ref[...] = lax.dot_general(
        vid_ref[...].astype(jnp.bfloat16), text_sn,
        dimension_numbers=(((1,), (1,)), ((), ())),
        preferred_element_type=jnp.float32)                            # [B, Ct]


def _round_up(x, m):
    return (x + m - 1) // m * m


def cona_forward(logit_scale, base, pert_masked, pool_wts, w_text, vid_embeds,
                 *, c_tile=128):
    """Pads to TPU-friendly shapes and runs the Pallas kernel.

    base, pert_masked: [C, L, Dw] f32; pool_wts: [C, L] f32;
    w_text: [Dw, E] f32; vid_embeds: [B, E] f32.  Returns [B, C] f32 logits.
    """
    C, L, Dw = base.shape
    B, E = vid_embeds.shape

    Cp = _round_up(C, c_tile)
    Dwp = _round_up(Dw, 128)
    Ep = _round_up(E, 128)
    f32 = jnp.float32

    pad3 = lambda a: jnp.pad(a.astype(f32), ((0, Cp - C), (0, 0), (0, Dwp - Dw)))
    base_p = pad3(base)
    pert_p = pad3(pert_masked)
    wts_p = jnp.pad(pool_wts.astype(f32), ((0, Cp - C), (0, 0)))
    w_p = jnp.pad(w_text.astype(f32),
                  ((0, Dwp - Dw), (0, Ep - E))).astype(jnp.bfloat16)

    # Video-side normalization hoisted out of the per-C-tile kernel body.
    vid = vid_embeds.astype(f32)
    v_inv = lax.rsqrt(jnp.maximum(jnp.sum(vid * vid, axis=1, keepdims=True),
                                  1e-24))
    vid_n = jnp.pad(vid * v_inv, ((0, 0), (0, Ep - E)))

    scale = jnp.asarray(logit_scale, f32).reshape((1,))

    # Explicit VMEM budget (double-buffered tiles + headroom); keeps depth-2
    # pipelining alive on v7x's 64 MiB VMEM without over-asking.
    need = 2 * (2 * c_tile * L * Dwp * 4 + c_tile * L * 4
                + Dwp * Ep * 2 + B * Ep * 4 + B * c_tile * 4)
    vmem_limit = int(min(max(2 * need, 16 * 1024 * 1024), 48 * 1024 * 1024))

    out = pl.pallas_call(
        cona_kernel,
        out_shape=jax.ShapeDtypeStruct((B, Cp), f32),
        grid_spec=pltpu.PrefetchScalarGridSpec(
            num_scalar_prefetch=1,
            grid=(Cp // c_tile,),
            in_specs=[
                pl.BlockSpec((c_tile, L, Dwp), lambda i, s: (i, 0, 0)),
                pl.BlockSpec((c_tile, L, Dwp), lambda i, s: (i, 0, 0)),
                pl.BlockSpec((c_tile, L), lambda i, s: (i, 0)),
                pl.BlockSpec((Dwp, Ep), lambda i, s: (0, 0)),
                pl.BlockSpec((B, Ep), lambda i, s: (0, 0)),
            ],
            out_specs=pl.BlockSpec((B, c_tile), lambda i, s: (0, i)),
        ),
        compiler_params=pltpu.CompilerParams(
            dimension_semantics=("parallel",),
            vmem_limit_bytes=vmem_limit),
    )(scale, base_p, pert_p, wts_p, w_p, vid_n)

    return out[:, :C]


def build_module_state(key, C=4, Ln=8, ctx_len=16, Dw=32, E=32,
                       start_special=1, end_special=1):
    """Deterministic synthetic stand-in for CoNaModule.__init__ buffers/params."""
    k_emb, k_ctx, k_pert, k_w = jax.random.split(key, 4)

    # category_name_input_embeds / attn_masks (varying token counts per class)
    cat_embeds = jax.random.normal(k_emb, (C, Ln, Dw), dtype=jnp.float32)
    lengths = jnp.minimum(4 + jnp.arange(C, dtype=jnp.int32) % 4, Ln)
    attn = (jnp.arange(Ln)[None, :] < lengths[:, None]).astype(jnp.float32)

    # context parameter ~ N(0, 0.02)
    context = 0.02 * jax.random.normal(k_ctx, (1, ctx_len, Dw), dtype=jnp.float32)

    # name_perturbation parameter (zeros at init; small nonzero values here to
    # exercise the perturbation path as if after training)
    name_pert = 0.01 * jax.random.normal(k_pert, (C, Ln, Dw), dtype=jnp.float32)

    # name_token_mask: roll attn mask back by end-special count, zero specials
    ntm = attn.astype(bool)
    ntm = jnp.roll(ntm, -end_special, axis=1)
    ntm = ntm.at[:, -end_special:].set(False)
    ntm = ntm.at[:, :start_special].set(False)

    # synthetic text-encoder projection + logit scale
    w_text = jax.random.normal(k_w, (Dw, E), dtype=jnp.float32) / jnp.sqrt(Dw)
    logit_scale = jnp.array([1.0 / 0.07], dtype=jnp.float32)

    return cat_embeds, attn, context, name_pert, ntm, w_text, logit_scale


def assemble_text_inputs(cat_embeds, attn, context, name_pert, ntm,
                         start_special, ctx_len):
    """Glue equivalent to tuned_class_input_word_embeds' concatenation, with
    name_token_mask pre-folded into the perturbation and the attention mask
    pre-folded into mean-pool weights (same math, fewer kernel inputs)."""
    C, Ln, Dw = cat_embeds.shape
    f32 = jnp.float32
    s = start_special

    ctx_b = jnp.broadcast_to(context, (C, ctx_len, Dw))
    base = jnp.concatenate(
        [cat_embeds[:, :s], ctx_b, cat_embeds[:, s:]], axis=1)

    masked_pert = name_pert * ntm[:, :, None].astype(f32)
    pert_masked = jnp.concatenate(
        [masked_pert[:, :s], jnp.zeros((C, ctx_len, Dw), f32), masked_pert[:, s:]],
        axis=1)

    amask = jnp.concatenate(
        [attn[:, :s], jnp.ones((C, ctx_len), f32), attn[:, s:]], axis=1)
    denom = jnp.maximum(jnp.sum(amask, axis=1, keepdims=True), 1.0)
    pool_wts = amask / denom
    return base, pert_masked, pool_wts


def cona_reference(logit_scale, base, pert_masked, pool_wts, w_text, vid_embeds):
    """Pure-JAX f32 reference of the same forward math."""
    embeds = base + pert_masked
    pooled = jnp.sum(embeds * pool_wts[:, :, None], axis=1)
    text = pooled @ w_text
    eps = 1e-12
    t_n = text / jnp.maximum(
        jnp.sqrt(jnp.sum(text * text, axis=1, keepdims=True)), eps)
    v_n = vid_embeds / jnp.maximum(
        jnp.sqrt(jnp.sum(vid_embeds * vid_embeds, axis=1, keepdims=True)), eps)
    return logit_scale[0] * (v_n @ t_n.T)


if __name__ == "__main__":
    key = jax.random.PRNGKey(0)
    k_state, k_vid = jax.random.split(key)

    C, Ln, ctx_len, Dw, E, B = 4, 8, 16, 32, 32, 2
    start_special, end_special = 1, 1

    (cat_embeds, attn, context, name_pert,
     ntm, w_text, logit_scale) = build_module_state(
        k_state, C=C, Ln=Ln, ctx_len=ctx_len, Dw=Dw, E=E,
        start_special=start_special, end_special=end_special)

    base, pert_masked, pool_wts = assemble_text_inputs(
        cat_embeds, attn, context, name_pert, ntm, start_special, ctx_len)

    vid_embeds = jax.random.normal(k_vid, (B, E), dtype=jnp.float32)

    logits = cona_forward(logit_scale, base, pert_masked, pool_wts,
                          w_text, vid_embeds)
    logits = jax.block_until_ready(logits)
    assert logits.shape == (B, C) and logits.dtype == jnp.float32

    ref = cona_reference(logit_scale, base, pert_masked, pool_wts,
                         w_text, vid_embeds)
    # bf16 MXU operands (f32 accumulation) -> loose tolerance vs. f32 reference.
    assert jnp.allclose(logits, ref, rtol=1e-1, atol=5e-1), (logits, ref)

    print("KERNEL_OK")
</pallas_src>

<mosaic_0001>
module attributes {stable_mosaic.version = 11 : i64} {
  func.func @cona_kernel(%arg0: i32, %arg1: memref<1xf32, #tpu.memory_space<smem>>, %arg2: memref<128x24x128xf32, #tpu.memory_space<vmem>>, %arg3: memref<128x24x128xf32, #tpu.memory_space<vmem>>, %arg4: memref<128x24xf32, #tpu.memory_space<vmem>>, %arg5: memref<128x128xbf16, #tpu.memory_space<vmem>>, %arg6: memref<2x128xf32, #tpu.memory_space<vmem>>, %arg7: memref<2x128xf32, #tpu.memory_space<vmem>>) attributes {dimension_semantics = [#tpu.dimension_semantics<parallel>], iteration_bounds = array<i64: 1>, scalar_prefetch = 1 : i64, scratch_operands = 0 : i64, tpu.core_type = #tpu.core_type<tc>, window_params = [{transform_indices = @transform_0, window_bounds = array<i64: 128, 24, 128>}, {transform_indices = @transform_1, window_bounds = array<i64: 128, 24, 128>}, {transform_indices = @transform_2, window_bounds = array<i64: 128, 24>}, {pipeline_mode = #tpu.pipeline_mode<synchronous>, transform_indices = @transform_3, window_bounds = array<i64: 128, 128>}, {pipeline_mode = #tpu.pipeline_mode<synchronous>, transform_indices = @transform_4, window_bounds = array<i64: 2, 128>}, {transform_indices = @transform_5, window_bounds = array<i64: 2, 128>}]} {
    %c0 = arith.constant 0 : index
    %c0_0 = arith.constant 0 : index
    %c0_1 = arith.constant 0 : index
    %0 = vector.load %arg2[%c0, %c0_0, %c0_1] : memref<128x24x128xf32, #tpu.memory_space<vmem>>, vector<128x24x128xf32>
    %c0_2 = arith.constant 0 : index
    %c0_3 = arith.constant 0 : index
    %c0_4 = arith.constant 0 : index
    %1 = vector.load %arg3[%c0_2, %c0_3, %c0_4] : memref<128x24x128xf32, #tpu.memory_space<vmem>>, vector<128x24x128xf32>
    %2 = arith.addf %0, %1 : vector<128x24x128xf32>
    %c0_5 = arith.constant 0 : index
    %c0_6 = arith.constant 0 : index
    %3 = vector.load %arg4[%c0_5, %c0_6] : memref<128x24xf32, #tpu.memory_space<vmem>>, vector<128x24xf32>
    %4 = vector.shape_cast %3 : vector<128x24xf32> to vector<128x24x1xf32>
    %5 = vector.broadcast %4 : vector<128x24x1xf32> to vector<128x24x128xf32>
    %6 = arith.mulf %2, %5 : vector<128x24x128xf32>
    %cst = arith.constant dense<0.000000e+00> : vector<128x128xf32>
    %7 = vector.multi_reduction <add>, %6, %cst [1] : vector<128x24x128xf32> to vector<128x128xf32>
    %8 = arith.truncf %7 : vector<128x128xf32> to vector<128x128xbf16>
    %c0_7 = arith.constant 0 : index
    %c0_8 = arith.constant 0 : index
    %9 = vector.load %arg5[%c0_7, %c0_8] : memref<128x128xbf16, #tpu.memory_space<vmem>>, vector<128x128xbf16>
    %cst_9 = arith.constant dense<0.000000e+00> : vector<128x128xf32>
    %10 = tpu.matmul %8, %9, %cst_9 {dimension_numbers = #tpu.dot_dimension_numbers<[1], [0], [0], [1], [0, 0, 1, 1], [], []>} : vector<128x128xbf16>, vector<128x128xbf16>, vector<128x128xf32> -> vector<128x128xf32>
    %11 = arith.mulf %10, %10 : vector<128x128xf32>
    %cst_10 = arith.constant dense<0.000000e+00> : vector<128xf32>
    %12 = vector.multi_reduction <add>, %11, %cst_10 [1] : vector<128x128xf32> to vector<128xf32>
    %13 = vector.shape_cast %12 : vector<128xf32> to vector<128x1xf32>
    %cst_11 = arith.constant 1.000000e-24 : f32
    %14 = vector.broadcast %cst_11 : f32 to vector<128x1xf32>
    %15 = arith.maximumf %13, %14 : vector<128x1xf32>
    %16 = math.rsqrt %15 : vector<128x1xf32>
    %c0_12 = arith.constant 0 : index
    %17 = memref.load %arg1[%c0_12] : memref<1xf32, #tpu.memory_space<smem>>
    %18 = vector.broadcast %17 : f32 to vector<128x1xf32>
    %19 = arith.mulf %16, %18 : vector<128x1xf32>
    %20 = vector.broadcast %19 : vector<128x1xf32> to vector<128x128xf32>
    %21 = arith.mulf %10, %20 : vector<128x128xf32>
    %22 = arith.truncf %21 : vector<128x128xf32> to vector<128x128xbf16>
    %c0_13 = arith.constant 0 : index
    %c0_14 = arith.constant 0 : index
    %23 = vector.load %arg6[%c0_13, %c0_14] : memref<2x128xf32, #tpu.memory_space<vmem>>, vector<2x128xf32>
    %24 = arith.truncf %23 : vector<2x128xf32> to vector<2x128xbf16>
    %cst_15 = arith.constant dense<0.000000e+00> : vector<2x128xf32>
    %25 = tpu.matmul %24, %22, %cst_15 {dimension_numbers = #tpu.dot_dimension_numbers<[1], [1], [0], [0], [0, 0, 1, 0], [], []>} : vector<2x128xbf16>, vector<128x128xbf16>, vector<2x128xf32> -> vector<2x128xf32>
    %c0_16 = arith.constant 0 : index
    %c0_17 = arith.constant 0 : index
    %26 = vector.load %arg7[%c0_16, %c0_17] : memref<2x128xf32, #tpu.memory_space<vmem>>, vector<2x128xf32>
    tpu.vector_store %arg7[%c0_16, %c0_17], %25 {strides = array<i32>} : memref<2x128xf32, #tpu.memory_space<vmem>>, vector<2x128xf32>,
    return
  }
  func.func @transform_0(%arg0: i32, %arg1: memref<1xf32, #tpu.memory_space<smem>>) -> (i32, i32, i32) {
    %c0_i32 = arith.constant 0 : i32
    %c0_i32_0 = arith.constant 0 : i32
    %c0_i32_1 = arith.constant 0 : i32
    return %arg0, %c0_i32, %c0_i32_0 : i32, i32, i32
  }
  func.func @transform_1(%arg0: i32, %arg1: memref<1xf32, #tpu.memory_space<smem>>) -> (i32, i32, i32) {
    %c0_i32 = arith.constant 0 : i32
    %c0_i32_0 = arith.constant 0 : i32
    %c0_i32_1 = arith.constant 0 : i32
    return %arg0, %c0_i32, %c0_i32_0 : i32, i32, i32
  }
  func.func @transform_2(%arg0: i32, %arg1: memref<1xf32, #tpu.memory_space<smem>>) -> (i32, i32) {
    %c0_i32 = arith.constant 0 : i32
    %c0_i32_0 = arith.constant 0 : i32
    return %arg0, %c0_i32 : i32, i32
  }
  func.func @transform_3(%arg0: i32, %arg1: memref<1xf32, #tpu.memory_space<smem>>) -> (i32, i32) {
    %c0_i32 = arith.constant 0 : i32
    %c0_i32_0 = arith.constant 0 : i32
    %c0_i32_1 = arith.constant 0 : i32
    return %c0_i32, %c0_i32_0 : i32, i32
  }
  func.func @transform_4(%arg0: i32, %arg1: memref<1xf32, #tpu.memory_space<smem>>) -> (i32, i32) {
    %c0_i32 = arith.constant 0 : i32
    %c0_i32_0 = arith.constant 0 : i32
    %c0_i32_1 = arith.constant 0 : i32
    return %c0_i32, %c0_i32_0 : i32, i32
  }
  func.func @transform_5(%arg0: i32, %arg1: memref<1xf32, #tpu.memory_space<smem>>) -> (i32, i32) {
    %c0_i32 = arith.constant 0 : i32
    %c0_i32_0 = arith.constant 0 : i32
    return %c0_i32, %arg0 : i32, i32
  }
}

</mosaic_0001>

<llo_original>
// kernel: tpu_custom_call.1
$region0: #{tpu_custom_call.1}
  #allocation0 [shape = 'u32[]', space=smem, size = 0x4, offset = 0x4, fixed_abs, tag = 'smem constant byte address 0x4 - core index']
  #allocation1 [shape = 'u32[144,128]{1,0:T(1,128)}', space=vmem, size = 0x12000, scoped, tag = 'internal scratch']
  #allocation2 [shape = 's32[1]{0}', space=sflag, size = 0x4, scoped, tag = 'scoped memory for tpu_custom_call.1']
  #allocation3 [shape = 'f32[1]{0:T(128)S(6)}', space=smem, size = 0x200, scoped, tag = 'prefetched SMEM operand 0']
  %s0 = inlined_call_operand.<no memory space> [shape: f32[1], index: 0, kind: input, shape index: {}]
  %s1 = inlined_call_operand.hbm [shape: f32[128,24,128], index: 1, kind: input, shape index: {}]
  %s2 = inlined_call_operand.hbm [shape: f32[128,24,128], index: 2, kind: input, shape index: {}]
  %s3 = inlined_call_operand.vmem [shape: f32[128,24], index: 3, kind: input, shape index: {}]
  %s4 = inlined_call_operand.hbm [shape: bf16[128,128], index: 4, kind: input, shape index: {}]
  %s5 = inlined_call_operand.hbm [shape: f32[2,128], index: 5, kind: input, shape index: {}]
  %s6 = inlined_call_operand.hbm [shape: f32[2,128], index: 6, kind: output, shape index: {}]
  %s7 = sld [smem:[#allocation0]]
  $region46: #{tpu_custom_call.1} parent=0
    _
  %s9 = ssub.s32 1, %s7
  %s10 = scalar_select 0, %s9, %s7
  %11 = sst [smem:[#allocation3]] %s0
  $region1: #{tpu_custom_call.1} parent=0
    #allocation4 [shape = 'u8[1572864]{0}', space=vmem, size = 0x180000, scoped, tag = 'input window, operand 1, single buffered']
    #allocation5 [shape = 's32[1]{0}', space=sflag, size = 0x4, scoped, tag = 'scoped memory for tpu_custom_call.1']
    #allocation6 [shape = 's32[1]{0}', space=sflag, size = 0x4, scoped, tag = 'scoped memory for tpu_custom_call.1']
    #allocation7 [shape = 'u8[1572864]{0}', space=vmem, size = 0x180000, scoped, tag = 'input window, operand 2, single buffered']
    #allocation8 [shape = 's32[1]{0}', space=sflag, size = 0x4, scoped, tag = 'scoped memory for tpu_custom_call.1']
    #allocation9 [shape = 'u8[32768]{0}', space=vmem, size = 0x8000, scoped, tag = 'input window, operand 4, single buffered']
    #allocation10 [shape = 'u8[1024]{0}', space=vmem, size = 0x400, scoped, tag = 'input window, operand 5, single buffered']
    #allocation11 [shape = 's32[1]{0}', space=sflag, size = 0x4, scoped, tag = 'scoped memory for tpu_custom_call.1']
    #allocation12 [shape = 'u8[1024]{0}', space=vmem, size = 0x400, scoped, tag = 'output window, operand 0, single buffered']
    %12 = vsyncpa [#allocation5], 0
    %13 = vsyncpa [#allocation8], 0
    %14 = vsyncpa [#allocation11], 0
    %15 = vsyncpa [#allocation6], 0
    // Predicated region
    $region2: #{tpu_custom_call.1} parent=1 // pred_check
      _
    $region3: #{tpu_custom_call.1} parent=1 // pred_check_branch
      %17 = sbr.rel (0) target = $region5
    $region4: #{tpu_custom_call.1} parent=1 // pred_region
      %s19 = ssub.s32 49152, 49152
      %20 = vsyncadd [#allocation5], %s19
      %s21 = sshll.u32 [#allocation4], 4
      %s22 = int_to_ptr.vmem [resolvable:$true] %s21
      %27 = dma.hbm_to_vmem [thread:$0]  %s1, 49152, %s22, [#allocation5], 128, 128, 8
    $region5: #{tpu_custom_call.1} parent=1 // pred_fallthru
      _
    // Predicated region
    $region6: #{tpu_custom_call.1} parent=1 // pred_check
      _
    $region7: #{tpu_custom_call.1} parent=1 // pred_check_branch
      %29 = sbr.rel (0) target = $region9
    $region8: #{tpu_custom_call.1} parent=1 // pred_region
      %s31 = ssub.s32 49152, 49152
      %32 = vsyncadd [#allocation8], %s31
      %s33 = sshll.u32 [#allocation7], 4
      %s34 = int_to_ptr.vmem [resolvable:$true] %s33
      %39 = dma.hbm_to_vmem [thread:$0]  %s2, 49152, %s34, [#allocation8], 128, 128, 8
    $region9: #{tpu_custom_call.1} parent=1 // pred_fallthru
      _
    // Predicated region
    $region10: #{tpu_custom_call.1} parent=1 // pred_check
      _
    $region11: #{tpu_custom_call.1} parent=1 // pred_check_branch
      %41 = sbr.rel (0) target = $region13
    $region12: #{tpu_custom_call.1} parent=1 // pred_region
      _
    $region13: #{tpu_custom_call.1} parent=1 // pred_fallthru
      _
    // Predicated region
    $region14: #{tpu_custom_call.1} parent=1 // pred_check
      _
    $region15: #{tpu_custom_call.1} parent=1 // pred_check_branch
      %43 = sbr.rel (0) target = $region17
    $region16: #{tpu_custom_call.1} parent=1 // pred_region
      %s45 = ssub.s32 1024, 1024
      %46 = vsyncadd [#allocation8], %s45
      %s47 = sshll.u32 [#allocation9], 4
      %s48 = int_to_ptr.vmem [resolvable:$true] %s47
      %53 = dma.hbm_to_vmem [thread:$0]  %s4, 1024, %s48, [#allocation8], 64, 64, 4
    $region17: #{tpu_custom_call.1} parent=1 // pred_fallthru
      _
    // Predicated region
    $region18: #{tpu_custom_call.1} parent=1 // pred_check
      _
    $region19: #{tpu_custom_call.1} parent=1 // pred_check_branch
      %55 = sbr.rel (0) target = $region21
    $region20: #{tpu_custom_call.1} parent=1 // pred_region
      %s57 = ssub.s32 32, 32
      %58 = vsyncadd [#allocation11], %s57
      %s60 = sshll.u32 [#allocation10], 4
      %s61 = int_to_ptr.vmem [resolvable:$true] %s60
      %63 = dma.hbm_to_vmem [thread:$0]  %s5, 32, %s61, [#allocation11]
    $region21: #{tpu_custom_call.1} parent=1 // pred_fallthru
      _
    // Predicated region
    $region22: #{tpu_custom_call.1} parent=1 // pred_check
      _
    $region23: #{tpu_custom_call.1} parent=1 // pred_check_branch
      %65 = sbr.rel (0) target = $region25
    $region24: #{tpu_custom_call.1} parent=1 // pred_region
      %66 = dma.done [#allocation5], 49152
    $region25: #{tpu_custom_call.1} parent=1 // pred_fallthru
      _
    // Predicated region
    $region26: #{tpu_custom_call.1} parent=1 // pred_check
      _
    $region27: #{tpu_custom_call.1} parent=1 // pred_check_branch
      %68 = sbr.rel (0) target = $region29
    $region28: #{tpu_custom_call.1} parent=1 // pred_region
      %69 = dma.done [#allocation8], 49152
    $region29: #{tpu_custom_call.1} parent=1 // pred_fallthru
      _
    // Predicated region
    $region30: #{tpu_custom_call.1} parent=1 // pred_check
      _
    $region31: #{tpu_custom_call.1} parent=1 // pred_check_branch
      %71 = sbr.rel (0) target = $region33
    $region32: #{tpu_custom_call.1} parent=1 // pred_region
      %72 = dma.done [#allocation8], 1024
    $region33: #{tpu_custom_call.1} parent=1 // pred_fallthru
      _
    // Predicated region
    $region34: #{tpu_custom_call.1} parent=1 // pred_check
      _
    $region35: #{tpu_custom_call.1} parent=1 // pred_check_branch
      %74 = sbr.rel (0) target = $region37
    $region36: #{tpu_custom_call.1} parent=1 // pred_region
      %75 = dma.done [#allocation11], 32
    $region37: #{tpu_custom_call.1} parent=1 // pred_fallthru
      _
    %v77 = vld [vmem:[#allocation4] sm:$0xff]
    %v78 = vld [vmem:[#allocation4 + $0x8] sm:$0xff]
    %v79 = vld [vmem:[#allocation4 + $0x10] sm:$0xff]
    %v80 = vld [vmem:[#allocation4 + $0x18] sm:$0xff]
    %v81 = vld [vmem:[#allocation4 + $0x20] sm:$0xff]
    %v82 = vld [vmem:[#allocation4 + $0x28] sm:$0xff]
    %v83 = vld [vmem:[#allocation4 + $0x30] sm:$0xff]
    %v84 = vld [vmem:[#allocation4 + $0x38] sm:$0xff]
    %v85 = vld [vmem:[#allocation4 + $0x40] sm:$0xff]
    %v86 = vld [vmem:[#allocation4 + $0x48] sm:$0xff]
    %v87 = vld [vmem:[#allocation4 + $0x50] sm:$0xff]
    %v88 = vld [vmem:[#allocation4 + $0x58] sm:$0xff]
    %v89 = vld [vmem:[#allocation4 + $0x60] sm:$0xff]
    %v90 = vld [vmem:[#allocation4 + $0x68] sm:$0xff]
    %v91 = vld [vmem:[#allocation4 + $0x70] sm:$0xff]
    %v92 = vld [vmem:[#allocation4 + $0x78] sm:$0xff]
    %v93 = vld [vmem:[#allocation4 + $0x80] sm:$0xff]
    %v94 = vld [vmem:[#allocation4 + $0x88] sm:$0xff]
    %v95 = vld [vmem:[#allocation4 + $0x90] sm:$0xff]
    %v96 = vld [vmem:[#allocation4 + $0x98] sm:$0xff]
    %v97 = vld [vmem:[#allocation4 + $0xa0] sm:$0xff]
    %v98 = vld [vmem:[#allocation4 + $0xa8] sm:$0xff]
    %v99 = vld [vmem:[#allocation4 + $0xb0] sm:$0xff]
    %v100 = vld [vmem:[#allocation4 + $0xb8] sm:$0xff]
    %v101 = vld [vmem:[#allocation4 + $0xc0] sm:$0xff]
    %v102 = vld [vmem:[#allocation4 + $0xc8] sm:$0xff]
    %v103 = vld [vmem:[#allocation4 + $0xd0] sm:$0xff]
    %v104 = vld [vmem:[#allocation4 + $0xd8] sm:$0xff]
    %v105 = vld [vmem:[#allocation4 + $0xe0] sm:$0xff]
    %v106 = vld [vmem:[#allocation4 + $0xe8] sm:$0xff]
    %v107 = vld [vmem:[#allocation4 + $0xf0] sm:$0xff]
    %v108 = vld [vmem:[#allocation4 + $0xf8] sm:$0xff]
    %v109 = vld [vmem:[#allocation4 + $0x100] sm:$0xff]
    %v110 = vld [vmem:[#allocation4 + $0x108] sm:$0xff]
    %v111 = vld [vmem:[#allocation4 + $0x110] sm:$0xff]
    %v112 = vld [vmem:[#allocation4 + $0x118] sm:$0xff]
    %v113 = vld [vmem:[#allocation4 + $0x120] sm:$0xff]
    %v114 = vld [vmem:[#allocation4 + $0x128] sm:$0xff]
    %v115 = vld [vmem:[#allocation4 + $0x130] sm:$0xff]
    %v116 = vld [vmem:[#allocation4 + $0x138] sm:$0xff]
    %v117 = vld [vmem:[#allocation4 + $0x140] sm:$0xff]
    %v118 = vld [vmem:[#allocation4 + $0x148] sm:$0xff]
    %v119 = vld [vmem:[#allocation4 + $0x150] sm:$0xff]
    %v120 = vld [vmem:[#allocation4 + $0x158] sm:$0xff]
    %v121 = vld [vmem:[#allocation4 + $0x160] sm:$0xff]
    %v122 = vld [vmem:[#allocation4 + $0x168] sm:$0xff]
    %v123 = vld [vmem:[#allocation4 + $0x170] sm:$0xff]
    %v124 = vld [vmem:[#allocation4 + $0x178] sm:$0xff]
    %v125 = vld [vmem:[#allocation4 + $0x180] sm:$0xff]
    %v126 = vld [vmem:[#allocation4 + $0x188] sm:$0xff]
    %v127 = vld [vmem:[#allocation4 + $0x190] sm:$0xff]
    %v128 = vld [vmem:[#allocation4 + $0x198] sm:$0xff]
    %v129 = vld [vmem:[#allocation4 + $0x1a0] sm:$0xff]
    %v130 = vld [vmem:[#allocation4 + $0x1a8] sm:$0xff]
    %v131 = vld [vmem:[#allocation4 + $0x1b0] sm:$0xff]
    %v132 = vld [vmem:[#allocation4 + $0x1b8] sm:$0xff]
    %v133 = vld [vmem:[#allocation4 + $0x1c0] sm:$0xff]
    %v134 = vld [vmem:[#allocation4 + $0x1c8] sm:$0xff]
    %v135 = vld [vmem:[#allocation4 + $0x1d0] sm:$0xff]
    %v136 = vld [vmem:[#allocation4 + $0x1d8] sm:$0xff]
    %v137 = vld [vmem:[#allocation4 + $0x1e0] sm:$0xff]
    %v138 = vld [vmem:[#allocation4 + $0x1e8] sm:$0xff]
    %v139 = vld [vmem:[#allocation4 + $0x1f0] sm:$0xff]
    %v140 = vld [vmem:[#allocation4 + $0x1f8] sm:$0xff]
    %v141 = vld [vmem:[#allocation4 + $0x200] sm:$0xff]
    %v142 = vld [vmem:[#allocation4 + $0x208] sm:$0xff]
    %v143 = vld [vmem:[#allocation4 + $0x210] sm:$0xff]
    %v144 = vld [vmem:[#allocation4 + $0x218] sm:$0xff]
    %v145 = vld [vmem:[#allocation4 + $0x220] sm:$0xff]
    %v146 = vld [vmem:[#allocation4 + $0x228] sm:$0xff]
    %v147 = vld [vmem:[#allocation4 + $0x230] sm:$0xff]
    %v148 = vld [vmem:[#allocation4 + $0x238] sm:$0xff]
    %v149 = vld [vmem:[#allocation4 + $0x240] sm:$0xff]
    %v150 = vld [vmem:[#allocation4 + $0x248] sm:$0xff]
    %v151 = vld [vmem:[#allocation4 + $0x250] sm:$0xff]
    %v152 = vld [vmem:[#allocation4 + $0x258] sm:$0xff]
    %v153 = vld [vmem:[#allocation4 + $0x260] sm:$0xff]
    %v154 = vld [vmem:[#allocation4 + $0x268] sm:$0xff]
    %v155 = vld [vmem:[#allocation4 + $0x270] sm:$0xff]
    %v156 = vld [vmem:[#allocation4 + $0x278] sm:$0xff]
    %v157 = vld [vmem:[#allocation4 + $0x280] sm:$0xff]
    %v158 = vld [vmem:[#allocation4 + $0x288] sm:$0xff]
    %v159 = vld [vmem:[#allocation4 + $0x290] sm:$0xff]
    %v160 = vld [vmem:[#allocation4 + $0x298] sm:$0xff]
    %v161 = vld [vmem:[#allocation4 + $0x2a0] sm:$0xff]
    %v162 = vld [vmem:[#allocation4 + $0x2a8] sm:$0xff]
    %v163 = vld [vmem:[#allocation4 + $0x2b0] sm:$0xff]
    %v164 = vld [vmem:[#allocation4 + $0x2b8] sm:$0xff]
    %v165 = vld [vmem:[#allocation4 + $0x2c0] sm:$0xff]
    %v166 = vld [vmem:[#allocation4 + $0x2c8] sm:$0xff]
    %v167 = vld [vmem:[#allocation4 + $0x2d0] sm:$0xff]
    %v168 = vld [vmem:[#allocation4 + $0x2d8] sm:$0xff]
    %v169 = vld [vmem:[#allocation4 + $0x2e0] sm:$0xff]
    %v170 = vld [vmem:[#allocation4 + $0x2e8] sm:$0xff]
    %v171 = vld [vmem:[#allocation4 + $0x2f0] sm:$0xff]
    %v172 = vld [vmem:[#allocation4 + $0x2f8] sm:$0xff]
    %v173 = vld [vmem:[#allocation4 + $0x300] sm:$0xff]
    %v174 = vld [vmem:[#allocation4 + $0x308] sm:$0xff]
    %v175 = vld [vmem:[#allocation4 + $0x310] sm:$0xff]
    %v176 = vld [vmem:[#allocation4 + $0x318] sm:$0xff]
    %v177 = vld [vmem:[#allocation4 + $0x320] sm:$0xff]
    %v178 = vld [vmem:[#allocation4 + $0x328] sm:$0xff]
    %v179 = vld [vmem:[#allocation4 + $0x330] sm:$0xff]
    %v180 = vld [vmem:[#allocation4 + $0x338] sm:$0xff]
    %v181 = vld [vmem:[#allocation4 + $0x340] sm:$0xff]
    %v182 = vld [vmem:[#allocation4 + $0x348] sm:$0xff]
    %v183 = vld [vmem:[#allocation4 + $0x350] sm:$0xff]
    %v184 = vld [vmem:[#allocation4 + $0x358] sm:$0xff]
    %v185 = vld [vmem:[#allocation4 + $0x360] sm:$0xff]
    %v186 = vld [vmem:[#allocation4 + $0x368] sm:$0xff]
    %v187 = vld [vmem:[#allocation4 + $0x370] sm:$0xff]
    %v188 = vld [vmem:[#allocation4 + $0x378] sm:$0xff]
    %v189 = vld [vmem:[#allocation4 + $0x380] sm:$0xff]
    %v190 = vld [vmem:[#allocation4 + $0x388] sm:$0xff]
    %v191 = vld [vmem:[#allocation4 + $0x390] sm:$0xff]
    %v192 = vld [vmem:[#allocation4 + $0x398] sm:$0xff]
    %v193 = vld [vmem:[#allocation4 + $0x3a0] sm:$0xff]
    %v194 = vld [vmem:[#allocation4 + $0x3a8] sm:$0xff]
    %v195 = vld [vmem:[#allocation4 + $0x3b0] sm:$0xff]
    %v196 = vld [vmem:[#allocation4 + $0x3b8] sm:$0xff]
    %v197 = vld [vmem:[#allocation4 + $0x3c0] sm:$0xff]
    %v198 = vld [vmem:[#allocation4 + $0x3c8] sm:$0xff]
    %v199 = vld [vmem:[#allocation4 + $0x3d0] sm:$0xff]
    %v200 = vld [vmem:[#allocation4 + $0x3d8] sm:$0xff]
    %v201 = vld [vmem:[#allocation4 + $0x3e0] sm:$0xff]
    %v202 = vld [vmem:[#allocation4 + $0x3e8] sm:$0xff]
    %v203 = vld [vmem:[#allocation4 + $0x3f0] sm:$0xff]
    %v204 = vld [vmem:[#allocation4 + $0x3f8] sm:$0xff]
    %v205 = vld [vmem:[#allocation4 + $0x400] sm:$0xff]
    %v206 = vld [vmem:[#allocation4 + $0x408] sm:$0xff]
    %v207 = vld [vmem:[#allocation4 + $0x410] sm:$0xff]
    %v208 = vld [vmem:[#allocation4 + $0x418] sm:$0xff]
    %v209 = vld [vmem:[#allocation4 + $0x420] sm:$0xff]
    %v210 = vld [vmem:[#allocation4 + $0x428] sm:$0xff]
    %v211 = vld [vmem:[#allocation4 + $0x430] sm:$0xff]
    %v212 = vld [vmem:[#allocation4 + $0x438] sm:$0xff]
    %v213 = vld [vmem:[#allocation4 + $0x440] sm:$0xff]
    %v214 = vld [vmem:[#allocation4 + $0x448] sm:$0xff]
    %v215 = vld [vmem:[#allocation4 + $0x450] sm:$0xff]
    %v216 = vld [vmem:[#allocation4 + $0x458] sm:$0xff]
    %v217 = vld [vmem:[#allocation4 + $0x460] sm:$0xff]
    %v218 = vld [vmem:[#allocation4 + $0x468] sm:$0xff]
    %v219 = vld [vmem:[#allocation4 + $0x470] sm:$0xff]
    %v220 = vld [vmem:[#allocation4 + $0x478] sm:$0xff]
    %v221 = vld [vmem:[#allocation4 + $0x480] sm:$0xff]
    %v222 = vld [vmem:[#allocation4 + $0x488] sm:$0xff]
    %v223 = vld [vmem:[#allocation4 + $0x490] sm:$0xff]
    %v224 = vld [vmem:[#allocation4 + $0x498] sm:$0xff]
    %v225 = vld [vmem:[#allocation4 + $0x4a0] sm:$0xff]
    %v226 = vld [vmem:[#allocation4 + $0x4a8] sm:$0xff]
    %v227 = vld [vmem:[#allocation4 + $0x4b0] sm:$0xff]
    %v228 = vld [vmem:[#allocation4 + $0x4b8] sm:$0xff]
    %v229 = vld [vmem:[#allocation4 + $0x4c0] sm:$0xff]
    %v230 = vld [vmem:[#allocation4 + $0x4c8] sm:$0xff]
    %v231 = vld [vmem:[#allocation4 + $0x4d0] sm:$0xff]
    %v232 = vld [vmem:[#allocation4 + $0x4d8] sm:$0xff]
    %v233 = vld [vmem:[#allocation4 + $0x4e0] sm:$0xff]
    %v234 = vld [vmem:[#allocation4 + $0x4e8] sm:$0xff]
    %v235 = vld [vmem:[#allocation4 + $0x4f0] sm:$0xff]
    %v236 = vld [vmem:[#allocation4 + $0x4f8] sm:$0xff]
    %v237 = vld [vmem:[#allocation4 + $0x500] sm:$0xff]
    %v238 = vld [vmem:[#allocation4 + $0x508] sm:$0xff]
    %v239 = vld [vmem:[#allocation4 + $0x510] sm:$0xff]
    %v240 = vld [vmem:[#allocation4 + $0x518] sm:$0xff]
    %v241 = vld [vmem:[#allocation4 + $0x520] sm:$0xff]
    %v242 = vld [vmem:[#allocation4 + $0x528] sm:$0xff]
    %v243 = vld [vmem:[#allocation4 + $0x530] sm:$0xff]
    %v244 = vld [vmem:[#allocation4 + $0x538] sm:$0xff]
    %v245 = vld [vmem:[#allocation4 + $0x540] sm:$0xff]
    %v246 = vld [vmem:[#allocation4 + $0x548] sm:$0xff]
    %v247 = vld [vmem:[#allocation4 + $0x550] sm:$0xff]
    %v248 = vld [vmem:[#allocation4 + $0x558] sm:$0xff]
    %v249 = vld [vmem:[#allocation4 + $0x560] sm:$0xff]
    %v250 = vld [vmem:[#allocation4 + $0x568] sm:$0xff]
    %v251 = vld [vmem:[#allocation4 + $0x570] sm:$0xff]
    %v252 = vld [vmem:[#allocation4 + $0x578] sm:$0xff]
    %v253 = vld [vmem:[#allocation4 + $0x580] sm:$0xff]
    %v254 = vld [vmem:[#allocation4 + $0x588] sm:$0xff]
    %v255 = vld [vmem:[#allocation4 + $0x590] sm:$0xff]
    %v256 = vld [vmem:[#allocation4 + $0x598] sm:$0xff]
    %v257 = vld [vmem:[#allocation4 + $0x5a0] sm:$0xff]
    %v258 = vld [vmem:[#allocation4 + $0x5a8] sm:$0xff]
    %v259 = vld [vmem:[#allocation4 + $0x5b0] sm:$0xff]
    %v260 = vld [vmem:[#allocation4 + $0x5b8] sm:$0xff]
    %v261 = vld [vmem:[#allocation4 + $0x5c0] sm:$0xff]
    %v262 = vld [vmem:[#allocation4 + $0x5c8] sm:$0xff]
    %v263 = vld [vmem:[#allocation4 + $0x5d0] sm:$0xff]
    %v264 = vld [vmem:[#allocation4 + $0x5d8] sm:$0xff]
    %v265 = vld [vmem:[#allocation4 + $0x5e0] sm:$0xff]
    %v266 = vld [vmem:[#allocation4 + $0x5e8] sm:$0xff]
    %v267 = vld [vmem:[#allocation4 + $0x5f0] sm:$0xff]
    %v268 = vld [vmem:[#allocation4 + $0x5f8] sm:$0xff]
    %v269 = vld [vmem:[#allocation4 + $0x600] sm:$0xff]
    %v270 = vld [vmem:[#allocation4 + $0x608] sm:$0xff]
    %v271 = vld [vmem:[#allocation4 + $0x610] sm:$0xff]
    %v272 = vld [vmem:[#allocation4 + $0x618] sm:$0xff]
    %v273 = vld [vmem:[#allocation4 + $0x620] sm:$0xff]
    %v274 = vld [vmem:[#allocation4 + $0x628] sm:$0xff]
    %v275 = vld [vmem:[#allocation4 + $0x630] sm:$0xff]
    %v276 = vld [vmem:[#allocation4 + $0x638] sm:$0xff]
    %v277 = vld [vmem:[#allocation4 + $0x640] sm:$0xff]
    %v278 = vld [vmem:[#allocation4 + $0x648] sm:$0xff]
    %v279 = vld [vmem:[#allocation4 + $0x650] sm:$0xff]
    %v280 = vld [vmem:[#allocation4 + $0x658] sm:$0xff]
    %v281 = vld [vmem:[#allocation4 + $0x660] sm:$0xff]
    %v282 = vld [vmem:[#allocation4 + $0x668] sm:$0xff]
    %v283 = vld [vmem:[#allocation4 + $0x670] sm:$0xff]
    %v284 = vld [vmem:[#allocation4 + $0x678] sm:$0xff]
    %v285 = vld [vmem:[#allocation4 + $0x680] sm:$0xff]
    %v286 = vld [vmem:[#allocation4 + $0x688] sm:$0xff]
    %v287 = vld [vmem:[#allocation4 + $0x690] sm:$0xff]
    %v288 = vld [vmem:[#allocation4 + $0x698] sm:$0xff]
    %v289 = vld [vmem:[#allocation4 + $0x6a0] sm:$0xff]
    %v290 = vld [vmem:[#allocation4 + $0x6a8] sm:$0xff]
    %v291 = vld [vmem:[#allocation4 + $0x6b0] sm:$0xff]
    %v292 = vld [vmem:[#allocation4 + $0x6b8] sm:$0xff]
    %v293 = vld [vmem:[#allocation4 + $0x6c0] sm:$0xff]
    %v294 = vld [vmem:[#allocation4 + $0x6c8] sm:$0xff]
    %v295 = vld [vmem:[#allocation4 + $0x6d0] sm:$0xff]
    %v296 = vld [vmem:[#allocation4 + $0x6d8] sm:$0xff]
    %v297 = vld [vmem:[#allocation4 + $0x6e0] sm:$0xff]
    %v298 = vld [vmem:[#allocation4 + $0x6e8] sm:$0xff]
    %v299 = vld [vmem:[#allocation4 + $0x6f0] sm:$0xff]
    %v300 = vld [vmem:[#allocation4 + $0x6f8] sm:$0xff]
    %v301 = vld [vmem:[#allocation4 + $0x700] sm:$0xff]
    %v302 = vld [vmem:[#allocation4 + $0x708] sm:$0xff]
    %v303 = vld [vmem:[#allocation4 + $0x710] sm:$0xff]
    %v304 = vld [vmem:[#allocation4 + $0x718] sm:$0xff]
    %v305 = vld [vmem:[#allocation4 + $0x720] sm:$0xff]
    %v306 = vld [vmem:[#allocation4 + $0x728] sm:$0xff]
    %v307 = vld [vmem:[#allocation4 + $0x730] sm:$0xff]
    %v308 = vld [vmem:[#allocation4 + $0x738] sm:$0xff]
    %v309 = vld [vmem:[#allocation4 + $0x740] sm:$0xff]
    %v310 = vld [vmem:[#allocation4 + $0x748] sm:$0xff]
    %v311 = vld [vmem:[#allocation4 + $0x750] sm:$0xff]
    %v312 = vld [vmem:[#allocation4 + $0x758] sm:$0xff]
    %v313 = vld [vmem:[#allocation4 + $0x760] sm:$0xff]
    %v314 = vld [vmem:[#allocation4 + $0x768] sm:$0xff]
    %v315 = vld [vmem:[#allocation4 + $0x770] sm:$0xff]
    %v316 = vld [vmem:[#allocation4 + $0x778] sm:$0xff]
    %v317 = vld [vmem:[#allocation4 + $0x780] sm:$0xff]
    %v318 = vld [vmem:[#allocation4 + $0x788] sm:$0xff]
    %v319 = vld [vmem:[#allocation4 + $0x790] sm:$0xff]
    %v320 = vld [vmem:[#allocation4 + $0x798] sm:$0xff]
    %v321 = vld [vmem:[#allocation4 + $0x7a0] sm:$0xff]
    %v322 = vld [vmem:[#allocation4 + $0x7a8] sm:$0xff]
    %v323 = vld [vmem:[#allocation4 + $0x7b0] sm:$0xff]
    %v324 = vld [vmem:[#allocation4 + $0x7b8] sm:$0xff]
    %v325 = vld [vmem:[#allocation4 + $0x7c0] sm:$0xff]
    %v326 = vld [vmem:[#allocation4 + $0x7c8] sm:$0xff]
    %v327 = vld [vmem:[#allocation4 + $0x7d0] sm:$0xff]
    %v328 = vld [vmem:[#allocation4 + $0x7d8] sm:$0xff]
    %v329 = vld [vmem:[#allocation4 + $0x7e0] sm:$0xff]
    %v330 = vld [vmem:[#allocation4 + $0x7e8] sm:$0xff]
    %v331 = vld [vmem:[#allocation4 + $0x7f0] sm:$0xff]
    %v332 = vld [vmem:[#allocation4 + $0x7f8] sm:$0xff]
    %v333 = vld [vmem:[#allocation4 + $0x800] sm:$0xff]
    %v334 = vld [vmem:[#allocation4 + $0x808] sm:$0xff]
    %v335 = vld [vmem:[#allocation4 + $0x810] sm:$0xff]
    %v336 = vld [vmem:[#allocation4 + $0x818] sm:$0xff]
    %v337 = vld [vmem:[#allocation4 + $0x820] sm:$0xff]
    %v338 = vld [vmem:[#allocation4 + $0x828] sm:$0xff]
    %v339 = vld [vmem:[#allocation4 + $0x830] sm:$0xff]
    %v340 = vld [vmem:[#allocation4 + $0x838] sm:$0xff]
    %v341 = vld [vmem:[#allocation4 + $0x840] sm:$0xff]
    %v342 = vld [vmem:[#allocation4 + $0x848] sm:$0xff]
    %v343 = vld [vmem:[#allocation4 + $0x850] sm:$0xff]
    %v344 = vld [vmem:[#allocation4 + $0x858] sm:$0xff]
    %v345 = vld [vmem:[#allocation4 + $0x860] sm:$0xff]
    %v346 = vld [vmem:[#allocation4 + $0x868] sm:$0xff]
    %v347 = vld [vmem:[#allocation4 + $0x870] sm:$0xff]
    %v348 = vld [vmem:[#allocation4 + $0x878] sm:$0xff]
    %v349 = vld [vmem:[#allocation4 + $0x880] sm:$0xff]
    %v350 = vld [vmem:[#allocation4 + $0x888] sm:$0xff]
    %v351 = vld [vmem:[#allocation4 + $0x890] sm:$0xff]
    %v352 = vld [vmem:[#allocation4 + $0x898] sm:$0xff]
    %v353 = vld [vmem:[#allocation4 + $0x8a0] sm:$0xff]
    %v354 = vld [vmem:[#allocation4 + $0x8a8] sm:$0xff]
    %v355 = vld [vmem:[#allocation4 + $0x8b0] sm:$0xff]
    %v356 = vld [vmem:[#allocation4 + $0x8b8] sm:$0xff]
    %v357 = vld [vmem:[#allocation4 + $0x8c0] sm:$0xff]
    %v358 = vld [vmem:[#allocation4 + $0x8c8] sm:$0xff]
    %v359 = vld [vmem:[#allocation4 + $0x8d0] sm:$0xff]
    %v360 = vld [vmem:[#allocation4 + $0x8d8] sm:$0xff]
    %v361 = vld [vmem:[#allocation4 + $0x8e0] sm:$0xff]
    %v362 = vld [vmem:[#allocation4 + $0x8e8] sm:$0xff]
    %v363 = vld [vmem:[#allocation4 + $0x8f0] sm:$0xff]
    %v364 = vld [vmem:[#allocation4 + $0x8f8] sm:$0xff]
    %v365 = vld [vmem:[#allocation4 + $0x900] sm:$0xff]
    %v366 = vld [vmem:[#allocation4 + $0x908] sm:$0xff]
    %v367 = vld [vmem:[#allocation4 + $0x910] sm:$0xff]
    %v368 = vld [vmem:[#allocation4 + $0x918] sm:$0xff]
    %v369 = vld [vmem:[#allocation4 + $0x920] sm:$0xff]
    %v370 = vld [vmem:[#allocation4 + $0x928] sm:$0xff]
    %v371 = vld [vmem:[#allocation4 + $0x930] sm:$0xff]
    %v372 = vld [vmem:[#allocation4 + $0x938] sm:$0xff]
    %v373 = vld [vmem:[#allocation4 + $0x940] sm:$0xff]
    %v374 = vld [vmem:[#allocation4 + $0x948] sm:$0xff]
    %v375 = vld [vmem:[#allocation4 + $0x950] sm:$0xff]
    %v376 = vld [vmem:[#allocation4 + $0x958] sm:$0xff]
    %v377 = vld [vmem:[#allocation4 + $0x960] sm:$0xff]
    %v378 = vld [vmem:[#allocation4 + $0x968] sm:$0xff]
    %v379 = vld [vmem:[#allocation4 + $0x970] sm:$0xff]
    %v380 = vld [vmem:[#allocation4 + $0x978] sm:$0xff]
    %v381 = vld [vmem:[#allocation4 + $0x980] sm:$0xff]
    %v382 = vld [vmem:[#allocation4 + $0x988] sm:$0xff]
    %v383 = vld [vmem:[#allocation4 + $0x990] sm:$0xff]
    %v384 = vld [vmem:[#allocation4 + $0x998] sm:$0xff]
    %v385 = vld [vmem:[#allocation4 + $0x9a0] sm:$0xff]
    %v386 = vld [vmem:[#allocation4 + $0x9a8] sm:$0xff]
    %v387 = vld [vmem:[#allocation4 + $0x9b0] sm:$0xff]
    %v388 = vld [vmem:[#allocation4 + $0x9b8] sm:$0xff]
    %v389 = vld [vmem:[#allocation4 + $0x9c0] sm:$0xff]
    %v390 = vld [vmem:[#allocation4 + $0x9c8] sm:$0xff]
    %v391 = vld [vmem:[#allocation4 + $0x9d0] sm:$0xff]
    %v392 = vld [vmem:[#allocation4 + $0x9d8] sm:$0xff]
    %v393 = vld [vmem:[#allocation4 + $0x9e0] sm:$0xff]
    %v394 = vld [vmem:[#allocation4 + $0x9e8] sm:$0xff]
    %v395 = vld [vmem:[#allocation4 + $0x9f0] sm:$0xff]
    %v396 = vld [vmem:[#allocation4 + $0x9f8] sm:$0xff]
    %v397 = vld [vmem:[#allocation4 + $0xa00] sm:$0xff]
    %v398 = vld [vmem:[#allocation4 + $0xa08] sm:$0xff]
    %v399 = vld [vmem:[#allocation4 + $0xa10] sm:$0xff]
    %v400 = vld [vmem:[#allocation4 + $0xa18] sm:$0xff]
    %v401 = vld [vmem:[#allocation4 + $0xa20] sm:$0xff]
    %v402 = vld [vmem:[#allocation4 + $0xa28] sm:$0xff]
    %v403 = vld [vmem:[#allocation4 + $0xa30] sm:$0xff]
    %v404 = vld [vmem:[#allocation4 + $0xa38] sm:$0xff]
    %v405 = vld [vmem:[#allocation4 + $0xa40] sm:$0xff]
    %v406 = vld [vmem:[#allocation4 + $0xa48] sm:$0xff]
    %v407 = vld [vmem:[#allocation4 + $0xa50] sm:$0xff]
    %v408 = vld [vmem:[#allocation4 + $0xa58] sm:$0xff]
    %v409 = vld [vmem:[#allocation4 + $0xa60] sm:$0xff]
    %v410 = vld [vmem:[#allocation4 + $0xa68] sm:$0xff]
    %v411 = vld [vmem:[#allocation4 + $0xa70] sm:$0xff]
    %v412 = vld [vmem:[#allocation4 + $0xa78] sm:$0xff]
    %v413 = vld [vmem:[#allocation4 + $0xa80] sm:$0xff]
    %v414 = vld [vmem:[#allocation4 + $0xa88] sm:$0xff]
    %v415 = vld [vmem:[#allocation4 + $0xa90] sm:$0xff]
    %v416 = vld [vmem:[#allocation4 + $0xa98] sm:$0xff]
    %v417 = vld [vmem:[#allocation4 + $0xaa0] sm:$0xff]
    %v418 = vld [vmem:[#allocation4 + $0xaa8] sm:$0xff]
    %v419 = vld [vmem:[#allocation4 + $0xab0] sm:$0xff]
    %v420 = vld [vmem:[#allocation4 + $0xab8] sm:$0xff]
    %v421 = vld [vmem:[#allocation4 + $0xac0] sm:$0xff]
    %v422 = vld [vmem:[#allocation4 + $0xac8] sm:$0xff]
    %v423 = vld [vmem:[#allocation4 + $0xad0] sm:$0xff]
    %v424 = vld [vmem:[#allocation4 + $0xad8] sm:$0xff]
    %v425 = vld [vmem:[#allocation4 + $0xae0] sm:$0xff]
    %v426 = vld [vmem:[#allocation4 + $0xae8] sm:$0xff]
    %v427 = vld [vmem:[#allocation4 + $0xaf0] sm:$0xff]
    %v428 = vld [vmem:[#allocation4 + $0xaf8] sm:$0xff]
    %v429 = vld [vmem:[#allocation4 + $0xb00] sm:$0xff]
    %v430 = vld [vmem:[#allocation4 + $0xb08] sm:$0xff]
    %v431 = vld [vmem:[#allocation4 + $0xb10] sm:$0xff]
    %v432 = vld [vmem:[#allocation4 + $0xb18] sm:$0xff]
    %v433 = vld [vmem:[#allocation4 + $0xb20] sm:$0xff]
    %v434 = vld [vmem:[#allocation4 + $0xb28] sm:$0xff]
    %v435 = vld [vmem:[#allocation4 + $0xb30] sm:$0xff]
    %v436 = vld [vmem:[#allocation4 + $0xb38] sm:$0xff]
    %v437 = vld [vmem:[#allocation4 + $0xb40] sm:$0xff]
    %v438 = vld [vmem:[#allocation4 + $0xb48] sm:$0xff]
    %v439 = vld [vmem:[#allocation4 + $0xb50] sm:$0xff]
    %v440 = vld [vmem:[#allocation4 + $0xb58] sm:$0xff]
    %v441 = vld [vmem:[#allocation4 + $0xb60] sm:$0xff]
    %v442 = vld [vmem:[#allocation4 + $0xb68] sm:$0xff]
    %v443 = vld [vmem:[#allocation4 + $0xb70] sm:$0xff]
    %v444 = vld [vmem:[#allocation4 + $0xb78] sm:$0xff]
    %v445 = vld [vmem:[#allocation4 + $0xb80] sm:$0xff]
    %v446 = vld [vmem:[#allocation4 + $0xb88] sm:$0xff]
    %v447 = vld [vmem:[#allocation4 + $0xb90] sm:$0xff]
    %v448 = vld [vmem:[#allocation4 + $0xb98] sm:$0xff]
    %v449 = vld [vmem:[#allocation4 + $0xba0] sm:$0xff]
    %v450 = vld [vmem:[#allocation4 + $0xba8] sm:$0xff]
    %v451 = vld [vmem:[#allocation4 + $0xbb0] sm:$0xff]
    %v452 = vld [vmem:[#allocation4 + $0xbb8] sm:$0xff]
    %v453 = vld [vmem:[#allocation4 + $0xbc0] sm:$0xff]
    %v454 = vld [vmem:[#allocation4 + $0xbc8] sm:$0xff]
    %v455 = vld [vmem:[#allocation4 + $0xbd0] sm:$0xff]
    %v456 = vld [vmem:[#allocation4 + $0xbd8] sm:$0xff]
    %v457 = vld [vmem:[#allocation4 + $0xbe0] sm:$0xff]
    %v458 = vld [vmem:[#allocation4 + $0xbe8] sm:$0xff]
    %v459 = vld [vmem:[#allocation4 + $0xbf0] sm:$0xff]
    %v460 = vld [vmem:[#allocation4 + $0xbf8] sm:$0xff]
    %v461 = vld [vmem:[#allocation7] sm:$0xff]
    %v462 = vld [vmem:[#allocation7 + $0x8] sm:$0xff]
    %v463 = vld [vmem:[#allocation7 + $0x10] sm:$0xff]
    %v464 = vld [vmem:[#allocation7 + $0x18] sm:$0xff]
    %v465 = vld [vmem:[#allocation7 + $0x20] sm:$0xff]
    %v466 = vld [vmem:[#allocation7 + $0x28] sm:$0xff]
    %v467 = vld [vmem:[#allocation7 + $0x30] sm:$0xff]
    %v468 = vld [vmem:[#allocation7 + $0x38] sm:$0xff]
    %v469 = vld [vmem:[#allocation7 + $0x40] sm:$0xff]
    %v470 = vld [vmem:[#allocation7 + $0x48] sm:$0xff]
    %v471 = vld [vmem:[#allocation7 + $0x50] sm:$0xff]
    %v472 = vld [vmem:[#allocation7 + $0x58] sm:$0xff]
    %v473 = vld [vmem:[#allocation7 + $0x60] sm:$0xff]
    %v474 = vld [vmem:[#allocation7 + $0x68] sm:$0xff]
    %v475 = vld [vmem:[#allocation7 + $0x70] sm:$0xff]
    %v476 = vld [vmem:[#allocation7 + $0x78] sm:$0xff]
    %v477 = vld [vmem:[#allocation7 + $0x80] sm:$0xff]
    %v478 = vld [vmem:[#allocation7 + $0x88] sm:$0xff]
    %v479 = vld [vmem:[#allocation7 + $0x90] sm:$0xff]
    %v480 = vld [vmem:[#allocation7 + $0x98] sm:$0xff]
    %v481 = vld [vmem:[#allocation7 + $0xa0] sm:$0xff]
    %v482 = vld [vmem:[#allocation7 + $0xa8] sm:$0xff]
    %v483 = vld [vmem:[#allocation7 + $0xb0] sm:$0xff]
    %v484 = vld [vmem:[#allocation7 + $0xb8] sm:$0xff]
    %v485 = vld [vmem:[#allocation7 + $0xc0] sm:$0xff]
    %v486 = vld [vmem:[#allocation7 + $0xc8] sm:$0xff]
    %v487 = vld [vmem:[#allocation7 + $0xd0] sm:$0xff]
    %v488 = vld [vmem:[#allocation7 + $0xd8] sm:$0xff]
    %v489 = vld [vmem:[#allocation7 + $0xe0] sm:$0xff]
    %v490 = vld [vmem:[#allocation7 + $0xe8] sm:$0xff]
    %v491 = vld [vmem:[#allocation7 + $0xf0] sm:$0xff]
    %v492 = vld [vmem:[#allocation7 + $0xf8] sm:$0xff]
    %v493 = vld [vmem:[#allocation7 + $0x100] sm:$0xff]
    %v494 = vld [vmem:[#allocation7 + $0x108] sm:$0xff]
    %v495 = vld [vmem:[#allocation7 + $0x110] sm:$0xff]
    %v496 = vld [vmem:[#allocation7 + $0x118] sm:$0xff]
    %v497 = vld [vmem:[#allocation7 + $0x120] sm:$0xff]
    %v498 = vld [vmem:[#allocation7 + $0x128] sm:$0xff]
    %v499 = vld [vmem:[#allocation7 + $0x130] sm:$0xff]
    %v500 = vld [vmem:[#allocation7 + $0x138] sm:$0xff]
    %v501 = vld [vmem:[#allocation7 + $0x140] sm:$0xff]
    %v502 = vld [vmem:[#allocation7 + $0x148] sm:$0xff]
    %v503 = vld [vmem:[#allocation7 + $0x150] sm:$0xff]
    %v504 = vld [vmem:[#allocation7 + $0x158] sm:$0xff]
    %v505 = vld [vmem:[#allocation7 + $0x160] sm:$0xff]
    %v506 = vld [vmem:[#allocation7 + $0x168] sm:$0xff]
    %v507 = vld [vmem:[#allocation7 + $0x170] sm:$0xff]
    %v508 = vld [vmem:[#allocation7 + $0x178] sm:$0xff]
    %v509 = vld [vmem:[#allocation7 + $0x180] sm:$0xff]
    %v510 = vld [vmem:[#allocation7 + $0x188] sm:$0xff]
    %v511 = vld [vmem:[#allocation7 + $0x190] sm:$0xff]
    %v512 = vld [vmem:[#allocation7 + $0x198] sm:$0xff]
    %v513 = vld [vmem:[#allocation7 + $0x1a0] sm:$0xff]
    %v514 = vld [vmem:[#allocation7 + $0x1a8] sm:$0xff]
    %v515 = vld [vmem:[#allocation7 + $0x1b0] sm:$0xff]
    %v516 = vld [vmem:[#allocation7 + $0x1b8] sm:$0xff]
    %v517 = vld [vmem:[#allocation7 + $0x1c0] sm:$0xff]
    %v518 = vld [vmem:[#allocation7 + $0x1c8] sm:$0xff]
    %v519 = vld [vmem:[#allocation7 + $0x1d0] sm:$0xff]
    %v520 = vld [vmem:[#allocation7 + $0x1d8] sm:$0xff]
    %v521 = vld [vmem:[#allocation7 + $0x1e0] sm:$0xff]
    %v522 = vld [vmem:[#allocation7 + $0x1e8] sm:$0xff]
    %v523 = vld [vmem:[#allocation7 + $0x1f0] sm:$0xff]
    %v524 = vld [vmem:[#allocation7 + $0x1f8] sm:$0xff]
    %v525 = vld [vmem:[#allocation7 + $0x200] sm:$0xff]
    %v526 = vld [vmem:[#allocation7 + $0x208] sm:$0xff]
    %v527 = vld [vmem:[#allocation7 + $0x210] sm:$0xff]
    %v528 = vld [vmem:[#allocation7 + $0x218] sm:$0xff]
    %v529 = vld [vmem:[#allocation7 + $0x220] sm:$0xff]
    %v530 = vld [vmem:[#allocation7 + $0x228] sm:$0xff]
    %v531 = vld [vmem:[#allocation7 + $0x230] sm:$0xff]
    %v532 = vld [vmem:[#allocation7 + $0x238] sm:$0xff]
    %v533 = vld [vmem:[#allocation7 + $0x240] sm:$0xff]
    %v534 = vld [vmem:[#allocation7 + $0x248] sm:$0xff]
    %v535 = vld [vmem:[#allocation7 + $0x250] sm:$0xff]
    %v536 = vld [vmem:[#allocation7 + $0x258] sm:$0xff]
    %v537 = vld [vmem:[#allocation7 + $0x260] sm:$0xff]
    %v538 = vld [vmem:[#allocation7 + $0x268] sm:$0xff]
    %v539 = vld [vmem:[#allocation7 + $0x270] sm:$0xff]
    %v540 = vld [vmem:[#allocation7 + $0x278] sm:$0xff]
    %v541 = vld [vmem:[#allocation7 + $0x280] sm:$0xff]
    %v542 = vld [vmem:[#allocation7 + $0x288] sm:$0xff]
    %v543 = vld [vmem:[#allocation7 + $0x290] sm:$0xff]
    %v544 = vld [vmem:[#allocation7 + $0x298] sm:$0xff]
    %v545 = vld [vmem:[#allocation7 + $0x2a0] sm:$0xff]
    %v546 = vld [vmem:[#allocation7 + $0x2a8] sm:$0xff]
    %v547 = vld [vmem:[#allocation7 + $0x2b0] sm:$0xff]
    %v548 = vld [vmem:[#allocation7 + $0x2b8] sm:$0xff]
    %v549 = vld [vmem:[#allocation7 + $0x2c0] sm:$0xff]
    %v550 = vld [vmem:[#allocation7 + $0x2c8] sm:$0xff]
    %v551 = vld [vmem:[#allocation7 + $0x2d0] sm:$0xff]
    %v552 = vld [vmem:[#allocation7 + $0x2d8] sm:$0xff]
    %v553 = vld [vmem:[#allocation7 + $0x2e0] sm:$0xff]
    %v554 = vld [vmem:[#allocation7 + $0x2e8] sm:$0xff]
    %v555 = vld [vmem:[#allocation7 + $0x2f0] sm:$0xff]
    %v556 = vld [vmem:[#allocation7 + $0x2f8] sm:$0xff]
    %v557 = vld [vmem:[#allocation7 + $0x300] sm:$0xff]
    %v558 = vld [vmem:[#allocation7 + $0x308] sm:$0xff]
    %v559 = vld [vmem:[#allocation7 + $0x310] sm:$0xff]
    %v560 = vld [vmem:[#allocation7 + $0x318] sm:$0xff]
    %v561 = vld [vmem:[#allocation7 + $0x320] sm:$0xff]
    %v562 = vld [vmem:[#allocation7 + $0x328] sm:$0xff]
    %v563 = vld [vmem:[#allocation7 + $0x330] sm:$0xff]
    %v564 = vld [vmem:[#allocation7 + $0x338] sm:$0xff]
    %v565 = vld [vmem:[#allocation7 + $0x340] sm:$0xff]
    %v566 = vld [vmem:[#allocation7 + $0x348] sm:$0xff]
    %v567 = vld [vmem:[#allocation7 + $0x350] sm:$0xff]
    %v568 = vld [vmem:[#allocation7 + $0x358] sm:$0xff]
    %v569 = vld [vmem:[#allocation7 + $0x360] sm:$0xff]
    %v570 = vld [vmem:[#allocation7 + $0x368] sm:$0xff]
    %v571 = vld [vmem:[#allocation7 + $0x370] sm:$0xff]
    %v572 = vld [vmem:[#allocation7 + $0x378] sm:$0xff]
    %v573 = vld [vmem:[#allocation7 + $0x380] sm:$0xff]
    %v574 = vld [vmem:[#allocation7 + $0x388] sm:$0xff]
    %v575 = vld [vmem:[#allocation7 + $0x390] sm:$0xff]
    %v576 = vld [vmem:[#allocation7 + $0x398] sm:$0xff]
    %v577 = vld [vmem:[#allocation7 + $0x3a0] sm:$0xff]
    %v578 = vld [vmem:[#allocation7 + $0x3a8] sm:$0xff]
    %v579 = vld [vmem:[#allocation7 + $0x3b0] sm:$0xff]
    %v580 = vld [vmem:[#allocation7 + $0x3b8] sm:$0xff]
    %v581 = vld [vmem:[#allocation7 + $0x3c0] sm:$0xff]
    %v582 = vld [vmem:[#allocation7 + $0x3c8] sm:$0xff]
    %v583 = vld [vmem:[#allocation7 + $0x3d0] sm:$0xff]
    %v584 = vld [vmem:[#allocation7 + $0x3d8] sm:$0xff]
    %v585 = vld [vmem:[#allocation7 + $0x3e0] sm:$0xff]
    %v586 = vld [vmem:[#allocation7 + $0x3e8] sm:$0xff]
    %v587 = vld [vmem:[#allocation7 + $0x3f0] sm:$0xff]
    %v588 = vld [vmem:[#allocation7 + $0x3f8] sm:$0xff]
    %v589 = vld [vmem:[#allocation7 + $0x400] sm:$0xff]
    %v590 = vld [vmem:[#allocation7 + $0x408] sm:$0xff]
    %v591 = vld [vmem:[#allocation7 + $0x410] sm:$0xff]
    %v592 = vld [vmem:[#allocation7 + $0x418] sm:$0xff]
    %v593 = vld [vmem:[#allocation7 + $0x420] sm:$0xff]
    %v594 = vld [vmem:[#allocation7 + $0x428] sm:$0xff]
    %v595 = vld [vmem:[#allocation7 + $0x430] sm:$0xff]
    %v596 = vld [vmem:[#allocation7 + $0x438] sm:$0xff]
    %v597 = vld [vmem:[#allocation7 + $0x440] sm:$0xff]
    %v598 = vld [vmem:[#allocation7 + $0x448] sm:$0xff]
    %v599 = vld [vmem:[#allocation7 + $0x450] sm:$0xff]
    %v600 = vld [vmem:[#allocation7 + $0x458] sm:$0xff]
    %v601 = vld [vmem:[#allocation7 + $0x460] sm:$0xff]
    %v602 = vld [vmem:[#allocation7 + $0x468] sm:$0xff]
    %v603 = vld [vmem:[#allocation7 + $0x470] sm:$0xff]
    %v604 = vld [vmem:[#allocation7 + $0x478] sm:$0xff]
    %v605 = vld [vmem:[#allocation7 + $0x480] sm:$0xff]
    %v606 = vld [vmem:[#allocation7 + $0x488] sm:$0xff]
    %v607 = vld [vmem:[#allocation7 + $0x490] sm:$0xff]
    %v608 = vld [vmem:[#allocation7 + $0x498] sm:$0xff]
    %v609 = vld [vmem:[#allocation7 + $0x4a0] sm:$0xff]
    %v610 = vld [vmem:[#allocation7 + $0x4a8] sm:$0xff]
    %v611 = vld [vmem:[#allocation7 + $0x4b0] sm:$0xff]
    %v612 = vld [vmem:[#allocation7 + $0x4b8] sm:$0xff]
    %v613 = vld [vmem:[#allocation7 + $0x4c0] sm:$0xff]
    %v614 = vld [vmem:[#allocation7 + $0x4c8] sm:$0xff]
    %v615 = vld [vmem:[#allocation7 + $0x4d0] sm:$0xff]
    %v616 = vld [vmem:[#allocation7 + $0x4d8] sm:$0xff]
    %v617 = vld [vmem:[#allocation7 + $0x4e0] sm:$0xff]
    %v618 = vld [vmem:[#allocation7 + $0x4e8] sm:$0xff]
    %v619 = vld [vmem:[#allocation7 + $0x4f0] sm:$0xff]
    %v620 = vld [vmem:[#allocation7 + $0x4f8] sm:$0xff]
    %v621 = vld [vmem:[#allocation7 + $0x500] sm:$0xff]
    %v622 = vld [vmem:[#allocation7 + $0x508] sm:$0xff]
    %v623 = vld [vmem:[#allocation7 + $0x510] sm:$0xff]
    %v624 = vld [vmem:[#allocation7 + $0x518] sm:$0xff]
    %v625 = vld [vmem:[#allocation7 + $0x520] sm:$0xff]
    %v626 = vld [vmem:[#allocation7 + $0x528] sm:$0xff]
    %v627 = vld [vmem:[#allocation7 + $0x530] sm:$0xff]
    %v628 = vld [vmem:[#allocation7 + $0x538] sm:$0xff]
    %v629 = vld [vmem:[#allocation7 + $0x540] sm:$0xff]
    %v630 = vld [vmem:[#allocation7 + $0x548] sm:$0xff]
    %v631 = vld [vmem:[#allocation7 + $0x550] sm:$0xff]
    %v632 = vld [vmem:[#allocation7 + $0x558] sm:$0xff]
    %v633 = vld [vmem:[#allocation7 + $0x560] sm:$0xff]
    %v634 = vld [vmem:[#allocation7 + $0x568] sm:$0xff]
    %v635 = vld [vmem:[#allocation7 + $0x570] sm:$0xff]
    %v636 = vld [vmem:[#allocation7 + $0x578] sm:$0xff]
    %v637 = vld [vmem:[#allocation7 + $0x580] sm:$0xff]
    %v638 = vld [vmem:[#allocation7 + $0x588] sm:$0xff]
    %v639 = vld [vmem:[#allocation7 + $0x590] sm:$0xff]
    %v640 = vld [vmem:[#allocation7 + $0x598] sm:$0xff]
    %v641 = vld [vmem:[#allocation7 + $0x5a0] sm:$0xff]
    %v642 = vld [vmem:[#allocation7 + $0x5a8] sm:$0xff]
    %v643 = vld [vmem:[#allocation7 + $0x5b0] sm:$0xff]
    %v644 = vld [vmem:[#allocation7 + $0x5b8] sm:$0xff]
    %v645 = vld [vmem:[#allocation7 + $0x5c0] sm:$0xff]
    %v646 = vld [vmem:[#allocation7 + $0x5c8] sm:$0xff]
    %v647 = vld [vmem:[#allocation7 + $0x5d0] sm:$0xff]
    %v648 = vld [vmem:[#allocation7 + $0x5d8] sm:$0xff]
    %v649 = vld [vmem:[#allocation7 + $0x5e0] sm:$0xff]
    %v650 = vld [vmem:[#allocation7 + $0x5e8] sm:$0xff]
    %v651 = vld [vmem:[#allocation7 + $0x5f0] sm:$0xff]
    %v652 = vld [vmem:[#allocation7 + $0x5f8] sm:$0xff]
    %v653 = vld [vmem:[#allocation7 + $0x600] sm:$0xff]
    %v654 = vld [vmem:[#allocation7 + $0x608] sm:$0xff]
    %v655 = vld [vmem:[#allocation7 + $0x610] sm:$0xff]
    %v656 = vld [vmem:[#allocation7 + $0x618] sm:$0xff]
    %v657 = vld [vmem:[#allocation7 + $0x620] sm:$0xff]
    %v658 = vld [vmem:[#allocation7 + $0x628] sm:$0xff]
    %v659 = vld [vmem:[#allocation7 + $0x630] sm:$0xff]
    %v660 = vld [vmem:[#allocation7 + $0x638] sm:$0xff]
    %v661 = vld [vmem:[#allocation7 + $0x640] sm:$0xff]
    %v662 = vld [vmem:[#allocation7 + $0x648] sm:$0xff]
    %v663 = vld [vmem:[#allocation7 + $0x650] sm:$0xff]
    %v664 = vld [vmem:[#allocation7 + $0x658] sm:$0xff]
    %v665 = vld [vmem:[#allocation7 + $0x660] sm:$0xff]
    %v666 = vld [vmem:[#allocation7 + $0x668] sm:$0xff]
    %v667 = vld [vmem:[#allocation7 + $0x670] sm:$0xff]
    %v668 = vld [vmem:[#allocation7 + $0x678] sm:$0xff]
    %v669 = vld [vmem:[#allocation7 + $0x680] sm:$0xff]
    %v670 = vld [vmem:[#allocation7 + $0x688] sm:$0xff]
    %v671 = vld [vmem:[#allocation7 + $0x690] sm:$0xff]
    %v672 = vld [vmem:[#allocation7 + $0x698] sm:$0xff]
    %v673 = vld [vmem:[#allocation7 + $0x6a0] sm:$0xff]
    %v674 = vld [vmem:[#allocation7 + $0x6a8] sm:$0xff]
    %v675 = vld [vmem:[#allocation7 + $0x6b0] sm:$0xff]
    %v676 = vld [vmem:[#allocation7 + $0x6b8] sm:$0xff]
    %v677 = vld [vmem:[#allocation7 + $0x6c0] sm:$0xff]
    %v678 = vld [vmem:[#allocation7 + $0x6c8] sm:$0xff]
    %v679 = vld [vmem:[#allocation7 + $0x6d0] sm:$0xff]
    %v680 = vld [vmem:[#allocation7 + $0x6d8] sm:$0xff]
    %v681 = vld [vmem:[#allocation7 + $0x6e0] sm:$0xff]
    %v682 = vld [vmem:[#allocation7 + $0x6e8] sm:$0xff]
    %v683 = vld [vmem:[#allocation7 + $0x6f0] sm:$0xff]
    %v684 = vld [vmem:[#allocation7 + $0x6f8] sm:$0xff]
    %v685 = vld [vmem:[#allocation7 + $0x700] sm:$0xff]
    %v686 = vld [vmem:[#allocation7 + $0x708] sm:$0xff]
    %v687 = vld [vmem:[#allocation7 + $0x710] sm:$0xff]
    %v688 = vld [vmem:[#allocation7 + $0x718] sm:$0xff]
    %v689 = vld [vmem:[#allocation7 + $0x720] sm:$0xff]
    %v690 = vld [vmem:[#allocation7 + $0x728] sm:$0xff]
    %v691 = vld [vmem:[#allocation7 + $0x730] sm:$0xff]
    %v692 = vld [vmem:[#allocation7 + $0x738] sm:$0xff]
    %v693 = vld [vmem:[#allocation7 + $0x740] sm:$0xff]
    %v694 = vld [vmem:[#allocation7 + $0x748] sm:$0xff]
    %v695 = vld [vmem:[#allocation7 + $0x750] sm:$0xff]
    %v696 = vld [vmem:[#allocation7 + $0x758] sm:$0xff]
    %v697 = vld [vmem:[#allocation7 + $0x760] sm:$0xff]
    %v698 = vld [vmem:[#allocation7 + $0x768] sm:$0xff]
    %v699 = vld [vmem:[#allocation7 + $0x770] sm:$0xff]
    %v700 = vld [vmem:[#allocation7 + $0x778] sm:$0xff]
    %v701 = vld [vmem:[#allocation7 + $0x780] sm:$0xff]
    %v702 = vld [vmem:[#allocation7 + $0x788] sm:$0xff]
    %v703 = vld [vmem:[#allocation7 + $0x790] sm:$0xff]
    %v704 = vld [vmem:[#allocation7 + $0x798] sm:$0xff]
    %v705 = vld [vmem:[#allocation7 + $0x7a0] sm:$0xff]
    %v706 = vld [vmem:[#allocation7 + $0x7a8] sm:$0xff]
    %v707 = vld [vmem:[#allocation7 + $0x7b0] sm:$0xff]
    %v708 = vld [vmem:[#allocation7 + $0x7b8] sm:$0xff]
    %v709 = vld [vmem:[#allocation7 + $0x7c0] sm:$0xff]
    %v710 = vld [vmem:[#allocation7 + $0x7c8] sm:$0xff]
    %v711 = vld [vmem:[#allocation7 + $0x7d0] sm:$0xff]
    %v712 = vld [vmem:[#allocation7 + $0x7d8] sm:$0xff]
    %v713 = vld [vmem:[#allocation7 + $0x7e0] sm:$0xff]
    %v714 = vld [vmem:[#allocation7 + $0x7e8] sm:$0xff]
    %v715 = vld [vmem:[#allocation7 + $0x7f0] sm:$0xff]
    %v716 = vld [vmem:[#allocation7 + $0x7f8] sm:$0xff]
    %v717 = vld [vmem:[#allocation7 + $0x800] sm:$0xff]
    %v718 = vld [vmem:[#allocation7 + $0x808] sm:$0xff]
    %v719 = vld [vmem:[#allocation7 + $0x810] sm:$0xff]
    %v720 = vld [vmem:[#allocation7 + $0x818] sm:$0xff]
    %v721 = vld [vmem:[#allocation7 + $0x820] sm:$0xff]
    %v722 = vld [vmem:[#allocation7 + $0x828] sm:$0xff]
    %v723 = vld [vmem:[#allocation7 + $0x830] sm:$0xff]
    %v724 = vld [vmem:[#allocation7 + $0x838] sm:$0xff]
    %v725 = vld [vmem:[#allocation7 + $0x840] sm:$0xff]
    %v726 = vld [vmem:[#allocation7 + $0x848] sm:$0xff]
    %v727 = vld [vmem:[#allocation7 + $0x850] sm:$0xff]
    %v728 = vld [vmem:[#allocation7 + $0x858] sm:$0xff]
    %v729 = vld [vmem:[#allocation7 + $0x860] sm:$0xff]
    %v730 = vld [vmem:[#allocation7 + $0x868] sm:$0xff]
    %v731 = vld [vmem:[#allocation7 + $0x870] sm:$0xff]
    %v732 = vld [vmem:[#allocation7 + $0x878] sm:$0xff]
    %v733 = vld [vmem:[#allocation7 + $0x880] sm:$0xff]
    %v734 = vld [vmem:[#allocation7 + $0x888] sm:$0xff]
    %v735 = vld [vmem:[#allocation7 + $0x890] sm:$0xff]
    %v736 = vld [vmem:[#allocation7 + $0x898] sm:$0xff]
    %v737 = vld [vmem:[#allocation7 + $0x8a0] sm:$0xff]
    %v738 = vld [vmem:[#allocation7 + $0x8a8] sm:$0xff]
    %v739 = vld [vmem:[#allocation7 + $0x8b0] sm:$0xff]
    %v740 = vld [vmem:[#allocation7 + $0x8b8] sm:$0xff]
    %v741 = vld [vmem:[#allocation7 + $0x8c0] sm:$0xff]
    %v742 = vld [vmem:[#allocation7 + $0x8c8] sm:$0xff]
    %v743 = vld [vmem:[#allocation7 + $0x8d0] sm:$0xff]
    %v744 = vld [vmem:[#allocation7 + $0x8d8] sm:$0xff]
    %v745 = vld [vmem:[#allocation7 + $0x8e0] sm:$0xff]
    %v746 = vld [vmem:[#allocation7 + $0x8e8] sm:$0xff]
    %v747 = vld [vmem:[#allocation7 + $0x8f0] sm:$0xff]
    %v748 = vld [vmem:[#allocation7 + $0x8f8] sm:$0xff]
    %v749 = vld [vmem:[#allocation7 + $0x900] sm:$0xff]
    %v750 = vld [vmem:[#allocation7 + $0x908] sm:$0xff]
    %v751 = vld [vmem:[#allocation7 + $0x910] sm:$0xff]
    %v752 = vld [vmem:[#allocation7 + $0x918] sm:$0xff]
    %v753 = vld [vmem:[#allocation7 + $0x920] sm:$0xff]
    %v754 = vld [vmem:[#allocation7 + $0x928] sm:$0xff]
    %v755 = vld [vmem:[#allocation7 + $0x930] sm:$0xff]
    %v756 = vld [vmem:[#allocation7 + $0x938] sm:$0xff]
    %v757 = vld [vmem:[#allocation7 + $0x940] sm:$0xff]
    %v758 = vld [vmem:[#allocation7 + $0x948] sm:$0xff]
    %v759 = vld [vmem:[#allocation7 + $0x950] sm:$0xff]
    %v760 = vld [vmem:[#allocation7 + $0x958] sm:$0xff]
    %v761 = vld [vmem:[#allocation7 + $0x960] sm:$0xff]
    %v762 = vld [vmem:[#allocation7 + $0x968] sm:$0xff]
    %v763 = vld [vmem:[#allocation7 + $0x970] sm:$0xff]
    %v764 = vld [vmem:[#allocation7 + $0x978] sm:$0xff]
    %v765 = vld [vmem:[#allocation7 + $0x980] sm:$0xff]
    %v766 = vld [vmem:[#allocation7 + $0x988] sm:$0xff]
    %v767 = vld [vmem:[#allocation7 + $0x990] sm:$0xff]
    %v768 = vld [vmem:[#allocation7 + $0x998] sm:$0xff]
    %v769 = vld [vmem:[#allocation7 + $0x9a0] sm:$0xff]
    %v770 = vld [vmem:[#allocation7 + $0x9a8] sm:$0xff]
    %v771 = vld [vmem:[#allocation7 + $0x9b0] sm:$0xff]
    %v772 = vld [vmem:[#allocation7 + $0x9b8] sm:$0xff]
    %v773 = vld [vmem:[#allocation7 + $0x9c0] sm:$0xff]
    %v774 = vld [vmem:[#allocation7 + $0x9c8] sm:$0xff]
    %v775 = vld [vmem:[#allocation7 + $0x9d0] sm:$0xff]
    %v776 = vld [vmem:[#allocation7 + $0x9d8] sm:$0xff]
    %v777 = vld [vmem:[#allocation7 + $0x9e0] sm:$0xff]
    %v778 = vld [vmem:[#allocation7 + $0x9e8] sm:$0xff]
    %v779 = vld [vmem:[#allocation7 + $0x9f0] sm:$0xff]
    %v780 = vld [vmem:[#allocation7 + $0x9f8] sm:$0xff]
    %v781 = vld [vmem:[#allocation7 + $0xa00] sm:$0xff]
    %v782 = vld [vmem:[#allocation7 + $0xa08] sm:$0xff]
    %v783 = vld [vmem:[#allocation7 + $0xa10] sm:$0xff]
    %v784 = vld [vmem:[#allocation7 + $0xa18] sm:$0xff]
    %v785 = vld [vmem:[#allocation7 + $0xa20] sm:$0xff]
    %v786 = vld [vmem:[#allocation7 + $0xa28] sm:$0xff]
    %v787 = vld [vmem:[#allocation7 + $0xa30] sm:$0xff]
    %v788 = vld [vmem:[#allocation7 + $0xa38] sm:$0xff]
    %v789 = vld [vmem:[#allocation7 + $0xa40] sm:$0xff]
    %v790 = vld [vmem:[#allocation7 + $0xa48] sm:$0xff]
    %v791 = vld [vmem:[#allocation7 + $0xa50] sm:$0xff]
    %v792 = vld [vmem:[#allocation7 + $0xa58] sm:$0xff]
    %v793 = vld [vmem:[#allocation7 + $0xa60] sm:$0xff]
    %v794 = vld [vmem:[#allocation7 + $0xa68] sm:$0xff]
    %v795 = vld [vmem:[#allocation7 + $0xa70] sm:$0xff]
    %v796 = vld [vmem:[#allocation7 + $0xa78] sm:$0xff]
    %v797 = vld [vmem:[#allocation7 + $0xa80] sm:$0xff]
    %v798 = vld [vmem:[#allocation7 + $0xa88] sm:$0xff]
    %v799 = vld [vmem:[#allocation7 + $0xa90] sm:$0xff]
    %v800 = vld [vmem:[#allocation7 + $0xa98] sm:$0xff]
    %v801 = vld [vmem:[#allocation7 + $0xaa0] sm:$0xff]
    %v802 = vld [vmem:[#allocation7 + $0xaa8] sm:$0xff]
    %v803 = vld [vmem:[#allocation7 + $0xab0] sm:$0xff]
    %v804 = vld [vmem:[#allocation7 + $0xab8] sm:$0xff]
    %v805 = vld [vmem:[#allocation7 + $0xac0] sm:$0xff]
    %v806 = vld [vmem:[#allocation7 + $0xac8] sm:$0xff]
    %v807 = vld [vmem:[#allocation7 + $0xad0] sm:$0xff]
    %v808 = vld [vmem:[#allocation7 + $0xad8] sm:$0xff]
    %v809 = vld [vmem:[#allocation7 + $0xae0] sm:$0xff]
    %v810 = vld [vmem:[#allocation7 + $0xae8] sm:$0xff]
    %v811 = vld [vmem:[#allocation7 + $0xaf0] sm:$0xff]
    %v812 = vld [vmem:[#allocation7 + $0xaf8] sm:$0xff]
    %v813 = vld [vmem:[#allocation7 + $0xb00] sm:$0xff]
    %v814 = vld [vmem:[#allocation7 + $0xb08] sm:$0xff]
    %v815 = vld [vmem:[#allocation7 + $0xb10] sm:$0xff]
    %v816 = vld [vmem:[#allocation7 + $0xb18] sm:$0xff]
    %v817 = vld [vmem:[#allocation7 + $0xb20] sm:$0xff]
    %v818 = vld [vmem:[#allocation7 + $0xb28] sm:$0xff]
    %v819 = vld [vmem:[#allocation7 + $0xb30] sm:$0xff]
    %v820 = vld [vmem:[#allocation7 + $0xb38] sm:$0xff]
    %v821 = vld [vmem:[#allocation7 + $0xb40] sm:$0xff]
    %v822 = vld [vmem:[#allocation7 + $0xb48] sm:$0xff]
    %v823 = vld [vmem:[#allocation7 + $0xb50] sm:$0xff]
    %v824 = vld [vmem:[#allocation7 + $0xb58] sm:$0xff]
    %v825 = vld [vmem:[#allocation7 + $0xb60] sm:$0xff]
    %v826 = vld [vmem:[#allocation7 + $0xb68] sm:$0xff]
    %v827 = vld [vmem:[#allocation7 + $0xb70] sm:$0xff]
    %v828 = vld [vmem:[#allocation7 + $0xb78] sm:$0xff]
    %v829 = vld [vmem:[#allocation7 + $0xb80] sm:$0xff]
    %v830 = vld [vmem:[#allocation7 + $0xb88] sm:$0xff]
    %v831 = vld [vmem:[#allocation7 + $0xb90] sm:$0xff]
    %v832 = vld [vmem:[#allocation7 + $0xb98] sm:$0xff]
    %v833 = vld [vmem:[#allocation7 + $0xba0] sm:$0xff]
    %v834 = vld [vmem:[#allocation7 + $0xba8] sm:$0xff]
    %v835 = vld [vmem:[#allocation7 + $0xbb0] sm:$0xff]
    %v836 = vld [vmem:[#allocation7 + $0xbb8] sm:$0xff]
    %v837 = vld [vmem:[#allocation7 + $0xbc0] sm:$0xff]
    %v838 = vld [vmem:[#allocation7 + $0xbc8] sm:$0xff]
    %v839 = vld [vmem:[#allocation7 + $0xbd0] sm:$0xff]
    %v840 = vld [vmem:[#allocation7 + $0xbd8] sm:$0xff]
    %v841 = vld [vmem:[#allocation7 + $0xbe0] sm:$0xff]
    %v842 = vld [vmem:[#allocation7 + $0xbe8] sm:$0xff]
    %v843 = vld [vmem:[#allocation7 + $0xbf0] sm:$0xff]
    %v844 = vld [vmem:[#allocation7 + $0xbf8] sm:$0xff]
    %v845 = vadd.f32 %v77, %v461
    %v846 = vadd.f32 %v78, %v462
    %v847 = vadd.f32 %v79, %v463
    %v848 = vadd.f32 %v80, %v464
    %v849 = vadd.f32 %v81, %v465
    %v850 = vadd.f32 %v82, %v466
    %v851 = vadd.f32 %v83, %v467
    %v852 = vadd.f32 %v84, %v468
    %v853 = vadd.f32 %v85, %v469
    %v854 = vadd.f32 %v86, %v470
    %v855 = vadd.f32 %v87, %v471
    %v856 = vadd.f32 %v88, %v472
    %v857 = vadd.f32 %v89, %v473
    %v858 = vadd.f32 %v90, %v474
    %v859 = vadd.f32 %v91, %v475
    %v860 = vadd.f32 %v92, %v476
    %v861 = vadd.f32 %v93, %v477
    %v862 = vadd.f32 %v94, %v478
    %v863 = vadd.f32 %v95, %v479
    %v864 = vadd.f32 %v96, %v480
    %v865 = vadd.f32 %v97, %v481
    %v866 = vadd.f32 %v98, %v482
    %v867 = vadd.f32 %v99, %v483
    %v868 = vadd.f32 %v100, %v484
    %v869 = vadd.f32 %v101, %v485
    %v870 = vadd.f32 %v102, %v486
    %v871 = vadd.f32 %v103, %v487
    %v872 = vadd.f32 %v104, %v488
    %v873 = vadd.f32 %v105, %v489
    %v874 = vadd.f32 %v106, %v490
    %v875 = vadd.f32 %v107, %v491
    %v876 = vadd.f32 %v108, %v492
    %v877 = vadd.f32 %v109, %v493
    %v878 = vadd.f32 %v110, %v494
    %v879 = vadd.f32 %v111, %v495
    %v880 = vadd.f32 %v112, %v496
    %v881 = vadd.f32 %v113, %v497
    %v882 = vadd.f32 %v114, %v498
    %v883 = vadd.f32 %v115, %v499
    %v884 = vadd.f32 %v116, %v500
    %v885 = vadd.f32 %v117, %v501
    %v886 = vadd.f32 %v118, %v502
    %v887 = vadd.f32 %v119, %v503
    %v888 = vadd.f32 %v120, %v504
    %v889 = vadd.f32 %v121, %v505
    %v890 = vadd.f32 %v122, %v506
    %v891 = vadd.f32 %v123, %v507
    %v892 = vadd.f32 %v124, %v508
    %v893 = vadd.f32 %v125, %v509
    %v894 = vadd.f32 %v126, %v510
    %v895 = vadd.f32 %v127, %v511
    %v896 = vadd.f32 %v128, %v512
    %v897 = vadd.f32 %v129, %v513
    %v898 = vadd.f32 %v130, %v514
    %v899 = vadd.f32 %v131, %v515
    %v900 = vadd.f32 %v132, %v516
    %v901 = vadd.f32 %v133, %v517
    %v902 = vadd.f32 %v134, %v518
    %v903 = vadd.f32 %v135, %v519
    %v904 = vadd.f32 %v136, %v520
    %v905 = vadd.f32 %v137, %v521
    %v906 = vadd.f32 %v138, %v522
    %v907 = vadd.f32 %v139, %v523
    %v908 = vadd.f32 %v140, %v524
    %v909 = vadd.f32 %v141, %v525
    %v910 = vadd.f32 %v142, %v526
    %v911 = vadd.f32 %v143, %v527
    %v912 = vadd.f32 %v144, %v528
    %v913 = vadd.f32 %v145, %v529
    %v914 = vadd.f32 %v146, %v530
    %v915 = vadd.f32 %v147, %v531
    %v916 = vadd.f32 %v148, %v532
    %v917 = vadd.f32 %v149, %v533
    %v918 = vadd.f32 %v150, %v534
    %v919 = vadd.f32 %v151, %v535
    %v920 = vadd.f32 %v152, %v536
    %v921 = vadd.f32 %v153, %v537
    %v922 = vadd.f32 %v154, %v538
    %v923 = vadd.f32 %v155, %v539
    %v924 = vadd.f32 %v156, %v540
    %v925 = vadd.f32 %v157, %v541
    %v926 = vadd.f32 %v158, %v542
    %v927 = vadd.f32 %v159, %v543
    %v928 = vadd.f32 %v160, %v544
    %v929 = vadd.f32 %v161, %v545
    %v930 = vadd.f32 %v162, %v546
    %v931 = vadd.f32 %v163, %v547
    %v932 = vadd.f32 %v164, %v548
    %v933 = vadd.f32 %v165, %v549
    %v934 = vadd.f32 %v166, %v550
    %v935 = vadd.f32 %v167, %v551
    %v936 = vadd.f32 %v168, %v552
    %v937 = vadd.f32 %v169, %v553
    %v938 = vadd.f32 %v170, %v554
    %v939 = vadd.f32 %v171, %v555
    %v940 = vadd.f32 %v172, %v556
    %v941 = vadd.f32 %v173, %v557
    %v942 = vadd.f32 %v174, %v558
    %v943 = vadd.f32 %v175, %v559
    %v944 = vadd.f32 %v176, %v560
    %v945 = vadd.f32 %v177, %v561
    %v946 = vadd.f32 %v178, %v562
    %v947 = vadd.f32 %v179, %v563
    %v948 = vadd.f32 %v180, %v564
    %v949 = vadd.f32 %v181, %v565
    %v950 = vadd.f32 %v182, %v566
    %v951 = vadd.f32 %v183, %v567
    %v952 = vadd.f32 %v184, %v568
    %v953 = vadd.f32 %v185, %v569
    %v954 = vadd.f32 %v186, %v570
    %v955 = vadd.f32 %v187, %v571
    %v956 = vadd.f32 %v188, %v572
    %v957 = vadd.f32 %v189, %v573
    %v958 = vadd.f32 %v190, %v574
    %v959 = vadd.f32 %v191, %v575
    %v960 = vadd.f32 %v192, %v576
    %v961 = vadd.f32 %v193, %v577
    %v962 = vadd.f32 %v194, %v578
    %v963 = vadd.f32 %v195, %v579
    %v964 = vadd.f32 %v196, %v580
    %v965 = vadd.f32 %v197, %v581
    %v966 = vadd.f32 %v198, %v582
    %v967 = vadd.f32 %v199, %v583
    %v968 = vadd.f32 %v200, %v584
    %v969 = vadd.f32 %v201, %v585
    %v970 = vadd.f32 %v202, %v586
    %v971 = vadd.f32 %v203, %v587
    %v972 = vadd.f32 %v204, %v588
    %v973 = vadd.f32 %v205, %v589
    %v974 = vadd.f32 %v206, %v590
    %v975 = vadd.f32 %v207, %v591
    %v976 = vadd.f32 %v208, %v592
    %v977 = vadd.f32 %v209, %v593
    %v978 = vadd.f32 %v210, %v594
    %v979 = vadd.f32 %v211, %v595
    %v980 = vadd.f32 %v212, %v596
    %v981 = vadd.f32 %v213, %v597
    %v982 = vadd.f32 %v214, %v598
    %v983 = vadd.f32 %v215, %v599
    %v984 = vadd.f32 %v216, %v600
    %v985 = vadd.f32 %v217, %v601
    %v986 = vadd.f32 %v218, %v602
    %v987 = vadd.f32 %v219, %v603
    %v988 = vadd.f32 %v220, %v604
    %v989 = vadd.f32 %v221, %v605
    %v990 = vadd.f32 %v222, %v606
    %v991 = vadd.f32 %v223, %v607
    %v992 = vadd.f32 %v224, %v608
    %v993 = vadd.f32 %v225, %v609
    %v994 = vadd.f32 %v226, %v610
    %v995 = vadd.f32 %v227, %v611
    %v996 = vadd.f32 %v228, %v612
    %v997 = vadd.f32 %v229, %v613
    %v998 = vadd.f32 %v230, %v614
    %v999 = vadd.f32 %v231, %v615
    %v1000 = vadd.f32 %v232, %v616
    %v1001 = vadd.f32 %v233, %v617
    %v1002 = vadd.f32 %v234, %v618
    %v1003 = vadd.f32 %v235, %v619
    %v1004 = vadd.f32 %v236, %v620
    %v1005 = vadd.f32 %v237, %v621
    %v1006 = vadd.f32 %v238, %v622
    %v1007 = vadd.f32 %v239, %v623
    %v1008 = vadd.f32 %v240, %v624
    %v1009 = vadd.f32 %v241, %v625
    %v1010 = vadd.f32 %v242, %v626
    %v1011 = vadd.f32 %v243, %v627
    %v1012 = vadd.f32 %v244, %v628
    %v1013 = vadd.f32 %v245, %v629
    %v1014 = vadd.f32 %v246, %v630
    %v1015 = vadd.f32 %v247, %v631
    %v1016 = vadd.f32 %v248, %v632
    %v1017 = vadd.f32 %v249, %v633
    %v1018 = vadd.f32 %v250, %v634
    %v1019 = vadd.f32 %v251, %v635
    %v1020 = vadd.f32 %v252, %v636
    %v1021 = vadd.f32 %v253, %v637
    %v1022 = vadd.f32 %v254, %v638
    %v1023 = vadd.f32 %v255, %v639
    %v1024 = vadd.f32 %v256, %v640
    %v1025 = vadd.f32 %v257, %v641
    %v1026 = vadd.f32 %v258, %v642
    %v1027 = vadd.f32 %v259, %v643
    %v1028 = vadd.f32 %v260, %v644
    %v1029 = vadd.f32 %v261, %v645
    %v1030 = vadd.f32 %v262, %v646
    %v1031 = vadd.f32 %v263, %v647
    %v1032 = vadd.f32 %v264, %v648
    %v1033 = vadd.f32 %v265, %v649
    %v1034 = vadd.f32 %v266, %v650
    %v1035 = vadd.f32 %v267, %v651
    %v1036 = vadd.f32 %v268, %v652
    %v1037 = vadd.f32 %v269, %v653
    %v1038 = vadd.f32 %v270, %v654
    %v1039 = vadd.f32 %v271, %v655
    %v1040 = vadd.f32 %v272, %v656
    %v1041 = vadd.f32 %v273, %v657
    %v1042 = vadd.f32 %v274, %v658
    %v1043 = vadd.f32 %v275, %v659
    %v1044 = vadd.f32 %v276, %v660
    %v1045 = vadd.f32 %v277, %v661
    %v1046 = vadd.f32 %v278, %v662
    %v1047 = vadd.f32 %v279, %v663
    %v1048 = vadd.f32 %v280, %v664
    %v1049 = vadd.f32 %v281, %v665
    %v1050 = vadd.f32 %v282, %v666
    %v1051 = vadd.f32 %v283, %v667
    %v1052 = vadd.f32 %v284, %v668
    %v1053 = vadd.f32 %v285, %v669
    %v1054 = vadd.f32 %v286, %v670
    %v1055 = vadd.f32 %v287, %v671
    %v1056 = vadd.f32 %v288, %v672
    %v1057 = vadd.f32 %v289, %v673
    %v1058 = vadd.f32 %v290, %v674
    %v1059 = vadd.f32 %v291, %v675
    %v1060 = vadd.f32 %v292, %v676
    %v1061 = vadd.f32 %v293, %v677
    %v1062 = vadd.f32 %v294, %v678
    %v1063 = vadd.f32 %v295, %v679
    %v1064 = vadd.f32 %v296, %v680
    %v1065 = vadd.f32 %v297, %v681
    %v1066 = vadd.f32 %v298, %v682
    %v1067 = vadd.f32 %v299, %v683
    %v1068 = vadd.f32 %v300, %v684
    %v1069 = vadd.f32 %v301, %v685
    %v1070 = vadd.f32 %v302, %v686
    %v1071 = vadd.f32 %v303, %v687
    %v1072 = vadd.f32 %v304, %v688
    %v1073 = vadd.f32 %v305, %v689
    %v1074 = vadd.f32 %v306, %v690
    %v1075 = vadd.f32 %v307, %v691
    %v1076 = vadd.f32 %v308, %v692
    %v1077 = vadd.f32 %v309, %v693
    %v1078 = vadd.f32 %v310, %v694
    %v1079 = vadd.f32 %v311, %v695
    %v1080 = vadd.f32 %v312, %v696
    %v1081 = vadd.f32 %v313, %v697
    %v1082 = vadd.f32 %v314, %v698
    %v1083 = vadd.f32 %v315, %v699
    %v1084 = vadd.f32 %v316, %v700
    %v1085 = vadd.f32 %v317, %v701
    %v1086 = vadd.f32 %v318, %v702
    %v1087 = vadd.f32 %v319, %v703
    %v1088 = vadd.f32 %v320, %v704
    %v1089 = vadd.f32 %v321, %v705
    %v1090 = vadd.f32 %v322, %v706
    %v1091 = vadd.f32 %v323, %v707
    %v1092 = vadd.f32 %v324, %v708
    %v1093 = vadd.f32 %v325, %v709
    %v1094 = vadd.f32 %v326, %v710
    %v1095 = vadd.f32 %v327, %v711
    %v1096 = vadd.f32 %v328, %v712
    %v1097 = vadd.f32 %v329, %v713
    %v1098 = vadd.f32 %v330, %v714
    %v1099 = vadd.f32 %v331, %v715
    %v1100 = vadd.f32 %v332, %v716
    %v1101 = vadd.f32 %v333, %v717
    %v1102 = vadd.f32 %v334, %v718
    %v1103 = vadd.f32 %v335, %v719
    %v1104 = vadd.f32 %v336, %v720
    %v1105 = vadd.f32 %v337, %v721
    %v1106 = vadd.f32 %v338, %v722
    %v1107 = vadd.f32 %v339, %v723
    %v1108 = vadd.f32 %v340, %v724
    %v1109 = vadd.f32 %v341, %v725
    %v1110 = vadd.f32 %v342, %v726
    %v1111 = vadd.f32 %v343, %v727
    %v1112 = vadd.f32 %v344, %v728
    %v1113 = vadd.f32 %v345, %v729
    %v1114 = vadd.f32 %v346, %v730
    %v1115 = vadd.f32 %v347, %v731
    %v1116 = vadd.f32 %v348, %v732
    %v1117 = vadd.f32 %v349, %v733
    %v1118 = vadd.f32 %v350, %v734
    %v1119 = vadd.f32 %v351, %v735
    %v1120 = vadd.f32 %v352, %v736
    %v1121 = vadd.f32 %v353, %v737
    %v1122 = vadd.f32 %v354, %v738
    %v1123 = vadd.f32 %v355, %v739
    %v1124 = vadd.f32 %v356, %v740
    %v1125 = vadd.f32 %v357, %v741
    %v1126 = vadd.f32 %v358, %v742
    %v1127 = vadd.f32 %v359, %v743
    %v1128 = vadd.f32 %v360, %v744
    %v1129 = vadd.f32 %v361, %v745
    %v1130 = vadd.f32 %v362, %v746
    %v1131 = vadd.f32 %v363, %v747
    %v1132 = vadd.f32 %v364, %v748
    %v1133 = vadd.f32 %v365, %v749
    %v1134 = vadd.f32 %v366, %v750
    %v1135 = vadd.f32 %v367, %v751
    %v1136 = vadd.f32 %v368, %v752
    %v1137 = vadd.f32 %v369, %v753
    %v1138 = vadd.f32 %v370, %v754
    %v1139 = vadd.f32 %v371, %v755
    %v1140 = vadd.f32 %v372, %v756
    %v1141 = vadd.f32 %v373, %v757
    %v1142 = vadd.f32 %v374, %v758
    %v1143 = vadd.f32 %v375, %v759
    %v1144 = vadd.f32 %v376, %v760
    %v1145 = vadd.f32 %v377, %v761
    %v1146 = vadd.f32 %v378, %v762
    %v1147 = vadd.f32 %v379, %v763
    %v1148 = vadd.f32 %v380, %v764
    %v1149 = vadd.f32 %v381, %v765
    %v1150 = vadd.f32 %v382, %v766
    %v1151 = vadd.f32 %v383, %v767
    %v1152 = vadd.f32 %v384, %v768
    %v1153 = vadd.f32 %v385, %v769
    %v1154 = vadd.f32 %v386, %v770
    %v1155 = vadd.f32 %v387, %v771
    %v1156 = vadd.f32 %v388, %v772
    %v1157 = vadd.f32 %v389, %v773
    %v1158 = vadd.f32 %v390, %v774
    %v1159 = vadd.f32 %v391, %v775
    %v1160 = vadd.f32 %v392, %v776
    %v1161 = vadd.f32 %v393, %v777
    %v1162 = vadd.f32 %v394, %v778
    %v1163 = vadd.f32 %v395, %v779
    %v1164 = vadd.f32 %v396, %v780
    %v1165 = vadd.f32 %v397, %v781
    %v1166 = vadd.f32 %v398, %v782
    %v1167 = vadd.f32 %v399, %v783
    %v1168 = vadd.f32 %v400, %v784
    %v1169 = vadd.f32 %v401, %v785
    %v1170 = vadd.f32 %v402, %v786
    %v1171 = vadd.f32 %v403, %v787
    %v1172 = vadd.f32 %v404, %v788
    %v1173 = vadd.f32 %v405, %v789
    %v1174 = vadd.f32 %v406, %v790
    %v1175 = vadd.f32 %v407, %v791
    %v1176 = vadd.f32 %v408, %v792
    %v1177 = vadd.f32 %v409, %v793
    %v1178 = vadd.f32 %v410, %v794
    %v1179 = vadd.f32 %v411, %v795
    %v1180 = vadd.f32 %v412, %v796
    %v1181 = vadd.f32 %v413, %v797
    %v1182 = vadd.f32 %v414, %v798
    %v1183 = vadd.f32 %v415, %v799
    %v1184 = vadd.f32 %v416, %v800
    %v1185 = vadd.f32 %v417, %v801
    %v1186 = vadd.f32 %v418, %v802
    %v1187 = vadd.f32 %v419, %v803
    %v1188 = vadd.f32 %v420, %v804
    %v1189 = vadd.f32 %v421, %v805
    %v1190 = vadd.f32 %v422, %v806
    %v1191 = vadd.f32 %v423, %v807
    %v1192 = vadd.f32 %v424, %v808
    %v1193 = vadd.f32 %v425, %v809
    %v1194 = vadd.f32 %v426, %v810
    %v1195 = vadd.f32 %v427, %v811
    %v1196 = vadd.f32 %v428, %v812
    %v1197 = vadd.f32 %v429, %v813
    %v1198 = vadd.f32 %v430, %v814
    %v1199 = vadd.f32 %v431, %v815
    %v1200 = vadd.f32 %v432, %v816
    %v1201 = vadd.f32 %v433, %v817
    %v1202 = vadd.f32 %v434, %v818
    %v1203 = vadd.f32 %v435, %v819
    %v1204 = vadd.f32 %v436, %v820
    %v1205 = vadd.f32 %v437, %v821
    %v1206 = vadd.f32 %v438, %v822
    %v1207 = vadd.f32 %v439, %v823
    %v1208 = vadd.f32 %v440, %v824
    %v1209 = vadd.f32 %v441, %v825
    %v1210 = vadd.f32 %v442, %v826
    %v1211 = vadd.f32 %v443, %v827
    %v1212 = vadd.f32 %v444, %v828
    %v1213 = vadd.f32 %v445, %v829
    %v1214 = vadd.f32 %v446, %v830
    %v1215 = vadd.f32 %v447, %v831
    %v1216 = vadd.f32 %v448, %v832
    %v1217 = vadd.f32 %v449, %v833
    %v1218 = vadd.f32 %v450, %v834
    %v1219 = vadd.f32 %v451, %v835
    %v1220 = vadd.f32 %v452, %v836
    %v1221 = vadd.f32 %v453, %v837
    %v1222 = vadd.f32 %v454, %v838
    %v1223 = vadd.f32 %v455, %v839
    %v1224 = vadd.f32 %v456, %v840
    %v1225 = vadd.f32 %v457, %v841
    %v1226 = vadd.f32 %v458, %v842
    %v1227 = vadd.f32 %v459, %v843
    %v1228 = vadd.f32 %v460, %v844
    %v1229 = vld [vmem:[%s3] sm:$0xff]
    %v1230 = vld [vmem:[%s3 + $0x8] sm:$0xff]
    %v1231 = vld [vmem:[%s3 + $0x10] sm:$0xff]
    %v1232 = vld [vmem:[%s3 + $0x18] sm:$0xff]
    %v1233 = vld [vmem:[%s3 + $0x20] sm:$0xff]
    %v1234 = vld [vmem:[%s3 + $0x28] sm:$0xff]
    %v1235 = vld [vmem:[%s3 + $0x30] sm:$0xff]
    %v1236 = vld [vmem:[%s3 + $0x38] sm:$0xff]
    %v1237 = vld [vmem:[%s3 + $0x40] sm:$0xff]
    %v1238 = vld [vmem:[%s3 + $0x48] sm:$0xff]
    %v1239 = vld [vmem:[%s3 + $0x50] sm:$0xff]
    %v1240 = vld [vmem:[%s3 + $0x58] sm:$0xff]
    %v1241 = vld [vmem:[%s3 + $0x60] sm:$0xff]
    %v1242 = vld [vmem:[%s3 + $0x68] sm:$0xff]
    %v1243 = vld [vmem:[%s3 + $0x70] sm:$0xff]
    %v1244 = vld [vmem:[%s3 + $0x78] sm:$0xff]
    %v1245 = vlaneseq
    %v1246 = vshrl.u32 %v1245, 7
    %v1247 = vsub.s32 0, %v1246
    %v1248 = vrot.slane %v1229, %v1247
    %1250 = vbcast.lane.b32.xlu0 %v1248, 256
    %v1251 = vpop.permute.xlu0 %1250
    %s1253 = sor.u32 256, 8
    %1254 = vbcast.lane.b32.xlu0 %v1248, %s1253
    %v1255 = vpop.permute.xlu0 %1254
    %s1257 = sor.u32 256, 16
    %1258 = vbcast.lane.b32.xlu0 %v1248, %s1257
    %v1259 = vpop.permute.xlu0 %1258
    %v1260 = vlaneseq
    %v1261 = vshrl.u32 %v1260, 7
    %v1262 = vsub.s32 1, %v1261
    %v1263 = vrot.slane %v1229, %v1262
    %1265 = vbcast.lane.b32.xlu0 %v1263, 256
    %v1266 = vpop.permute.xlu0 %1265
    %s1268 = sor.u32 256, 8
    %1269 = vbcast.lane.b32.xlu0 %v1263, %s1268
    %v1270 = vpop.permute.xlu0 %1269
    %s1272 = sor.u32 256, 16
    %1273 = vbcast.lane.b32.xlu0 %v1263, %s1272
    %v1274 = vpop.permute.xlu0 %1273
    %v1275 = vlaneseq
    %v1276 = vshrl.u32 %v1275, 7
    %v1277 = vsub.s32 2, %v1276
    %v1278 = vrot.slane %v1229, %v1277
    %1280 = vbcast.lane.b32.xlu0 %v1278, 256
    %v1281 = vpop.permute.xlu0 %1280
    %s1283 = sor.u32 256, 8
    %1284 = vbcast.lane.b32.xlu0 %v1278, %s1283
    %v1285 = vpop.permute.xlu0 %1284
    %s1287 = sor.u32 256, 16
    %1288 = vbcast.lane.b32.xlu0 %v1278, %s1287
    %v1289 = vpop.permute.xlu0 %1288
    %v1290 = vlaneseq
    %v1291 = vshrl.u32 %v1290, 7
    %v1292 = vsub.s32 3, %v1291
    %v1293 = vrot.slane %v1229, %v1292
    %1295 = vbcast.lane.b32.xlu0 %v1293, 256
    %v1296 = vpop.permute.xlu0 %1295
    %s1298 = sor.u32 256, 8
    %1299 = vbcast.lane.b32.xlu0 %v1293, %s1298
    %v1300 = vpop.permute.xlu0 %1299
    %s1302 = sor.u32 256, 16
    %1303 = vbcast.lane.b32.xlu0 %v1293, %s1302
    %v1304 = vpop.permute.xlu0 %1303
    %v1305 = vlaneseq
    %v1306 = vshrl.u32 %v1305, 7
    %v1307 = vsub.s32 4, %v1306
    %v1308 = vrot.slane %v1229, %v1307
    %1310 = vbcast.lane.b32.xlu0 %v1308, 256
    %v1311 = vpop.permute.xlu0 %1310
    %s1313 = sor.u32 256, 8
    %1314 = vbcast.lane.b32.xlu0 %v1308, %s1313
    %v1315 = vpop.permute.xlu0 %1314
    %s1317 = sor.u32 256, 16
    %1318 = vbcast.lane.b32.xlu0 %v1308, %s1317
    %v1319 = vpop.permute.xlu0 %1318
    %v1320 = vlaneseq
    %v1321 = vshrl.u32 %v1320, 7
    %v1322 = vsub.s32 5, %v1321
    %v1323 = vrot.slane %v1229, %v1322
    %1325 = vbcast.lane.b32.xlu0 %v1323, 256
    %v1326 = vpop.permute.xlu0 %1325
    %s1328 = sor.u32 256, 8
    %1329 = vbcast.lane.b32.xlu0 %v1323, %s1328
    %v1330 = vpop.permute.xlu0 %1329
    %s1332 = sor.u32 256, 16
    %1333 = vbcast.lane.b32.xlu0 %v1323, %s1332
    %v1334 = vpop.permute.xlu0 %1333
    %v1335 = vlaneseq
    %v1336 = vshrl.u32 %v1335, 7
    %v1337 = vsub.s32 6, %v1336
    %v1338 = vrot.slane %v1229, %v1337
    %1340 = vbcast.lane.b32.xlu0 %v1338, 256
    %v1341 = vpop.permute.xlu0 %1340
    %s1343 = sor.u32 256, 8
    %1344 = vbcast.lane.b32.xlu0 %v1338, %s1343
    %v1345 = vpop.permute.xlu0 %1344
    %s1347 = sor.u32 256, 16
    %1348 = vbcast.lane.b32.xlu0 %v1338, %s1347
    %v1349 = vpop.permute.xlu0 %1348
    %v1350 = vlaneseq
    %v1351 = vshrl.u32 %v1350, 7
    %v1352 = vsub.s32 7, %v1351
    %v1353 = vrot.slane %v1229, %v1352
    %1355 = vbcast.lane.b32.xlu0 %v1353, 256
    %v1356 = vpop.permute.xlu0 %1355
    %s1358 = sor.u32 256, 8
    %1359 = vbcast.lane.b32.xlu0 %v1353, %s1358
    %v1360 = vpop.permute.xlu0 %1359
    %s1362 = sor.u32 256, 16
    %1363 = vbcast.lane.b32.xlu0 %v1353, %s1362
    %v1364 = vpop.permute.xlu0 %1363
    %v1365 = vlaneseq
    %v1366 = vshrl.u32 %v1365, 7
    %v1367 = vsub.s32 0, %v1366
    %v1368 = vrot.slane %v1230, %v1367
    %1370 = vbcast.lane.b32.xlu0 %v1368, 256
    %v1371 = vpop.permute.xlu0 %1370
    %s1373 = sor.u32 256, 8
    %1374 = vbcast.lane.b32.xlu0 %v1368, %s1373
    %v1375 = vpop.permute.xlu0 %1374
    %s1377 = sor.u32 256, 16
    %1378 = vbcast.lane.b32.xlu0 %v1368, %s1377
    %v1379 = vpop.permute.xlu0 %1378
    %v1380 = vlaneseq
    %v1381 = vshrl.u32 %v1380, 7
    %v1382 = vsub.s32 1, %v1381
    %v1383 = vrot.slane %v1230, %v1382
    %1385 = vbcast.lane.b32.xlu0 %v1383, 256
    %v1386 = vpop.permute.xlu0 %1385
    %s1388 = sor.u32 256, 8
    %1389 = vbcast.lane.b32.xlu0 %v1383, %s1388
    %v1390 = vpop.permute.xlu0 %1389
    %s1392 = sor.u32 256, 16
    %1393 = vbcast.lane.b32.xlu0 %v1383, %s1392
    %v1394 = vpop.permute.xlu0 %1393
    %v1395 = vlaneseq
    %v1396 = vshrl.u32 %v1395, 7
    %v1397 = vsub.s32 2, %v1396
    %v1398 = vrot.slane %v1230, %v1397
    %1400 = vbcast.lane.b32.xlu0 %v1398, 256
    %v1401 = vpop.permute.xlu0 %1400
    %s1403 = sor.u32 256, 8
    %1404 = vbcast.lane.b32.xlu0 %v1398, %s1403
    %v1405 = vpop.permute.xlu0 %1404
    %s1407 = sor.u32 256, 16
    %1408 = vbcast.lane.b32.xlu0 %v1398, %s1407
    %v1409 = vpop.permute.xlu0 %1408
    %v1410 = vlaneseq
    %v1411 = vshrl.u32 %v1410, 7
    %v1412 = vsub.s32 3, %v1411
    %v1413 = vrot.slane %v1230, %v1412
    %1415 = vbcast.lane.b32.xlu0 %v1413, 256
    %v1416 = vpop.permute.xlu0 %1415
    %s1418 = sor.u32 256, 8
    %1419 = vbcast.lane.b32.xlu0 %v1413, %s1418
    %v1420 = vpop.permute.xlu0 %1419
    %s1422 = sor.u32 256, 16
    %1423 = vbcast.lane.b32.xlu0 %v1413, %s1422
    %v1424 = vpop.permute.xlu0 %1423
    %v1425 = vlaneseq
    %v1426 = vshrl.u32 %v1425, 7
    %v1427 = vsub.s32 4, %v1426
    %v1428 = vrot.slane %v1230, %v1427
    %1430 = vbcast.lane.b32.xlu0 %v1428, 256
    %v1431 = vpop.permute.xlu0 %1430
    %s1433 = sor.u32 256, 8
    %1434 = vbcast.lane.b32.xlu0 %v1428, %s1433
    %v1435 = vpop.permute.xlu0 %1434
    %s1437 = sor.u32 256, 16
    %1438 = vbcast.lane.b32.xlu0 %v1428, %s1437
    %v1439 = vpop.permute.xlu0 %1438
    %v1440 = vlaneseq
    %v1441 = vshrl.u32 %v1440, 7
    %v1442 = vsub.s32 5, %v1441
    %v1443 = vrot.slane %v1230, %v1442
    %1445 = vbcast.lane.b32.xlu0 %v1443, 256
    %v1446 = vpop.permute.xlu0 %1445
    %s1448 = sor.u32 256, 8
    %1449 = vbcast.lane.b32.xlu0 %v1443, %s1448
    %v1450 = vpop.permute.xlu0 %1449
    %s1452 = sor.u32 256, 16
    %1453 = vbcast.lane.b32.xlu0 %v1443, %s1452
    %v1454 = vpop.permute.xlu0 %1453
    %v1455 = vlaneseq
    %v1456 = vshrl.u32 %v1455, 7
    %v1457 = vsub.s32 6, %v1456
    %v1458 = vrot.slane %v1230, %v1457
    %1460 = vbcast.lane.b32.xlu0 %v1458, 256
    %v1461 = vpop.permute.xlu0 %1460
    %s1463 = sor.u32 256, 8
    %1464 = vbcast.lane.b32.xlu0 %v1458, %s1463
    %v1465 = vpop.permute.xlu0 %1464
    %s1467 = sor.u32 256, 16
    %1468 = vbcast.lane.b32.xlu0 %v1458, %s1467
    %v1469 = vpop.permute.xlu0 %1468
    %v1470 = vlaneseq
    %v1471 = vshrl.u32 %v1470, 7
    %v1472 = vsub.s32 7, %v1471
    %v1473 = vrot.slane %v1230, %v1472
    %1475 = vbcast.lane.b32.xlu0 %v1473, 256
    %v1476 = vpop.permute.xlu0 %1475
    %s1478 = sor.u32 256, 8
    %1479 = vbcast.lane.b32.xlu0 %v1473, %s1478
    %v1480 = vpop.permute.xlu0 %1479
    %s1482 = sor.u32 256, 16
    %1483 = vbcast.lane.b32.xlu0 %v1473, %s1482
    %v1484 = vpop.permute.xlu0 %1483
    %v1485 = vlaneseq
    %v1486 = vshrl.u32 %v1485, 7
    %v1487 = vsub.s32 0, %v1486
    %v1488 = vrot.slane %v1231, %v1487
    %1490 = vbcast.lane.b32.xlu0 %v1488, 256
    %v1491 = vpop.permute.xlu0 %1490
    %s1493 = sor.u32 256, 8
    %1494 = vbcast.lane.b32.xlu0 %v1488, %s1493
    %v1495 = vpop.permute.xlu0 %1494
    %s1497 = sor.u32 256, 16
    %1498 = vbcast.lane.b32.xlu0 %v1488, %s1497
    %v1499 = vpop.permute.xlu0 %1498
    %v1500 = vlaneseq
    %v1501 = vshrl.u32 %v1500, 7
    %v1502 = vsub.s32 1, %v1501
    %v1503 = vrot.slane %v1231, %v1502
    %1505 = vbcast.lane.b32.xlu0 %v1503, 256
    %v1506 = vpop.permute.xlu0 %1505
    %s1508 = sor.u32 256, 8
    %1509 = vbcast.lane.b32.xlu0 %v1503, %s1508
    %v1510 = vpop.permute.xlu0 %1509
    %s1512 = sor.u32 256, 16
    %1513 = vbcast.lane.b32.xlu0 %v1503, %s1512
    %v1514 = vpop.permute.xlu0 %1513
    %v1515 = vlaneseq
    %v1516 = vshrl.u32 %v1515, 7
    %v1517 = vsub.s32 2, %v1516
    %v1518 = vrot.slane %v1231, %v1517
    %1520 = vbcast.lane.b32.xlu0 %v1518, 256
    %v1521 = vpop.permute.xlu0 %1520
    %s1523 = sor.u32 256, 8
    %1524 = vbcast.lane.b32.xlu0 %v1518, %s1523
    %v1525 = vpop.permute.xlu0 %1524
    %s1527 = sor.u32 256, 16
    %1528 = vbcast.lane.b32.xlu0 %v1518, %s1527
    %v1529 = vpop.permute.xlu0 %1528
    %v1530 = vlaneseq
    %v1531 = vshrl.u32 %v1530, 7
    %v1532 = vsub.s32 3, %v1531
    %v1533 = vrot.slane %v1231, %v1532
    %1535 = vbcast.lane.b32.xlu0 %v1533, 256
    %v1536 = vpop.permute.xlu0 %1535
    %s1538 = sor.u32 256, 8
    %1539 = vbcast.lane.b32.xlu0 %v1533, %s1538
    %v1540 = vpop.permute.xlu0 %1539
    %s1542 = sor.u32 256, 16
    %1543 = vbcast.lane.b32.xlu0 %v1533, %s1542
    %v1544 = vpop.permute.xlu0 %1543
    %v1545 = vlaneseq
    %v1546 = vshrl.u32 %v1545, 7
    %v1547 = vsub.s32 4, %v1546
    %v1548 = vrot.slane %v1231, %v1547
    %1550 = vbcast.lane.b32.xlu0 %v1548, 256
    %v1551 = vpop.permute.xlu0 %1550
    %s1553 = sor.u32 256, 8
    %1554 = vbcast.lane.b32.xlu0 %v1548, %s1553
    %v1555 = vpop.permute.xlu0 %1554
    %s1557 = sor.u32 256, 16
    %1558 = vbcast.lane.b32.xlu0 %v1548, %s1557
    %v1559 = vpop.permute.xlu0 %1558
    %v1560 = vlaneseq
    %v1561 = vshrl.u32 %v1560, 7
    %v1562 = vsub.s32 5, %v1561
    %v1563 = vrot.slane %v1231, %v1562
    %1565 = vbcast.lane.b32.xlu0 %v1563, 256
    %v1566 = vpop.permute.xlu0 %1565
    %s1568 = sor.u32 256, 8
    %1569 = vbcast.lane.b32.xlu0 %v1563, %s1568
    %v1570 = vpop.permute.xlu0 %1569
    %s1572 = sor.u32 256, 16
    %1573 = vbcast.lane.b32.xlu0 %v1563, %s1572
    %v1574 = vpop.permute.xlu0 %1573
    %v1575 = vlaneseq
    %v1576 = vshrl.u32 %v1575, 7
    %v1577 = vsub.s32 6, %v1576
    %v1578 = vrot.slane %v1231, %v1577
    %1580 = vbcast.lane.b32.xlu0 %v1578, 256
    %v1581 = vpop.permute.xlu0 %1580
    %s1583 = sor.u32 256, 8
    %1584 = vbcast.lane.b32.xlu0 %v1578, %s1583
    %v1585 = vpop.permute.xlu0 %1584
    %s1587 = sor.u32 256, 16
    %1588 = vbcast.lane.b32.xlu0 %v1578, %s1587
    %v1589 = vpop.permute.xlu0 %1588
    %v1590 = vlaneseq
    %v1591 = vshrl.u32 %v1590, 7
    %v1592 = vsub.s32 7, %v1591
    %v1593 = vrot.slane %v1231, %v1592
    %1595 = vbcast.lane.b32.xlu0 %v1593, 256
    %v1596 = vpop.permute.xlu0 %1595
    %s1598 = sor.u32 256, 8
    %1599 = vbcast.lane.b32.xlu0 %v1593, %s1598
    %v1600 = vpop.permute.xlu0 %1599
    %s1602 = sor.u32 256, 16
    %1603 = vbcast.lane.b32.xlu0 %v1593, %s1602
    %v1604 = vpop.permute.xlu0 %1603
    %v1605 = vlaneseq
    %v1606 = vshrl.u32 %v1605, 7
    %v1607 = vsub.s32 0, %v1606
    %v1608 = vrot.slane %v1232, %v1607
    %1610 = vbcast.lane.b32.xlu0 %v1608, 256
    %v1611 = vpop.permute.xlu0 %1610
    %s1613 = sor.u32 256, 8
    %1614 = vbcast.lane.b32.xlu0 %v1608, %s1613
    %v1615 = vpop.permute.xlu0 %1614
    %s1617 = sor.u32 256, 16
    %1618 = vbcast.lane.b32.xlu0 %v1608, %s1617
    %v1619 = vpop.permute.xlu0 %1618
    %v1620 = vlaneseq
    %v1621 = vshrl.u32 %v1620, 7
    %v1622 = vsub.s32 1, %v1621
    %v1623 = vrot.slane %v1232, %v1622
    %1625 = vbcast.lane.b32.xlu0 %v1623, 256
    %v1626 = vpop.permute.xlu0 %1625
    %s1628 = sor.u32 256, 8
    %1629 = vbcast.lane.b32.xlu0 %v1623, %s1628
    %v1630 = vpop.permute.xlu0 %1629
    %s1632 = sor.u32 256, 16
    %1633 = vbcast.lane.b32.xlu0 %v1623, %s1632
    %v1634 = vpop.permute.xlu0 %1633
    %v1635 = vlaneseq
    %v1636 = vshrl.u32 %v1635, 7
    %v1637 = vsub.s32 2, %v1636
    %v1638 = vrot.slane %v1232, %v1637
    %1640 = vbcast.lane.b32.xlu0 %v1638, 256
    %v1641 = vpop.permute.xlu0 %1640
    %s1643 = sor.u32 256, 8
    %1644 = vbcast.lane.b32.xlu0 %v1638, %s1643
    %v1645 = vpop.permute.xlu0 %1644
    %s1647 = sor.u32 256, 16
    %1648 = vbcast.lane.b32.xlu0 %v1638, %s1647
    %v1649 = vpop.permute.xlu0 %1648
    %v1650 = vlaneseq
    %v1651 = vshrl.u32 %v1650, 7
    %v1652 = vsub.s32 3, %v1651
    %v1653 = vrot.slane %v1232, %v1652
    %1655 = vbcast.lane.b32.xlu0 %v1653, 256
    %v1656 = vpop.permute.xlu0 %1655
    %s1658 = sor.u32 256, 8
    %1659 = vbcast.lane.b32.xlu0 %v1653, %s1658
    %v1660 = vpop.permute.xlu0 %1659
    %s1662 = sor.u32 256, 16
    %1663 = vbcast.lane.b32.xlu0 %v1653, %s1662
    %v1664 = vpop.permute.xlu0 %1663
    %v1665 = vlaneseq
    %v1666 = vshrl.u32 %v1665, 7
    %v1667 = vsub.s32 4, %v1666
    %v1668 = vrot.slane %v1232, %v1667
    %1670 = vbcast.lane.b32.xlu0 %v1668, 256
    %v1671 = vpop.permute.xlu0 %1670
    %s1673 = sor.u32 256, 8
    %1674 = vbcast.lane.b32.xlu0 %v1668, %s1673
    %v1675 = vpop.permute.xlu0 %1674
    %s1677 = sor.u32 256, 16
    %1678 = vbcast.lane.b32.xlu0 %v1668, %s1677
    %v1679 = vpop.permute.xlu0 %1678
    %v1680 = vlaneseq
    %v1681 = vshrl.u32 %v1680, 7
    %v1682 = vsub.s32 5, %v1681
    %v1683 = vrot.slane %v1232, %v1682
    %1685 = vbcast.lane.b32.xlu0 %v1683, 256
    %v1686 = vpop.permute.xlu0 %1685
    %s1688 = sor.u32 256, 8
    %1689 = vbcast.lane.b32.xlu0 %v1683, %s1688
    %v1690 = vpop.permute.xlu0 %1689
    %s1692 = sor.u32 256, 16
    %1693 = vbcast.lane.b32.xlu0 %v1683, %s1692
    %v1694 = vpop.permute.xlu0 %1693
    %v1695 = vlaneseq
    %v1696 = vshrl.u32 %v1695, 7
    %v1697 = vsub.s32 6, %v1696
    %v1698 = vrot.slane %v1232, %v1697
    %1700 = vbcast.lane.b32.xlu0 %v1698, 256
    %v1701 = vpop.permute.xlu0 %1700
    %s1703 = sor.u32 256, 8
    %1704 = vbcast.lane.b32.xlu0 %v1698, %s1703
    %v1705 = vpop.permute.xlu0 %1704
    %s1707 = sor.u32 256, 16
    %1708 = vbcast.lane.b32.xlu0 %v1698, %s1707
    %v1709 = vpop.permute.xlu0 %1708
    %v1710 = vlaneseq
    %v1711 = vshrl.u32 %v1710, 7
    %v1712 = vsub.s32 7, %v1711
    %v1713 = vrot.slane %v1232, %v1712
    %1715 = vbcast.lane.b32.xlu0 %v1713, 256
    %v1716 = vpop.permute.xlu0 %1715
    %s1718 = sor.u32 256, 8
    %1719 = vbcast.lane.b32.xlu0 %v1713, %s1718
    %v1720 = vpop.permute.xlu0 %1719
    %s1722 = sor.u32 256, 16
    %1723 = vbcast.lane.b32.xlu0 %v1713, %s1722
    %v1724 = vpop.permute.xlu0 %1723
    %v1725 = vlaneseq
    %v1726 = vshrl.u32 %v1725, 7
    %v1727 = vsub.s32 0, %v1726
    %v1728 = vrot.slane %v1233, %v1727
    %1730 = vbcast.lane.b32.xlu0 %v1728, 256
    %v1731 = vpop.permute.xlu0 %1730
    %s1733 = sor.u32 256, 8
    %1734 = vbcast.lane.b32.xlu0 %v1728, %s1733
    %v1735 = vpop.permute.xlu0 %1734
    %s1737 = sor.u32 256, 16
    %1738 = vbcast.lane.b32.xlu0 %v1728, %s1737
    %v1739 = vpop.permute.xlu0 %1738
    %v1740 = vlaneseq
    %v1741 = vshrl.u32 %v1740, 7
    %v1742 = vsub.s32 1, %v1741
    %v1743 = vrot.slane %v1233, %v1742
    %1745 = vbcast.lane.b32.xlu0 %v1743, 256
    %v1746 = vpop.permute.xlu0 %1745
    %s1748 = sor.u32 256, 8
    %1749 = vbcast.lane.b32.xlu0 %v1743, %s1748
    %v1750 = vpop.permute.xlu0 %1749
    %s1752 = sor.u32 256, 16
    %1753 = vbcast.lane.b32.xlu0 %v1743, %s1752
    %v1754 = vpop.permute.xlu0 %1753
    %v1755 = vlaneseq
    %v1756 = vshrl.u32 %v1755, 7
    %v1757 = vsub.s32 2, %v1756
    %v1758 = vrot.slane %v1233, %v1757
    %1760 = vbcast.lane.b32.xlu0 %v1758, 256
    %v1761 = vpop.permute.xlu0 %1760
    %s1763 = sor.u32 256, 8
    %1764 = vbcast.lane.b32.xlu0 %v1758, %s1763
    %v1765 = vpop.permute.xlu0 %1764
    %s1767 = sor.u32 256, 16
    %1768 = vbcast.lane.b32.xlu0 %v1758, %s1767
    %v1769 = vpop.permute.xlu0 %1768
    %v1770 = vlaneseq
    %v1771 = vshrl.u32 %v1770, 7
    %v1772 = vsub.s32 3, %v1771
    %v1773 = vrot.slane %v1233, %v1772
    %1775 = vbcast.lane.b32.xlu0 %v1773, 256
    %v1776 = vpop.permute.xlu0 %1775
    %s1778 = sor.u32 256, 8
    %1779 = vbcast.lane.b32.xlu0 %v1773, %s1778
    %v1780 = vpop.permute.xlu0 %1779
    %s1782 = sor.u32 256, 16
    %1783 = vbcast.lane.b32.xlu0 %v1773, %s1782
    %v1784 = vpop.permute.xlu0 %1783
    %v1785 = vlaneseq
    %v1786 = vshrl.u32 %v1785, 7
    %v1787 = vsub.s32 4, %v1786
    %v1788 = vrot.slane %v1233, %v1787
    %1790 = vbcast.lane.b32.xlu0 %v1788, 256
    %v1791 = vpop.permute.xlu0 %1790
    %s1793 = sor.u32 256, 8
    %1794 = vbcast.lane.b32.xlu0 %v1788, %s1793
    %v1795 = vpop.permute.xlu0 %1794
    %s1797 = sor.u32 256, 16
    %1798 = vbcast.lane.b32.xlu0 %v1788, %s1797
    %v1799 = vpop.permute.xlu0 %1798
    %v1800 = vlaneseq
    %v1801 = vshrl.u32 %v1800, 7
    %v1802 = vsub.s32 5, %v1801
    %v1803 = vrot.slane %v1233, %v1802
    %1805 = vbcast.lane.b32.xlu0 %v1803, 256
    %v1806 = vpop.permute.xlu0 %1805
    %s1808 = sor.u32 256, 8
    %1809 = vbcast.lane.b32.xlu0 %v1803, %s1808
    %v1810 = vpop.permute.xlu0 %1809
    %s1812 = sor.u32 256, 16
    %1813 = vbcast.lane.b32.xlu0 %v1803, %s1812
    %v1814 = vpop.permute.xlu0 %1813
    %v1815 = vlaneseq
    %v1816 = vshrl.u32 %v1815, 7
    %v1817 = vsub.s32 6, %v1816
    %v1818 = vrot.slane %v1233, %v1817
    %1820 = vbcast.lane.b32.xlu0 %v1818, 256
    %v1821 = vpop.permute.xlu0 %1820
    %s1823 = sor.u32 256, 8
    %1824 = vbcast.lane.b32.xlu0 %v1818, %s1823
    %v1825 = vpop.permute.xlu0 %1824
    %s1827 = sor.u32 256, 16
    %1828 = vbcast.lane.b32.xlu0 %v1818, %s1827
    %v1829 = vpop.permute.xlu0 %1828
    %v1830 = vlaneseq
    %v1831 = vshrl.u32 %v1830, 7
    %v1832 = vsub.s32 7, %v1831
    %v1833 = vrot.slane %v1233, %v1832
    %1835 = vbcast.lane.b32.xlu0 %v1833, 256
    %v1836 = vpop.permute.xlu0 %1835
    %s1838 = sor.u32 256, 8
    %1839 = vbcast.lane.b32.xlu0 %v1833, %s1838
    %v1840 = vpop.permute.xlu0 %1839
    %s1842 = sor.u32 256, 16
    %1843 = vbcast.lane.b32.xlu0 %v1833, %s1842
    %v1844 = vpop.permute.xlu0 %1843
    %v1845 = vlaneseq
    %v1846 = vshrl.u32 %v1845, 7
    %v1847 = vsub.s32 0, %v1846
    %v1848 = vrot.slane %v1234, %v1847
    %1850 = vbcast.lane.b32.xlu0 %v1848, 256
    %v1851 = vpop.permute.xlu0 %1850
    %s1853 = sor.u32 256, 8
    %1854 = vbcast.lane.b32.xlu0 %v1848, %s1853
    %v1855 = vpop.permute.xlu0 %1854
    %s1857 = sor.u32 256, 16
    %1858 = vbcast.lane.b32.xlu0 %v1848, %s1857
    %v1859 = vpop.permute.xlu0 %1858
    %v1860 = vlaneseq
    %v1861 = vshrl.u32 %v1860, 7
    %v1862 = vsub.s32 1, %v1861
    %v1863 = vrot.slane %v1234, %v1862
    %1865 = vbcast.lane.b32.xlu0 %v1863, 256
    %v1866 = vpop.permute.xlu0 %1865
    %s1868 = sor.u32 256, 8
    %1869 = vbcast.lane.b32.xlu0 %v1863, %s1868
    %v1870 = vpop.permute.xlu0 %1869
    %s1872 = sor.u32 256, 16
    %1873 = vbcast.lane.b32.xlu0 %v1863, %s1872
    %v1874 = vpop.permute.xlu0 %1873
    %v1875 = vlaneseq
    %v1876 = vshrl.u32 %v1875, 7
    %v1877 = vsub.s32 2, %v1876
    %v1878 = vrot.slane %v1234, %v1877
    %1880 = vbcast.lane.b32.xlu0 %v1878, 256
    %v1881 = vpop.permute.xlu0 %1880
    %s1883 = sor.u32 256, 8
    %1884 = vbcast.lane.b32.xlu0 %v1878, %s1883
    %v1885 = vpop.permute.xlu0 %1884
    %s1887 = sor.u32 256, 16
    %1888 = vbcast.lane.b32.xlu0 %v1878, %s1887
    %v1889 = vpop.permute.xlu0 %1888
    %v1890 = vlaneseq
    %v1891 = vshrl.u32 %v1890, 7
    %v1892 = vsub.s32 3, %v1891
    %v1893 = vrot.slane %v1234, %v1892
    %1895 = vbcast.lane.b32.xlu0 %v1893, 256
    %v1896 = vpop.permute.xlu0 %1895
    %s1898 = sor.u32 256, 8
    %1899 = vbcast.lane.b32.xlu0 %v1893, %s1898
    %v1900 = vpop.permute.xlu0 %1899
    %s1902 = sor.u32 256, 16
    %1903 = vbcast.lane.b32.xlu0 %v1893, %s1902
    %v1904 = vpop.permute.xlu0 %1903
    %v1905 = vlaneseq
    %v1906 = vshrl.u32 %v1905, 7
    %v1907 = vsub.s32 4, %v1906
    %v1908 = vrot.slane %v1234, %v1907
    %1910 = vbcast.lane.b32.xlu0 %v1908, 256
    %v1911 = vpop.permute.xlu0 %1910
    %s1913 = sor.u32 256, 8
    %1914 = vbcast.lane.b32.xlu0 %v1908, %s1913
    %v1915 = vpop.permute.xlu0 %1914
    %s1917 = sor.u32 256, 16
    %1918 = vbcast.lane.b32.xlu0 %v1908, %s1917
    %v1919 = vpop.permute.xlu0 %1918
    %v1920 = vlaneseq
    %v1921 = vshrl.u32 %v1920, 7
    %v1922 = vsub.s32 5, %v1921
    %v1923 = vrot.slane %v1234, %v1922
    %1925 = vbcast.lane.b32.xlu0 %v1923, 256
    %v1926 = vpop.permute.xlu0 %1925
    %s1928 = sor.u32 256, 8
    %1929 = vbcast.lane.b32.xlu0 %v1923, %s1928
    %v1930 = vpop.permute.xlu0 %1929
    %s1932 = sor.u32 256, 16
    %1933 = vbcast.lane.b32.xlu0 %v1923, %s1932
    %v1934 = vpop.permute.xlu0 %1933
    %v1935 = vlaneseq
    %v1936 = vshrl.u32 %v1935, 7
    %v1937 = vsub.s32 6, %v1936
    %v1938 = vrot.slane %v1234, %v1937
    %1940 = vbcast.lane.b32.xlu0 %v1938, 256
    %v1941 = vpop.permute.xlu0 %1940
    %s1943 = sor.u32 256, 8
    %1944 = vbcast.lane.b32.xlu0 %v1938, %s1943
    %v1945 = vpop.permute.xlu0 %1944
    %s1947 = sor.u32 256, 16
    %1948 = vbcast.lane.b32.xlu0 %v1938, %s1947
    %v1949 = vpop.permute.xlu0 %1948
    %v1950 = vlaneseq
    %v1951 = vshrl.u32 %v1950, 7
    %v1952 = vsub.s32 7, %v1951
    %v1953 = vrot.slane %v1234, %v1952
    %1955 = vbcast.lane.b32.xlu0 %v1953, 256
    %v1956 = vpop.permute.xlu0 %1955
    %s1958 = sor.u32 256, 8
    %1959 = vbcast.lane.b32.xlu0 %v1953, %s1958
    %v1960 = vpop.permute.xlu0 %1959
    %s1962 = sor.u32 256, 16
    %1963 = vbcast.lane.b32.xlu0 %v1953, %s1962
    %v1964 = vpop.permute.xlu0 %1963
    %v1965 = vlaneseq
    %v1966 = vshrl.u32 %v1965, 7
    %v1967 = vsub.s32 0, %v1966
    %v1968 = vrot.slane %v1235, %v1967
    %1970 = vbcast.lane.b32.xlu0 %v1968, 256
    %v1971 = vpop.permute.xlu0 %1970
    %s1973 = sor.u32 256, 8
    %1974 = vbcast.lane.b32.xlu0 %v1968, %s1973
    %v1975 = vpop.permute.xlu0 %1974
    %s1977 = sor.u32 256, 16
    %1978 = vbcast.lane.b32.xlu0 %v1968, %s1977
    %v1979 = vpop.permute.xlu0 %1978
    %v1980 = vlaneseq
    %v1981 = vshrl.u32 %v1980, 7
    %v1982 = vsub.s32 1, %v1981
    %v1983 = vrot.slane %v1235, %v1982
    %1985 = vbcast.lane.b32.xlu0 %v1983, 256
    %v1986 = vpop.permute.xlu0 %1985
    %s1988 = sor.u32 256, 8
    %1989 = vbcast.lane.b32.xlu0 %v1983, %s1988
    %v1990 = vpop.permute.xlu0 %1989
    %s1992 = sor.u32 256, 16
    %1993 = vbcast.lane.b32.xlu0 %v1983, %s1992
    %v1994 = vpop.permute.xlu0 %1993
    %v1995 = vlaneseq
    %v1996 = vshrl.u32 %v1995, 7
    %v1997 = vsub.s32 2, %v1996
    %v1998 = vrot.slane %v1235, %v1997
    %2000 = vbcast.lane.b32.xlu0 %v1998, 256
    %v2001 = vpop.permute.xlu0 %2000
    %s2003 = sor.u32 256, 8
    %2004 = vbcast.lane.b32.xlu0 %v1998, %s2003
    %v2005 = vpop.permute.xlu0 %2004
    %s2007 = sor.u32 256, 16
    %2008 = vbcast.lane.b32.xlu0 %v1998, %s2007
    %v2009 = vpop.permute.xlu0 %2008
    %v2010 = vlaneseq
    %v2011 = vshrl.u32 %v2010, 7
    %v2012 = vsub.s32 3, %v2011
    %v2013 = vrot.slane %v1235, %v2012
    %2015 = vbcast.lane.b32.xlu0 %v2013, 256
    %v2016 = vpop.permute.xlu0 %2015
    %s2018 = sor.u32 256, 8
    %2019 = vbcast.lane.b32.xlu0 %v2013, %s2018
    %v2020 = vpop.permute.xlu0 %2019
    %s2022 = sor.u32 256, 16
    %2023 = vbcast.lane.b32.xlu0 %v2013, %s2022
    %v2024 = vpop.permute.xlu0 %2023
    %v2025 = vlaneseq
    %v2026 = vshrl.u32 %v2025, 7
    %v2027 = vsub.s32 4, %v2026
    %v2028 = vrot.slane %v1235, %v2027
    %2030 = vbcast.lane.b32.xlu0 %v2028, 256
    %v2031 = vpop.permute.xlu0 %2030
    %s2033 = sor.u32 256, 8
    %2034 = vbcast.lane.b32.xlu0 %v2028, %s2033
    %v2035 = vpop.permute.xlu0 %2034
    %s2037 = sor.u32 256, 16
    %2038 = vbcast.lane.b32.xlu0 %v2028, %s2037
    %v2039 = vpop.permute.xlu0 %2038
    %v2040 = vlaneseq
    %v2041 = vshrl.u32 %v2040, 7
    %v2042 = vsub.s32 5, %v2041
    %v2043 = vrot.slane %v1235, %v2042
    %2045 = vbcast.lane.b32.xlu0 %v2043, 256
    %v2046 = vpop.permute.xlu0 %2045
    %s2048 = sor.u32 256, 8
    %2049 = vbcast.lane.b32.xlu0 %v2043, %s2048
    %v2050 = vpop.permute.xlu0 %2049
    %s2052 = sor.u32 256, 16
    %2053 = vbcast.lane.b32.xlu0 %v2043, %s2052
    %v2054 = vpop.permute.xlu0 %2053
    %v2055 = vlaneseq
    %v2056 = vshrl.u32 %v2055, 7
    %v2057 = vsub.s32 6, %v2056
    %v2058 = vrot.slane %v1235, %v2057
    %2060 = vbcast.lane.b32.xlu0 %v2058, 256
    %v2061 = vpop.permute.xlu0 %2060
    %s2063 = sor.u32 256, 8
    %2064 = vbcast.lane.b32.xlu0 %v2058, %s2063
    %v2065 = vpop.permute.xlu0 %2064
    %s2067 = sor.u32 256, 16
    %2068 = vbcast.lane.b32.xlu0 %v2058, %s2067
    %v2069 = vpop.permute.xlu0 %2068
    %v2070 = vlaneseq
    %v2071 = vshrl.u32 %v2070, 7
    %v2072 = vsub.s32 7, %v2071
    %v2073 = vrot.slane %v1235, %v2072
    %2075 = vbcast.lane.b32.xlu0 %v2073, 256
    %v2076 = vpop.permute.xlu0 %2075
    %s2078 = sor.u32 256, 8
    %2079 = vbcast.lane.b32.xlu0 %v2073, %s2078
    %v2080 = vpop.permute.xlu0 %2079
    %s2082 = sor.u32 256, 16
    %2083 = vbcast.lane.b32.xlu0 %v2073, %s2082
    %v2084 = vpop.permute.xlu0 %2083
    %v2085 = vlaneseq
    %v2086 = vshrl.u32 %v2085, 7
    %v2087 = vsub.s32 0, %v2086
    %v2088 = vrot.slane %v1236, %v2087
    %2090 = vbcast.lane.b32.xlu0 %v2088, 256
    %v2091 = vpop.permute.xlu0 %2090
    %s2093 = sor.u32 256, 8
    %2094 = vbcast.lane.b32.xlu0 %v2088, %s2093
    %v2095 = vpop.permute.xlu0 %2094
    %s2097 = sor.u32 256, 16
    %2098 = vbcast.lane.b32.xlu0 %v2088, %s2097
    %v2099 = vpop.permute.xlu0 %2098
    %v2100 = vlaneseq
    %v2101 = vshrl.u32 %v2100, 7
    %v2102 = vsub.s32 1, %v2101
    %v2103 = vrot.slane %v1236, %v2102
    %2105 = vbcast.lane.b32.xlu0 %v2103, 256
    %v2106 = vpop.permute.xlu0 %2105
    %s2108 = sor.u32 256, 8
    %2109 = vbcast.lane.b32.xlu0 %v2103, %s2108
    %v2110 = vpop.permute.xlu0 %2109
    %s2112 = sor.u32 256, 16
    %2113 = vbcast.lane.b32.xlu0 %v2103, %s2112
    %v2114 = vpop.permute.xlu0 %2113
    %v2115 = vlaneseq
    %v2116 = vshrl.u32 %v2115, 7
    %v2117 = vsub.s32 2, %v2116
    %v2118 = vrot.slane %v1236, %v2117
    %2120 = vbcast.lane.b32.xlu0 %v2118, 256
    %v2121 = vpop.permute.xlu0 %2120
    %s2123 = sor.u32 256, 8
    %2124 = vbcast.lane.b32.xlu0 %v2118, %s2123
    %v2125 = vpop.permute.xlu0 %2124
    %s2127 = sor.u32 256, 16
    %2128 = vbcast.lane.b32.xlu0 %v2118, %s2127
    %v2129 = vpop.permute.xlu0 %2128
    %v2130 = vlaneseq
    %v2131 = vshrl.u32 %v2130, 7
    %v2132 = vsub.s32 3, %v2131
    %v2133 = vrot.slane %v1236, %v2132
    %2135 = vbcast.lane.b32.xlu0 %v2133, 256
    %v2136 = vpop.permute.xlu0 %2135
    %s2138 = sor.u32 256, 8
    %2139 = vbcast.lane.b32.xlu0 %v2133, %s2138
    %v2140 = vpop.permute.xlu0 %2139
    %s2142 = sor.u32 256, 16
    %2143 = vbcast.lane.b32.xlu0 %v2133, %s2142
    %v2144 = vpop.permute.xlu0 %2143
    %v2145 = vlaneseq
    %v2146 = vshrl.u32 %v2145, 7
    %v2147 = vsub.s32 4, %v2146
    %v2148 = vrot.slane %v1236, %v2147
    %2150 = vbcast.lane.b32.xlu0 %v2148, 256
    %v2151 = vpop.permute.xlu0 %2150
    %s2153 = sor.u32 256, 8
    %2154 = vbcast.lane.b32.xlu0 %v2148, %s2153
    %v2155 = vpop.permute.xlu0 %2154
    %s2157 = sor.u32 256, 16
    %2158 = vbcast.lane.b32.xlu0 %v2148, %s2157
    %v2159 = vpop.permute.xlu0 %2158
    %v2160 = vlaneseq
    %v2161 = vshrl.u32 %v2160, 7
    %v2162 = vsub.s32 5, %v2161
    %v2163 = vrot.slane %v1236, %v2162
    %2165 = vbcast.lane.b32.xlu0 %v2163, 256
    %v2166 = vpop.permute.xlu0 %2165
    %s2168 = sor.u32 256, 8
    %2169 = vbcast.lane.b32.xlu0 %v2163, %s2168
    %v2170 = vpop.permute.xlu0 %2169
    %s2172 = sor.u32 256, 16
    %2173 = vbcast.lane.b32.xlu0 %v2163, %s2172
    %v2174 = vpop.permute.xlu0 %2173
    %v2175 = vlaneseq
    %v2176 = vshrl.u32 %v2175, 7
    %v2177 = vsub.s32 6, %v2176
    %v2178 = vrot.slane %v1236, %v2177
    %2180 = vbcast.lane.b32.xlu0 %v2178, 256
    %v2181 = vpop.permute.xlu0 %2180
    %s2183 = sor.u32 256, 8
    %2184 = vbcast.lane.b32.xlu0 %v2178, %s2183
    %v2185 = vpop.permute.xlu0 %2184
    %s2187 = sor.u32 256, 16
    %2188 = vbcast.lane.b32.xlu0 %v2178, %s2187
    %v2189 = vpop.permute.xlu0 %2188
    %v2190 = vlaneseq
    %v2191 = vshrl.u32 %v2190, 7
    %v2192 = vsub.s32 7, %v2191
    %v2193 = vrot.slane %v1236, %v2192
    %2195 = vbcast.lane.b32.xlu0 %v2193, 256
    %v2196 = vpop.permute.xlu0 %2195
    %s2198 = sor.u32 256, 8
    %2199 = vbcast.lane.b32.xlu0 %v2193, %s2198
    %v2200 = vpop.permute.xlu0 %2199
    %s2202 = sor.u32 256, 16
    %2203 = vbcast.lane.b32.xlu0 %v2193, %s2202
    %v2204 = vpop.permute.xlu0 %2203
    %v2205 = vlaneseq
    %v2206 = vshrl.u32 %v2205, 7
    %v2207 = vsub.s32 0, %v2206
    %v2208 = vrot.slane %v1237, %v2207
    %2210 = vbcast.lane.b32.xlu0 %v2208, 256
    %v2211 = vpop.permute.xlu0 %2210
    %s2213 = sor.u32 256, 8
    %2214 = vbcast.lane.b32.xlu0 %v2208, %s2213
    %v2215 = vpop.permute.xlu0 %2214
    %s2217 = sor.u32 256, 16
    %2218 = vbcast.lane.b32.xlu0 %v2208, %s2217
    %v2219 = vpop.permute.xlu0 %2218
    %v2220 = vlaneseq
    %v2221 = vshrl.u32 %v2220, 7
    %v2222 = vsub.s32 1, %v2221
    %v2223 = vrot.slane %v1237, %v2222
    %2225 = vbcast.lane.b32.xlu0 %v2223, 256
    %v2226 = vpop.permute.xlu0 %2225
    %s2228 = sor.u32 256, 8
    %2229 = vbcast.lane.b32.xlu0 %v2223, %s2228
    %v2230 = vpop.permute.xlu0 %2229
    %s2232 = sor.u32 256, 16
    %2233 = vbcast.lane.b32.xlu0 %v2223, %s2232
    %v2234 = vpop.permute.xlu0 %2233
    %v2235 = vlaneseq
    %v2236 = vshrl.u32 %v2235, 7
    %v2237 = vsub.s32 2, %v2236
    %v2238 = vrot.slane %v1237, %v2237
    %2240 = vbcast.lane.b32.xlu0 %v2238, 256
    %v2241 = vpop.permute.xlu0 %2240
    %s2243 = sor.u32 256, 8
    %2244 = vbcast.lane.b32.xlu0 %v2238, %s2243
    %v2245 = vpop.permute.xlu0 %2244
    %s2247 = sor.u32 256, 16
    %2248 = vbcast.lane.b32.xlu0 %v2238, %s2247
    %v2249 = vpop.permute.xlu0 %2248
    %v2250 = vlaneseq
    %v2251 = vshrl.u32 %v2250, 7
    %v2252 = vsub.s32 3, %v2251
    %v2253 = vrot.slane %v1237, %v2252
    %2255 = vbcast.lane.b32.xlu0 %v2253, 256
    %v2256 = vpop.permute.xlu0 %2255
    %s2258 = sor.u32 256, 8
    %2259 = vbcast.lane.b32.xlu0 %v2253, %s2258
    %v2260 = vpop.permute.xlu0 %2259
    %s2262 = sor.u32 256, 16
    %2263 = vbcast.lane.b32.xlu0 %v2253, %s2262
    %v2264 = vpop.permute.xlu0 %2263
    %v2265 = vlaneseq
    %v2266 = vshrl.u32 %v2265, 7
    %v2267 = vsub.s32 4, %v2266
    %v2268 = vrot.slane %v1237, %v2267
    %2270 = vbcast.lane.b32.xlu0 %v2268, 256
    %v2271 = vpop.permute.xlu0 %2270
    %s2273 = sor.u32 256, 8
    %2274 = vbcast.lane.b32.xlu0 %v2268, %s2273
    %v2275 = vpop.permute.xlu0 %2274
    %s2277 = sor.u32 256, 16
    %2278 = vbcast.lane.b32.xlu0 %v2268, %s2277
    %v2279 = vpop.permute.xlu0 %2278
    %v2280 = vlaneseq
    %v2281 = vshrl.u32 %v2280, 7
    %v2282 = vsub.s32 5, %v2281
    %v2283 = vrot.slane %v1237, %v2282
    %2285 = vbcast.lane.b32.xlu0 %v2283, 256
    %v2286 = vpop.permute.xlu0 %2285
    %s2288 = sor.u32 256, 8
    %2289 = vbcast.lane.b32.xlu0 %v2283, %s2288
    %v2290 = vpop.permute.xlu0 %2289
    %s2292 = sor.u32 256, 16
    %2293 = vbcast.lane.b32.xlu0 %v2283, %s2292
    %v2294 = vpop.permute.xlu0 %2293
    %v2295 = vlaneseq
    %v2296 = vshrl.u32 %v2295, 7
    %v2297 = vsub.s32 6, %v2296
    %v2298 = vrot.slane %v1237, %v2297
    %2300 = vbcast.lane.b32.xlu0 %v2298, 256
    %v2301 = vpop.permute.xlu0 %2300
    %s2303 = sor.u32 256, 8
    %2304 = vbcast.lane.b32.xlu0 %v2298, %s2303
    %v2305 = vpop.permute.xlu0 %2304
    %s2307 = sor.u32 256, 16
    %2308 = vbcast.lane.b32.xlu0 %v2298, %s2307
    %v2309 = vpop.permute.xlu0 %2308
    %v2310 = vlaneseq
    %v2311 = vshrl.u32 %v2310, 7
    %v2312 = vsub.s32 7, %v2311
    %v2313 = vrot.slane %v1237, %v2312
    %2315 = vbcast.lane.b32.xlu0 %v2313, 256
    %v2316 = vpop.permute.xlu0 %2315
    %s2318 = sor.u32 256, 8
    %2319 = vbcast.lane.b32.xlu0 %v2313, %s2318
    %v2320 = vpop.permute.xlu0 %2319
    %s2322 = sor.u32 256, 16
    %2323 = vbcast.lane.b32.xlu0 %v2313, %s2322
    %v2324 = vpop.permute.xlu0 %2323
    %v2325 = vlaneseq
    %v2326 = vshrl.u32 %v2325, 7
    %v2327 = vsub.s32 0, %v2326
    %v2328 = vrot.slane %v1238, %v2327
    %2330 = vbcast.lane.b32.xlu0 %v2328, 256
    %v2331 = vpop.permute.xlu0 %2330
    %s2333 = sor.u32 256, 8
    %2334 = vbcast.lane.b32.xlu0 %v2328, %s2333
    %v2335 = vpop.permute.xlu0 %2334
    %s2337 = sor.u32 256, 16
    %2338 = vbcast.lane.b32.xlu0 %v2328, %s2337
    %v2339 = vpop.permute.xlu0 %2338
    %v2340 = vlaneseq
    %v2341 = vshrl.u32 %v2340, 7
    %v2342 = vsub.s32 1, %v2341
    %v2343 = vrot.slane %v1238, %v2342
    %2345 = vbcast.lane.b32.xlu0 %v2343, 256
    %v2346 = vpop.permute.xlu0 %2345
    %s2348 = sor.u32 256, 8
    %2349 = vbcast.lane.b32.xlu0 %v2343, %s2348
    %v2350 = vpop.permute.xlu0 %2349
    %s2352 = sor.u32 256, 16
    %2353 = vbcast.lane.b32.xlu0 %v2343, %s2352
    %v2354 = vpop.permute.xlu0 %2353
    %v2355 = vlaneseq
    %v2356 = vshrl.u32 %v2355, 7
    %v2357 = vsub.s32 2, %v2356
    %v2358 = vrot.slane %v1238, %v2357
    %2360 = vbcast.lane.b32.xlu0 %v2358, 256
    %v2361 = vpop.permute.xlu0 %2360
    %s2363 = sor.u32 256, 8
    %2364 = vbcast.lane.b32.xlu0 %v2358, %s2363
    %v2365 = vpop.permute.xlu0 %2364
    %s2367 = sor.u32 256, 16
    %2368 = vbcast.lane.b32.xlu0 %v2358, %s2367
    %v2369 = vpop.permute.xlu0 %2368
    %v2370 = vlaneseq
    %v2371 = vshrl.u32 %v2370, 7
    %v2372 = vsub.s32 3, %v2371
    %v2373 = vrot.slane %v1238, %v2372
    %2375 = vbcast.lane.b32.xlu0 %v2373, 256
    %v2376 = vpop.permute.xlu0 %2375
    %s2378 = sor.u32 256, 8
    %2379 = vbcast.lane.b32.xlu0 %v2373, %s2378
    %v2380 = vpop.permute.xlu0 %2379
    %s2382 = sor.u32 256, 16
    %2383 = vbcast.lane.b32.xlu0 %v2373, %s2382
    %v2384 = vpop.permute.xlu0 %2383
    %v2385 = vlaneseq
    %v2386 = vshrl.u32 %v2385, 7
    %v2387 = vsub.s32 4, %v2386
    %v2388 = vrot.slane %v1238, %v2387
    %2390 = vbcast.lane.b32.xlu0 %v2388, 256
    %v2391 = vpop.permute.xlu0 %2390
    %s2393 = sor.u32 256, 8
    %2394 = vbcast.lane.b32.xlu0 %v2388, %s2393
    %v2395 = vpop.permute.xlu0 %2394
    %s2397 = sor.u32 256, 16
    %2398 = vbcast.lane.b32.xlu0 %v2388, %s2397
    %v2399 = vpop.permute.xlu0 %2398
    %v2400 = vlaneseq
    %v2401 = vshrl.u32 %v2400, 7
    %v2402 = vsub.s32 5, %v2401
    %v2403 = vrot.slane %v1238, %v2402
    %2405 = vbcast.lane.b32.xlu0 %v2403, 256
    %v2406 = vpop.permute.xlu0 %2405
    %s2408 = sor.u32 256, 8
    %2409 = vbcast.lane.b32.xlu0 %v2403, %s2408
    %v2410 = vpop.permute.xlu0 %2409
    %s2412 = sor.u32 256, 16
    %2413 = vbcast.lane.b32.xlu0 %v2403, %s2412
    %v2414 = vpop.permute.xlu0 %2413
    %v2415 = vlaneseq
    %v2416 = vshrl.u32 %v2415, 7
    %v2417 = vsub.s32 6, %v2416
    %v2418 = vrot.slane %v1238, %v2417
    %2420 = vbcast.lane.b32.xlu0 %v2418, 256
    %v2421 = vpop.permute.xlu0 %2420
    %s2423 = sor.u32 256, 8
    %2424 = vbcast.lane.b32.xlu0 %v2418, %s2423
    %v2425 = vpop.permute.xlu0 %2424
    %s2427 = sor.u32 256, 16
    %2428 = vbcast.lane.b32.xlu0 %v2418, %s2427
    %v2429 = vpop.permute.xlu0 %2428
    %v2430 = vlaneseq
    %v2431 = vshrl.u32 %v2430, 7
    %v2432 = vsub.s32 7, %v2431
    %v2433 = vrot.slane %v1238, %v2432
    %2435 = vbcast.lane.b32.xlu0 %v2433, 256
    %v2436 = vpop.permute.xlu0 %2435
    %s2438 = sor.u32 256, 8
    %2439 = vbcast.lane.b32.xlu0 %v2433, %s2438
    %v2440 = vpop.permute.xlu0 %2439
    %s2442 = sor.u32 256, 16
    %2443 = vbcast.lane.b32.xlu0 %v2433, %s2442
    %v2444 = vpop.permute.xlu0 %2443
    %v2445 = vlaneseq
    %v2446 = vshrl.u32 %v2445, 7
    %v2447 = vsub.s32 0, %v2446
    %v2448 = vrot.slane %v1239, %v2447
    %2450 = vbcast.lane.b32.xlu0 %v2448, 256
    %v2451 = vpop.permute.xlu0 %2450
    %s2453 = sor.u32 256, 8
    %2454 = vbcast.lane.b32.xlu0 %v2448, %s2453
    %v2455 = vpop.permute.xlu0 %2454
    %s2457 = sor.u32 256, 16
    %2458 = vbcast.lane.b32.xlu0 %v2448, %s2457
    %v2459 = vpop.permute.xlu0 %2458
    %v2460 = vlaneseq
    %v2461 = vshrl.u32 %v2460, 7
    %v2462 = vsub.s32 1, %v2461
    %v2463 = vrot.slane %v1239, %v2462
    %2465 = vbcast.lane.b32.xlu0 %v2463, 256
    %v2466 = vpop.permute.xlu0 %2465
    %s2468 = sor.u32 256, 8
    %2469 = vbcast.lane.b32.xlu0 %v2463, %s2468
    %v2470 = vpop.permute.xlu0 %2469
    %s2472 = sor.u32 256, 16
    %2473 = vbcast.lane.b32.xlu0 %v2463, %s2472
    %v2474 = vpop.permute.xlu0 %2473
    %v2475 = vlaneseq
    %v2476 = vshrl.u32 %v2475, 7
    %v2477 = vsub.s32 2, %v2476
    %v2478 = vrot.slane %v1239, %v2477
    %2480 = vbcast.lane.b32.xlu0 %v2478, 256
    %v2481 = vpop.permute.xlu0 %2480
    %s2483 = sor.u32 256, 8
    %2484 = vbcast.lane.b32.xlu0 %v2478, %s2483
    %v2485 = vpop.permute.xlu0 %2484
    %s2487 = sor.u32 256, 16
    %2488 = vbcast.lane.b32.xlu0 %v2478, %s2487
    %v2489 = vpop.permute.xlu0 %2488
    %v2490 = vlaneseq
    %v2491 = vshrl.u32 %v2490, 7
    %v2492 = vsub.s32 3, %v2491
    %v2493 = vrot.slane %v1239, %v2492
    %2495 = vbcast.lane.b32.xlu0 %v2493, 256
    %v2496 = vpop.permute.xlu0 %2495
    %s2498 = sor.u32 256, 8
    %2499 = vbcast.lane.b32.xlu0 %v2493, %s2498
    %v2500 = vpop.permute.xlu0 %2499
    %s2502 = sor.u32 256, 16
    %2503 = vbcast.lane.b32.xlu0 %v2493, %s2502
    %v2504 = vpop.permute.xlu0 %2503
    %v2505 = vlaneseq
    %v2506 = vshrl.u32 %v2505, 7
    %v2507 = vsub.s32 4, %v2506
    %v2508 = vrot.slane %v1239, %v2507
    %2510 = vbcast.lane.b32.xlu0 %v2508, 256
    %v2511 = vpop.permute.xlu0 %2510
    %s2513 = sor.u32 256, 8
    %2514 = vbcast.lane.b32.xlu0 %v2508, %s2513
    %v2515 = vpop.permute.xlu0 %2514
    %s2517 = sor.u32 256, 16
    %2518 = vbcast.lane.b32.xlu0 %v2508, %s2517
    %v2519 = vpop.permute.xlu0 %2518
    %v2520 = vlaneseq
    %v2521 = vshrl.u32 %v2520, 7
    %v2522 = vsub.s32 5, %v2521
    %v2523 = vrot.slane %v1239, %v2522
    %2525 = vbcast.lane.b32.xlu0 %v2523, 256
    %v2526 = vpop.permute.xlu0 %2525
    %s2528 = sor.u32 256, 8
    %2529 = vbcast.lane.b32.xlu0 %v2523, %s2528
    %v2530 = vpop.permute.xlu0 %2529
    %s2532 = sor.u32 256, 16
    %2533 = vbcast.lane.b32.xlu0 %v2523, %s2532
    %v2534 = vpop.permute.xlu0 %2533
    %v2535 = vlaneseq
    %v2536 = vshrl.u32 %v2535, 7
    %v2537 = vsub.s32 6, %v2536
    %v2538 = vrot.slane %v1239, %v2537
    %2540 = vbcast.lane.b32.xlu0 %v2538, 256
    %v2541 = vpop.permute.xlu0 %2540
    %s2543 = sor.u32 256, 8
    %2544 = vbcast.lane.b32.xlu0 %v2538, %s2543
    %v2545 = vpop.permute.xlu0 %2544
    %s2547 = sor.u32 256, 16
    %2548 = vbcast.lane.b32.xlu0 %v2538, %s2547
    %v2549 = vpop.permute.xlu0 %2548
    %v2550 = vlaneseq
    %v2551 = vshrl.u32 %v2550, 7
    %v2552 = vsub.s32 7, %v2551
    %v2553 = vrot.slane %v1239, %v2552
    %2555 = vbcast.lane.b32.xlu0 %v2553, 256
    %v2556 = vpop.permute.xlu0 %2555
    %s2558 = sor.u32 256, 8
    %2559 = vbcast.lane.b32.xlu0 %v2553, %s2558
    %v2560 = vpop.permute.xlu0 %2559
    %s2562 = sor.u32 256, 16
    %2563 = vbcast.lane.b32.xlu0 %v2553, %s2562
    %v2564 = vpop.permute.xlu0 %2563
    %v2565 = vlaneseq
    %v2566 = vshrl.u32 %v2565, 7
    %v2567 = vsub.s32 0, %v2566
    %v2568 = vrot.slane %v1240, %v2567
    %2570 = vbcast.lane.b32.xlu0 %v2568, 256
    %v2571 = vpop.permute.xlu0 %2570
    %s2573 = sor.u32 256, 8
    %2574 = vbcast.lane.b32.xlu0 %v2568, %s2573
    %v2575 = vpop.permute.xlu0 %2574
    %s2577 = sor.u32 256, 16
    %2578 = vbcast.lane.b32.xlu0 %v2568, %s2577
    %v2579 = vpop.permute.xlu0 %2578
    %v2580 = vlaneseq
    %v2581 = vshrl.u32 %v2580, 7
    %v2582 = vsub.s32 1, %v2581
    %v2583 = vrot.slane %v1240, %v2582
    %2585 = vbcast.lane.b32.xlu0 %v2583, 256
    %v2586 = vpop.permute.xlu0 %2585
    %s2588 = sor.u32 256, 8
    %2589 = vbcast.lane.b32.xlu0 %v2583, %s2588
    %v2590 = vpop.permute.xlu0 %2589
    %s2592 = sor.u32 256, 16
    %2593 = vbcast.lane.b32.xlu0 %v2583, %s2592
    %v2594 = vpop.permute.xlu0 %2593
    %v2595 = vlaneseq
    %v2596 = vshrl.u32 %v2595, 7
    %v2597 = vsub.s32 2, %v2596
    %v2598 = vrot.slane %v1240, %v2597
    %2600 = vbcast.lane.b32.xlu0 %v2598, 256
    %v2601 = vpop.permute.xlu0 %2600
    %s2603 = sor.u32 256, 8
    %2604 = vbcast.lane.b32.xlu0 %v2598, %s2603
    %v2605 = vpop.permute.xlu0 %2604
    %s2607 = sor.u32 256, 16
    %2608 = vbcast.lane.b32.xlu0 %v2598, %s2607
    %v2609 = vpop.permute.xlu0 %2608
    %v2610 = vlaneseq
    %v2611 = vshrl.u32 %v2610, 7
    %v2612 = vsub.s32 3, %v2611
    %v2613 = vrot.slane %v1240, %v2612
    %2615 = vbcast.lane.b32.xlu0 %v2613, 256
    %v2616 = vpop.permute.xlu0 %2615
    %s2618 = sor.u32 256, 8
    %2619 = vbcast.lane.b32.xlu0 %v2613, %s2618
    %v2620 = vpop.permute.xlu0 %2619
    %s2622 = sor.u32 256, 16
    %2623 = vbcast.lane.b32.xlu0 %v2613, %s2622
    %v2624 = vpop.permute.xlu0 %2623
    %v2625 = vlaneseq
    %v2626 = vshrl.u32 %v2625, 7
    %v2627 = vsub.s32 4, %v2626
    %v2628 = vrot.slane %v1240, %v2627
    %2630 = vbcast.lane.b32.xlu0 %v2628, 256
    %v2631 = vpop.permute.xlu0 %2630
    %s2633 = sor.u32 256, 8
    %2634 = vbcast.lane.b32.xlu0 %v2628, %s2633
    %v2635 = vpop.permute.xlu0 %2634
    %s2637 = sor.u32 256, 16
    %2638 = vbcast.lane.b32.xlu0 %v2628, %s2637
    %v2639 = vpop.permute.xlu0 %2638
    %v2640 = vlaneseq
    %v2641 = vshrl.u32 %v2640, 7
    %v2642 = vsub.s32 5, %v2641
    %v2643 = vrot.slane %v1240, %v2642
    %2645 = vbcast.lane.b32.xlu0 %v2643, 256
    %v2646 = vpop.permute.xlu0 %2645
    %s2648 = sor.u32 256, 8
    %2649 = vbcast.lane.b32.xlu0 %v2643, %s2648
    %v2650 = vpop.permute.xlu0 %2649
    %s2652 = sor.u32 256, 16
    %2653 = vbcast.lane.b32.xlu0 %v2643, %s2652
    %v2654 = vpop.permute.xlu0 %2653
    %v2655 = vlaneseq
    %v2656 = vshrl.u32 %v2655, 7
    %v2657 = vsub.s32 6, %v2656
    %v2658 = vrot.slane %v1240, %v2657
    %2660 = vbcast.lane.b32.xlu0 %v2658, 256
    %v2661 = vpop.permute.xlu0 %2660
    %s2663 = sor.u32 256, 8
    %2664 = vbcast.lane.b32.xlu0 %v2658, %s2663
    %v2665 = vpop.permute.xlu0 %2664
    %s2667 = sor.u32 256, 16
    %2668 = vbcast.lane.b32.xlu0 %v2658, %s2667
    %v2669 = vpop.permute.xlu0 %2668
    %v2670 = vlaneseq
    %v2671 = vshrl.u32 %v2670, 7
    %v2672 = vsub.s32 7, %v2671
    %v2673 = vrot.slane %v1240, %v2672
    %2675 = vbcast.lane.b32.xlu0 %v2673, 256
    %v2676 = vpop.permute.xlu0 %2675
    %s2678 = sor.u32 256, 8
    %2679 = vbcast.lane.b32.xlu0 %v2673, %s2678
    %v2680 = vpop.permute.xlu0 %2679
    %s2682 = sor.u32 256, 16
    %2683 = vbcast.lane.b32.xlu0 %v2673, %s2682
    %v2684 = vpop.permute.xlu0 %2683
    %v2685 = vlaneseq
    %v2686 = vshrl.u32 %v2685, 7
    %v2687 = vsub.s32 0, %v2686
    %v2688 = vrot.slane %v1241, %v2687
    %2690 = vbcast.lane.b32.xlu0 %v2688, 256
    %v2691 = vpop.permute.xlu0 %2690
    %s2693 = sor.u32 256, 8
    %2694 = vbcast.lane.b32.xlu0 %v2688, %s2693
    %v2695 = vpop.permute.xlu0 %2694
    %s2697 = sor.u32 256, 16
    %2698 = vbcast.lane.b32.xlu0 %v2688, %s2697
    %v2699 = vpop.permute.xlu0 %2698
    %v2700 = vlaneseq
    %v2701 = vshrl.u32 %v2700, 7
    %v2702 = vsub.s32 1, %v2701
    %v2703 = vrot.slane %v1241, %v2702
    %2705 = vbcast.lane.b32.xlu0 %v2703, 256
    %v2706 = vpop.permute.xlu0 %2705
    %s2708 = sor.u32 256, 8
    %2709 = vbcast.lane.b32.xlu0 %v2703, %s2708
    %v2710 = vpop.permute.xlu0 %2709
    %s2712 = sor.u32 256, 16
    %2713 = vbcast.lane.b32.xlu0 %v2703, %s2712
    %v2714 = vpop.permute.xlu0 %2713
    %v2715 = vlaneseq
    %v2716 = vshrl.u32 %v2715, 7
    %v2717 = vsub.s32 2, %v2716
    %v2718 = vrot.slane %v1241, %v2717
    %2720 = vbcast.lane.b32.xlu0 %v2718, 256
    %v2721 = vpop.permute.xlu0 %2720
    %s2723 = sor.u32 256, 8
    %2724 = vbcast.lane.b32.xlu0 %v2718, %s2723
    %v2725 = vpop.permute.xlu0 %2724
    %s2727 = sor.u32 256, 16
    %2728 = vbcast.lane.b32.xlu0 %v2718, %s2727
    %v2729 = vpop.permute.xlu0 %2728
    %v2730 = vlaneseq
    %v2731 = vshrl.u32 %v2730, 7
    %v2732 = vsub.s32 3, %v2731
    %v2733 = vrot.slane %v1241, %v2732
    %2735 = vbcast.lane.b32.xlu0 %v2733, 256
    %v2736 = vpop.permute.xlu0 %2735
    %s2738 = sor.u32 256, 8
    %2739 = vbcast.lane.b32.xlu0 %v2733, %s2738
    %v2740 = vpop.permute.xlu0 %2739
    %s2742 = sor.u32 256, 16
    %2743 = vbcast.lane.b32.xlu0 %v2733, %s2742
    %v2744 = vpop.permute.xlu0 %2743
    %v2745 = vlaneseq
    %v2746 = vshrl.u32 %v2745, 7
    %v2747 = vsub.s32 4, %v2746
    %v2748 = vrot.slane %v1241, %v2747
    %2750 = vbcast.lane.b32.xlu0 %v2748, 256
    %v2751 = vpop.permute.xlu0 %2750
    %s2753 = sor.u32 256, 8
    %2754 = vbcast.lane.b32.xlu0 %v2748, %s2753
    %v2755 = vpop.permute.xlu0 %2754
    %s2757 = sor.u32 256, 16
    %2758 = vbcast.lane.b32.xlu0 %v2748, %s2757
    %v2759 = vpop.permute.xlu0 %2758
    %v2760 = vlaneseq
    %v2761 = vshrl.u32 %v2760, 7
    %v2762 = vsub.s32 5, %v2761
    %v2763 = vrot.slane %v1241, %v2762
    %2765 = vbcast.lane.b32.xlu0 %v2763, 256
    %v2766 = vpop.permute.xlu0 %2765
    %s2768 = sor.u32 256, 8
    %2769 = vbcast.lane.b32.xlu0 %v2763, %s2768
    %v2770 = vpop.permute.xlu0 %2769
    %s2772 = sor.u32 256, 16
    %2773 = vbcast.lane.b32.xlu0 %v2763, %s2772
    %v2774 = vpop.permute.xlu0 %2773
    %v2775 = vlaneseq
    %v2776 = vshrl.u32 %v2775, 7
    %v2777 = vsub.s32 6, %v2776
    %v2778 = vrot.slane %v1241, %v2777
    %2780 = vbcast.lane.b32.xlu0 %v2778, 256
    %v2781 = vpop.permute.xlu0 %2780
    %s2783 = sor.u32 256, 8
    %2784 = vbcast.lane.b32.xlu0 %v2778, %s2783
    %v2785 = vpop.permute.xlu0 %2784
    %s2787 = sor.u32 256, 16
    %2788 = vbcast.lane.b32.xlu0 %v2778, %s2787
    %v2789 = vpop.permute.xlu0 %2788
    %v2790 = vlaneseq
    %v2791 = vshrl.u32 %v2790, 7
    %v2792 = vsub.s32 7, %v2791
    %v2793 = vrot.slane %v1241, %v2792
    %2795 = vbcast.lane.b32.xlu0 %v2793, 256
    %v2796 = vpop.permute.xlu0 %2795
    %s2798 = sor.u32 256, 8
    %2799 = vbcast.lane.b32.xlu0 %v2793, %s2798
    %v2800 = vpop.permute.xlu0 %2799
    %s2802 = sor.u32 256, 16
    %2803 = vbcast.lane.b32.xlu0 %v2793, %s2802
    %v2804 = vpop.permute.xlu0 %2803
    %v2805 = vlaneseq
    %v2806 = vshrl.u32 %v2805, 7
    %v2807 = vsub.s32 0, %v2806
    %v2808 = vrot.slane %v1242, %v2807
    %2810 = vbcast.lane.b32.xlu0 %v2808, 256
    %v2811 = vpop.permute.xlu0 %2810
    %s2813 = sor.u32 256, 8
    %2814 = vbcast.lane.b32.xlu0 %v2808, %s2813
    %v2815 = vpop.permute.xlu0 %2814
    %s2817 = sor.u32 256, 16
    %2818 = vbcast.lane.b32.xlu0 %v2808, %s2817
    %v2819 = vpop.permute.xlu0 %2818
    %v2820 = vlaneseq
    %v2821 = vshrl.u32 %v2820, 7
    %v2822 = vsub.s32 1, %v2821
    %v2823 = vrot.slane %v1242, %v2822
    %2825 = vbcast.lane.b32.xlu0 %v2823, 256
    %v2826 = vpop.permute.xlu0 %2825
    %s2828 = sor.u32 256, 8
    %2829 = vbcast.lane.b32.xlu0 %v2823, %s2828
    %v2830 = vpop.permute.xlu0 %2829
    %s2832 = sor.u32 256, 16
    %2833 = vbcast.lane.b32.xlu0 %v2823, %s2832
    %v2834 = vpop.permute.xlu0 %2833
    %v2835 = vlaneseq
    %v2836 = vshrl.u32 %v2835, 7
    %v2837 = vsub.s32 2, %v2836
    %v2838 = vrot.slane %v1242, %v2837
    %2840 = vbcast.lane.b32.xlu0 %v2838, 256
    %v2841 = vpop.permute.xlu0 %2840
    %s2843 = sor.u32 256, 8
    %2844 = vbcast.lane.b32.xlu0 %v2838, %s2843
    %v2845 = vpop.permute.xlu0 %2844
    %s2847 = sor.u32 256, 16
    %2848 = vbcast.lane.b32.xlu0 %v2838, %s2847
    %v2849 = vpop.permute.xlu0 %2848
    %v2850 = vlaneseq
    %v2851 = vshrl.u32 %v2850, 7
    %v2852 = vsub.s32 3, %v2851
    %v2853 = vrot.slane %v1242, %v2852
    %2855 = vbcast.lane.b32.xlu0 %v2853, 256
    %v2856 = vpop.permute.xlu0 %2855
    %s2858 = sor.u32 256, 8
    %2859 = vbcast.lane.b32.xlu0 %v2853, %s2858
    %v2860 = vpop.permute.xlu0 %2859
    %s2862 = sor.u32 256, 16
    %2863 = vbcast.lane.b32.xlu0 %v2853, %s2862
    %v2864 = vpop.permute.xlu0 %2863
    %v2865 = vlaneseq
    %v2866 = vshrl.u32 %v2865, 7
    %v2867 = vsub.s32 4, %v2866
    %v2868 = vrot.slane %v1242, %v2867
    %2870 = vbcast.lane.b32.xlu0 %v2868, 256
    %v2871 = vpop.permute.xlu0 %2870
    %s2873 = sor.u32 256, 8
    %2874 = vbcast.lane.b32.xlu0 %v2868, %s2873
    %v2875 = vpop.permute.xlu0 %2874
    %s2877 = sor.u32 256, 16
    %2878 = vbcast.lane.b32.xlu0 %v2868, %s2877
    %v2879 = vpop.permute.xlu0 %2878
    %v2880 = vlaneseq
    %v2881 = vshrl.u32 %v2880, 7
    %v2882 = vsub.s32 5, %v2881
    %v2883 = vrot.slane %v1242, %v2882
    %2885 = vbcast.lane.b32.xlu0 %v2883, 256
    %v2886 = vpop.permute.xlu0 %2885
    %s2888 = sor.u32 256, 8
    %2889 = vbcast.lane.b32.xlu0 %v2883, %s2888
    %v2890 = vpop.permute.xlu0 %2889
    %s2892 = sor.u32 256, 16
    %2893 = vbcast.lane.b32.xlu0 %v2883, %s2892
    %v2894 = vpop.permute.xlu0 %2893
    %v2895 = vlaneseq
    %v2896 = vshrl.u32 %v2895, 7
    %v2897 = vsub.s32 6, %v2896
    %v2898 = vrot.slane %v1242, %v2897
    %2900 = vbcast.lane.b32.xlu0 %v2898, 256
    %v2901 = vpop.permute.xlu0 %2900
    %s2903 = sor.u32 256, 8
    %2904 = vbcast.lane.b32.xlu0 %v2898, %s2903
    %v2905 = vpop.permute.xlu0 %2904
    %s2907 = sor.u32 256, 16
    %2908 = vbcast.lane.b32.xlu0 %v2898, %s2907
    %v2909 = vpop.permute.xlu0 %2908
    %v2910 = vlaneseq
    %v2911 = vshrl.u32 %v2910, 7
    %v2912 = vsub.s32 7, %v2911
    %v2913 = vrot.slane %v1242, %v2912
    %2915 = vbcast.lane.b32.xlu0 %v2913, 256
    %v2916 = vpop.permute.xlu0 %2915
    %s2918 = sor.u32 256, 8
    %2919 = vbcast.lane.b32.xlu0 %v2913, %s2918
    %v2920 = vpop.permute.xlu0 %2919
    %s2922 = sor.u32 256, 16
    %2923 = vbcast.lane.b32.xlu0 %v2913, %s2922
    %v2924 = vpop.permute.xlu0 %2923
    %v2925 = vlaneseq
    %v2926 = vshrl.u32 %v2925, 7
    %v2927 = vsub.s32 0, %v2926
    %v2928 = vrot.slane %v1243, %v2927
    %2930 = vbcast.lane.b32.xlu0 %v2928, 256
    %v2931 = vpop.permute.xlu0 %2930
    %s2933 = sor.u32 256, 8
    %2934 = vbcast.lane.b32.xlu0 %v2928, %s2933
    %v2935 = vpop.permute.xlu0 %2934
    %s2937 = sor.u32 256, 16
    %2938 = vbcast.lane.b32.xlu0 %v2928, %s2937
    %v2939 = vpop.permute.xlu0 %2938
    %v2940 = vlaneseq
    %v2941 = vshrl.u32 %v2940, 7
    %v2942 = vsub.s32 1, %v2941
    %v2943 = vrot.slane %v1243, %v2942
    %2945 = vbcast.lane.b32.xlu0 %v2943, 256
    %v2946 = vpop.permute.xlu0 %2945
    %s2948 = sor.u32 256, 8
    %2949 = vbcast.lane.b32.xlu0 %v2943, %s2948
    %v2950 = vpop.permute.xlu0 %2949
    %s2952 = sor.u32 256, 16
    %2953 = vbcast.lane.b32.xlu0 %v2943, %s2952
    %v2954 = vpop.permute.xlu0 %2953
    %v2955 = vlaneseq
    %v2956 = vshrl.u32 %v2955, 7
    %v2957 = vsub.s32 2, %v2956
    %v2958 = vrot.slane %v1243, %v2957
    %2960 = vbcast.lane.b32.xlu0 %v2958, 256
    %v2961 = vpop.permute.xlu0 %2960
    %s2963 = sor.u32 256, 8
    %2964 = vbcast.lane.b32.xlu0 %v2958, %s2963
    %v2965 = vpop.permute.xlu0 %2964
    %s2967 = sor.u32 256, 16
    %2968 = vbcast.lane.b32.xlu0 %v2958, %s2967
    %v2969 = vpop.permute.xlu0 %2968
    %v2970 = vlaneseq
    %v2971 = vshrl.u32 %v2970, 7
    %v2972 = vsub.s32 3, %v2971
    %v2973 = vrot.slane %v1243, %v2972
    %2975 = vbcast.lane.b32.xlu0 %v2973, 256
    %v2976 = vpop.permute.xlu0 %2975
    %s2978 = sor.u32 256, 8
    %2979 = vbcast.lane.b32.xlu0 %v2973, %s2978
    %v2980 = vpop.permute.xlu0 %2979
    %s2982 = sor.u32 256, 16
    %2983 = vbcast.lane.b32.xlu0 %v2973, %s2982
    %v2984 = vpop.permute.xlu0 %2983
    %v2985 = vlaneseq
    %v2986 = vshrl.u32 %v2985, 7
    %v2987 = vsub.s32 4, %v2986
    %v2988 = vrot.slane %v1243, %v2987
    %2990 = vbcast.lane.b32.xlu0 %v2988, 256
    %v2991 = vpop.permute.xlu0 %2990
    %s2993 = sor.u32 256, 8
    %2994 = vbcast.lane.b32.xlu0 %v2988, %s2993
    %v2995 = vpop.permute.xlu0 %2994
    %s2997 = sor.u32 256, 16
    %2998 = vbcast.lane.b32.xlu0 %v2988, %s2997
    %v2999 = vpop.permute.xlu0 %2998
    %v3000 = vlaneseq
    %v3001 = vshrl.u32 %v3000, 7
    %v3002 = vsub.s32 5, %v3001
    %v3003 = vrot.slane %v1243, %v3002
    %3005 = vbcast.lane.b32.xlu0 %v3003, 256
    %v3006 = vpop.permute.xlu0 %3005
    %s3008 = sor.u32 256, 8
    %3009 = vbcast.lane.b32.xlu0 %v3003, %s3008
    %v3010 = vpop.permute.xlu0 %3009
    %s3012 = sor.u32 256, 16
    %3013 = vbcast.lane.b32.xlu0 %v3003, %s3012
    %v3014 = vpop.permute.xlu0 %3013
    %v3015 = vlaneseq
    %v3016 = vshrl.u32 %v3015, 7
    %v3017 = vsub.s32 6, %v3016
    %v3018 = vrot.slane %v1243, %v3017
    %3020 = vbcast.lane.b32.xlu0 %v3018, 256
    %v3021 = vpop.permute.xlu0 %3020
    %s3023 = sor.u32 256, 8
    %3024 = vbcast.lane.b32.xlu0 %v3018, %s3023
    %v3025 = vpop.permute.xlu0 %3024
    %s3027 = sor.u32 256, 16
    %3028 = vbcast.lane.b32.xlu0 %v3018, %s3027
    %v3029 = vpop.permute.xlu0 %3028
    %v3030 = vlaneseq
    %v3031 = vshrl.u32 %v3030, 7
    %v3032 = vsub.s32 7, %v3031
    %v3033 = vrot.slane %v1243, %v3032
    %3035 = vbcast.lane.b32.xlu0 %v3033, 256
    %v3036 = vpop.permute.xlu0 %3035
    %s3038 = sor.u32 256, 8
    %3039 = vbcast.lane.b32.xlu0 %v3033, %s3038
    %v3040 = vpop.permute.xlu0 %3039
    %s3042 = sor.u32 256, 16
    %3043 = vbcast.lane.b32.xlu0 %v3033, %s3042
    %v3044 = vpop.permute.xlu0 %3043
    %v3045 = vlaneseq
    %v3046 = vshrl.u32 %v3045, 7
    %v3047 = vsub.s32 0, %v3046
    %v3048 = vrot.slane %v1244, %v3047
    %3050 = vbcast.lane.b32.xlu0 %v3048, 256
    %v3051 = vpop.permute.xlu0 %3050
    %s3053 = sor.u32 256, 8
    %3054 = vbcast.lane.b32.xlu0 %v3048, %s3053
    %v3055 = vpop.permute.xlu0 %3054
    %s3057 = sor.u32 256, 16
    %3058 = vbcast.lane.b32.xlu0 %v3048, %s3057
    %v3059 = vpop.permute.xlu0 %3058
    %v3060 = vlaneseq
    %v3061 = vshrl.u32 %v3060, 7
    %v3062 = vsub.s32 1, %v3061
    %v3063 = vrot.slane %v1244, %v3062
    %3065 = vbcast.lane.b32.xlu0 %v3063, 256
    %v3066 = vpop.permute.xlu0 %3065
    %s3068 = sor.u32 256, 8
    %3069 = vbcast.lane.b32.xlu0 %v3063, %s3068
    %v3070 = vpop.permute.xlu0 %3069
    %s3072 = sor.u32 256, 16
    %3073 = vbcast.lane.b32.xlu0 %v3063, %s3072
    %v3074 = vpop.permute.xlu0 %3073
    %v3075 = vlaneseq
    %v3076 = vshrl.u32 %v3075, 7
    %v3077 = vsub.s32 2, %v3076
    %v3078 = vrot.slane %v1244, %v3077
    %3080 = vbcast.lane.b32.xlu0 %v3078, 256
    %v3081 = vpop.permute.xlu0 %3080
    %s3083 = sor.u32 256, 8
    %3084 = vbcast.lane.b32.xlu0 %v3078, %s3083
    %v3085 = vpop.permute.xlu0 %3084
    %s3087 = sor.u32 256, 16
    %3088 = vbcast.lane.b32.xlu0 %v3078, %s3087
    %v3089 = vpop.permute.xlu0 %3088
    %v3090 = vlaneseq
    %v3091 = vshrl.u32 %v3090, 7
    %v3092 = vsub.s32 3, %v3091
    %v3093 = vrot.slane %v1244, %v3092
    %3095 = vbcast.lane.b32.xlu0 %v3093, 256
    %v3096 = vpop.permute.xlu0 %3095
    %s3098 = sor.u32 256, 8
    %3099 = vbcast.lane.b32.xlu0 %v3093, %s3098
    %v3100 = vpop.permute.xlu0 %3099
    %s3102 = sor.u32 256, 16
    %3103 = vbcast.lane.b32.xlu0 %v3093, %s3102
    %v3104 = vpop.permute.xlu0 %3103
    %v3105 = vlaneseq
    %v3106 = vshrl.u32 %v3105, 7
    %v3107 = vsub.s32 4, %v3106
    %v3108 = vrot.slane %v1244, %v3107
    %3110 = vbcast.lane.b32.xlu0 %v3108, 256
    %v3111 = vpop.permute.xlu0 %3110
    %s3113 = sor.u32 256, 8
    %3114 = vbcast.lane.b32.xlu0 %v3108, %s3113
    %v3115 = vpop.permute.xlu0 %3114
    %s3117 = sor.u32 256, 16
    %3118 = vbcast.lane.b32.xlu0 %v3108, %s3117
    %v3119 = vpop.permute.xlu0 %3118
    %v3120 = vlaneseq
    %v3121 = vshrl.u32 %v3120, 7
    %v3122 = vsub.s32 5, %v3121
    %v3123 = vrot.slane %v1244, %v3122
    %3125 = vbcast.lane.b32.xlu0 %v3123, 256
    %v3126 = vpop.permute.xlu0 %3125
    %s3128 = sor.u32 256, 8
    %3129 = vbcast.lane.b32.xlu0 %v3123, %s3128
    %v3130 = vpop.permute.xlu0 %3129
    %s3132 = sor.u32 256, 16
    %3133 = vbcast.lane.b32.xlu0 %v3123, %s3132
    %v3134 = vpop.permute.xlu0 %3133
    %v3135 = vlaneseq
    %v3136 = vshrl.u32 %v3135, 7
    %v3137 = vsub.s32 6, %v3136
    %v3138 = vrot.slane %v1244, %v3137
    %3140 = vbcast.lane.b32.xlu0 %v3138, 256
    %v3141 = vpop.permute.xlu0 %3140
    %s3143 = sor.u32 256, 8
    %3144 = vbcast.lane.b32.xlu0 %v3138, %s3143
    %v3145 = vpop.permute.xlu0 %3144
    %s3147 = sor.u32 256, 16
    %3148 = vbcast.lane.b32.xlu0 %v3138, %s3147
    %v3149 = vpop.permute.xlu0 %3148
    %v3150 = vlaneseq
    %v3151 = vshrl.u32 %v3150, 7
    %v3152 = vsub.s32 7, %v3151
    %v3153 = vrot.slane %v1244, %v3152
    %3155 = vbcast.lane.b32.xlu0 %v3153, 256
    %v3156 = vpop.permute.xlu0 %3155
    %s3158 = sor.u32 256, 8
    %3159 = vbcast.lane.b32.xlu0 %v3153, %s3158
    %v3160 = vpop.permute.xlu0 %3159
    %s3162 = sor.u32 256, 16
    %3163 = vbcast.lane.b32.xlu0 %v3153, %s3162
    %v3164 = vpop.permute.xlu0 %3163
    %v3165 = vmul.f32 %v845, %v1251
    %v3166 = vmul.f32 %v846, %v1255
    %v3167 = vmul.f32 %v847, %v1259
    %v3168 = vmul.f32 %v848, %v1266
    %v3169 = vmul.f32 %v849, %v1270
    %v3170 = vmul.f32 %v850, %v1274
    %v3171 = vmul.f32 %v851, %v1281
    %v3172 = vmul.f32 %v852, %v1285
    %v3173 = vmul.f32 %v853, %v1289
    %v3174 = vmul.f32 %v854, %v1296
    %v3175 = vmul.f32 %v855, %v1300
    %v3176 = vmul.f32 %v856, %v1304
    %v3177 = vmul.f32 %v857, %v1311
    %v3178 = vmul.f32 %v858, %v1315
    %v3179 = vmul.f32 %v859, %v1319
    %v3180 = vmul.f32 %v860, %v1326
    %v3181 = vmul.f32 %v861, %v1330
    %v3182 = vmul.f32 %v862, %v1334
    %v3183 = vmul.f32 %v863, %v1341
    %v3184 = vmul.f32 %v864, %v1345
    %v3185 = vmul.f32 %v865, %v1349
    %v3186 = vmul.f32 %v866, %v1356
    %v3187 = vmul.f32 %v867, %v1360
    %v3188 = vmul.f32 %v868, %v1364
    %v3189 = vmul.f32 %v869, %v1371
    %v3190 = vmul.f32 %v870, %v1375
    %v3191 = vmul.f32 %v871, %v1379
    %v3192 = vmul.f32 %v872, %v1386
    %v3193 = vmul.f32 %v873, %v1390
    %v3194 = vmul.f32 %v874, %v1394
    %v3195 = vmul.f32 %v875, %v1401
    %v3196 = vmul.f32 %v876, %v1405
    %v3197 = vmul.f32 %v877, %v1409
    %v3198 = vmul.f32 %v878, %v1416
    %v3199 = vmul.f32 %v879, %v1420
    %v3200 = vmul.f32 %v880, %v1424
    %v3201 = vmul.f32 %v881, %v1431
    %v3202 = vmul.f32 %v882, %v1435
    %v3203 = vmul.f32 %v883, %v1439
    %v3204 = vmul.f32 %v884, %v1446
    %v3205 = vmul.f32 %v885, %v1450
    %v3206 = vmul.f32 %v886, %v1454
    %v3207 = vmul.f32 %v887, %v1461
    %v3208 = vmul.f32 %v888, %v1465
    %v3209 = vmul.f32 %v889, %v1469
    %v3210 = vmul.f32 %v890, %v1476
    %v3211 = vmul.f32 %v891, %v1480
    %v3212 = vmul.f32 %v892, %v1484
    %v3213 = vmul.f32 %v893, %v1491
    %v3214 = vmul.f32 %v894, %v1495
    %v3215 = vmul.f32 %v895, %v1499
    %v3216 = vmul.f32 %v896, %v1506
    %v3217 = vmul.f32 %v897, %v1510
    %v3218 = vmul.f32 %v898, %v1514
    %v3219 = vmul.f32 %v899, %v1521
    %v3220 = vmul.f32 %v900, %v1525
    %v3221 = vmul.f32 %v901, %v1529
    %v3222 = vmul.f32 %v902, %v1536
    %v3223 = vmul.f32 %v903, %v1540
    %v3224 = vmul.f32 %v904, %v1544
    %v3225 = vmul.f32 %v905, %v1551
    %v3226 = vmul.f32 %v906, %v1555
    %v3227 = vmul.f32 %v907, %v1559
    %v3228 = vmul.f32 %v908, %v1566
    %v3229 = vmul.f32 %v909, %v1570
    %v3230 = vmul.f32 %v910, %v1574
    %v3231 = vmul.f32 %v911, %v1581
    %v3232 = vmul.f32 %v912, %v1585
    %v3233 = vmul.f32 %v913, %v1589
    %v3234 = vmul.f32 %v914, %v1596
    %v3235 = vmul.f32 %v915, %v1600
    %v3236 = vmul.f32 %v916, %v1604
    %v3237 = vmul.f32 %v917, %v1611
    %v3238 = vmul.f32 %v918, %v1615
    %v3239 = vmul.f32 %v919, %v1619
    %v3240 = vmul.f32 %v920, %v1626
    %v3241 = vmul.f32 %v921, %v1630
    %v3242 = vmul.f32 %v922, %v1634
    %v3243 = vmul.f32 %v923, %v1641
    %v3244 = vmul.f32 %v924, %v1645
    %v3245 = vmul.f32 %v925, %v1649
    %v3246 = vmul.f32 %v926, %v1656
    %v3247 = vmul.f32 %v927, %v1660
    %v3248 = vmul.f32 %v928, %v1664
    %v3249 = vmul.f32 %v929, %v1671
    %v3250 = vmul.f32 %v930, %v1675
    %v3251 = vmul.f32 %v931, %v1679
    %v3252 = vmul.f32 %v932, %v1686
    %v3253 = vmul.f32 %v933, %v1690
    %v3254 = vmul.f32 %v934, %v1694
    %v3255 = vmul.f32 %v935, %v1701
    %v3256 = vmul.f32 %v936, %v1705
    %v3257 = vmul.f32 %v937, %v1709
    %v3258 = vmul.f32 %v938, %v1716
    %v3259 = vmul.f32 %v939, %v1720
    %v3260 = vmul.f32 %v940, %v1724
    %v3261 = vmul.f32 %v941, %v1731
    %v3262 = vmul.f32 %v942, %v1735
    %v3263 = vmul.f32 %v943, %v1739
    %v3264 = vmul.f32 %v944, %v1746
    %v3265 = vmul.f32 %v945, %v1750
    %v3266 = vmul.f32 %v946, %v1754
    %v3267 = vmul.f32 %v947, %v1761
    %v3268 = vmul.f32 %v948, %v1765
    %v3269 = vmul.f32 %v949, %v1769
    %v3270 = vmul.f32 %v950, %v1776
    %v3271 = vmul.f32 %v951, %v1780
    %v3272 = vmul.f32 %v952, %v1784
    %v3273 = vmul.f32 %v953, %v1791
    %v3274 = vmul.f32 %v954, %v1795
    %v3275 = vmul.f32 %v955, %v1799
    %v3276 = vmul.f32 %v956, %v1806
    %v3277 = vmul.f32 %v957, %v1810
    %v3278 = vmul.f32 %v958, %v1814
    %v3279 = vmul.f32 %v959, %v1821
    %v3280 = vmul.f32 %v960, %v1825
    %v3281 = vmul.f32 %v961, %v1829
    %v3282 = vmul.f32 %v962, %v1836
    %v3283 = vmul.f32 %v963, %v1840
    %v3284 = vmul.f32 %v964, %v1844
    %v3285 = vmul.f32 %v965, %v1851
    %v3286 = vmul.f32 %v966, %v1855
    %v3287 = vmul.f32 %v967, %v1859
    %v3288 = vmul.f32 %v968, %v1866
    %v3289 = vmul.f32 %v969, %v1870
    %v3290 = vmul.f32 %v970, %v1874
    %v3291 = vmul.f32 %v971, %v1881
    %v3292 = vmul.f32 %v972, %v1885
    %v3293 = vmul.f32 %v973, %v1889
    %v3294 = vmul.f32 %v974, %v1896
    %v3295 = vmul.f32 %v975, %v1900
    %v3296 = vmul.f32 %v976, %v1904
    %v3297 = vmul.f32 %v977, %v1911
    %v3298 = vmul.f32 %v978, %v1915
    %v3299 = vmul.f32 %v979, %v1919
    %v3300 = vmul.f32 %v980, %v1926
    %v3301 = vmul.f32 %v981, %v1930
    %v3302 = vmul.f32 %v982, %v1934
    %v3303 = vmul.f32 %v983, %v1941
    %v3304 = vmul.f32 %v984, %v1945
    %v3305 = vmul.f32 %v985, %v1949
    %v3306 = vmul.f32 %v986, %v1956
    %v3307 = vmul.f32 %v987, %v1960
    %v3308 = vmul.f32 %v988, %v1964
    %v3309 = vmul.f32 %v989, %v1971
    %v3310 = vmul.f32 %v990, %v1975
    %v3311 = vmul.f32 %v991, %v1979
    %v3312 = vmul.f32 %v992, %v1986
    %v3313 = vmul.f32 %v993, %v1990
    %v3314 = vmul.f32 %v994, %v1994
    %v3315 = vmul.f32 %v995, %v2001
    %v3316 = vmul.f32 %v996, %v2005
    %v3317 = vmul.f32 %v997, %v2009
    %v3318 = vmul.f32 %v998, %v2016
    %v3319 = vmul.f32 %v999, %v2020
    %v3320 = vmul.f32 %v1000, %v2024
    %v3321 = vmul.f32 %v1001, %v2031
    %v3322 = vmul.f32 %v1002, %v2035
    %v3323 = vmul.f32 %v1003, %v2039
    %v3324 = vmul.f32 %v1004, %v2046
    %v3325 = vmul.f32 %v1005, %v2050
    %v3326 = vmul.f32 %v1006, %v2054
    %v3327 = vmul.f32 %v1007, %v2061
    %v3328 = vmul.f32 %v1008, %v2065
    %v3329 = vmul.f32 %v1009, %v2069
    %v3330 = vmul.f32 %v1010, %v2076
    %v3331 = vmul.f32 %v1011, %v2080
    %v3332 = vmul.f32 %v1012, %v2084
    %v3333 = vmul.f32 %v1013, %v2091
    %v3334 = vmul.f32 %v1014, %v2095
    %v3335 = vmul.f32 %v1015, %v2099
    %v3336 = vmul.f32 %v1016, %v2106
    %v3337 = vmul.f32 %v1017, %v2110
    %v3338 = vmul.f32 %v1018, %v2114
    %v3339 = vmul.f32 %v1019, %v2121
    %v3340 = vmul.f32 %v1020, %v2125
    %v3341 = vmul.f32 %v1021, %v2129
    %v3342 = vmul.f32 %v1022, %v2136
    %v3343 = vmul.f32 %v1023, %v2140
    %v3344 = vmul.f32 %v1024, %v2144
    %v3345 = vmul.f32 %v1025, %v2151
    %v3346 = vmul.f32 %v1026, %v2155
    %v3347 = vmul.f32 %v1027, %v2159
    %v3348 = vmul.f32 %v1028, %v2166
    %v3349 = vmul.f32 %v1029, %v2170
    %v3350 = vmul.f32 %v1030, %v2174
    %v3351 = vmul.f32 %v1031, %v2181
    %v3352 = vmul.f32 %v1032, %v2185
    %v3353 = vmul.f32 %v1033, %v2189
    %v3354 = vmul.f32 %v1034, %v2196
    %v3355 = vmul.f32 %v1035, %v2200
    %v3356 = vmul.f32 %v1036, %v2204
    %v3357 = vmul.f32 %v1037, %v2211
    %v3358 = vmul.f32 %v1038, %v2215
    %v3359 = vmul.f32 %v1039, %v2219
    %v3360 = vmul.f32 %v1040, %v2226
    %v3361 = vmul.f32 %v1041, %v2230
    %v3362 = vmul.f32 %v1042, %v2234
    %v3363 = vmul.f32 %v1043, %v2241
    %v3364 = vmul.f32 %v1044, %v2245
    %v3365 = vmul.f32 %v1045, %v2249
    %v3366 = vmul.f32 %v1046, %v2256
    %v3367 = vmul.f32 %v1047, %v2260
    %v3368 = vmul.f32 %v1048, %v2264
    %v3369 = vmul.f32 %v1049, %v2271
    %v3370 = vmul.f32 %v1050, %v2275
    %v3371 = vmul.f32 %v1051, %v2279
    %v3372 = vmul.f32 %v1052, %v2286
    %v3373 = vmul.f32 %v1053, %v2290
    %v3374 = vmul.f32 %v1054, %v2294
    %v3375 = vmul.f32 %v1055, %v2301
    %v3376 = vmul.f32 %v1056, %v2305
    %v3377 = vmul.f32 %v1057, %v2309
    %v3378 = vmul.f32 %v1058, %v2316
    %v3379 = vmul.f32 %v1059, %v2320
    %v3380 = vmul.f32 %v1060, %v2324
    %v3381 = vmul.f32 %v1061, %v2331
    %v3382 = vmul.f32 %v1062, %v2335
    %v3383 = vmul.f32 %v1063, %v2339
    %v3384 = vmul.f32 %v1064, %v2346
    %v3385 = vmul.f32 %v1065, %v2350
    %v3386 = vmul.f32 %v1066, %v2354
    %v3387 = vmul.f32 %v1067, %v2361
    %v3388 = vmul.f32 %v1068, %v2365
    %v3389 = vmul.f32 %v1069, %v2369
    %v3390 = vmul.f32 %v1070, %v2376
    %v3391 = vmul.f32 %v1071, %v2380
    %v3392 = vmul.f32 %v1072, %v2384
    %v3393 = vmul.f32 %v1073, %v2391
    %v3394 = vmul.f32 %v1074, %v2395
    %v3395 = vmul.f32 %v1075, %v2399
    %v3396 = vmul.f32 %v1076, %v2406
    %v3397 = vmul.f32 %v1077, %v2410
    %v3398 = vmul.f32 %v1078, %v2414
    %v3399 = vmul.f32 %v1079, %v2421
    %v3400 = vmul.f32 %v1080, %v2425
    %v3401 = vmul.f32 %v1081, %v2429
    %v3402 = vmul.f32 %v1082, %v2436
    %v3403 = vmul.f32 %v1083, %v2440
    %v3404 = vmul.f32 %v1084, %v2444
    %v3405 = vmul.f32 %v1085, %v2451
    %v3406 = vmul.f32 %v1086, %v2455
    %v3407 = vmul.f32 %v1087, %v2459
    %v3408 = vmul.f32 %v1088, %v2466
    %v3409 = vmul.f32 %v1089, %v2470
    %v3410 = vmul.f32 %v1090, %v2474
    %v3411 = vmul.f32 %v1091, %v2481
    %v3412 = vmul.f32 %v1092, %v2485
    %v3413 = vmul.f32 %v1093, %v2489
    %v3414 = vmul.f32 %v1094, %v2496
    %v3415 = vmul.f32 %v1095, %v2500
    %v3416 = vmul.f32 %v1096, %v2504
    %v3417 = vmul.f32 %v1097, %v2511
    %v3418 = vmul.f32 %v1098, %v2515
    %v3419 = vmul.f32 %v1099, %v2519
    %v3420 = vmul.f32 %v1100, %v2526
    %v3421 = vmul.f32 %v1101, %v2530
    %v3422 = vmul.f32 %v1102, %v2534
    %v3423 = vmul.f32 %v1103, %v2541
    %v3424 = vmul.f32 %v1104, %v2545
    %v3425 = vmul.f32 %v1105, %v2549
    %v3426 = vmul.f32 %v1106, %v2556
    %v3427 = vmul.f32 %v1107, %v2560
    %v3428 = vmul.f32 %v1108, %v2564
    %v3429 = vmul.f32 %v1109, %v2571
    %v3430 = vmul.f32 %v1110, %v2575
    %v3431 = vmul.f32 %v1111, %v2579
    %v3432 = vmul.f32 %v1112, %v2586
    %v3433 = vmul.f32 %v1113, %v2590
    %v3434 = vmul.f32 %v1114, %v2594
    %v3435 = vmul.f32 %v1115, %v2601
    %v3436 = vmul.f32 %v1116, %v2605
    %v3437 = vmul.f32 %v1117, %v2609
    %v3438 = vmul.f32 %v1118, %v2616
    %v3439 = vmul.f32 %v1119, %v2620
    %v3440 = vmul.f32 %v1120, %v2624
    %v3441 = vmul.f32 %v1121, %v2631
    %v3442 = vmul.f32 %v1122, %v2635
    %v3443 = vmul.f32 %v1123, %v2639
    %v3444 = vmul.f32 %v1124, %v2646
    %v3445 = vmul.f32 %v1125, %v2650
    %v3446 = vmul.f32 %v1126, %v2654
    %v3447 = vmul.f32 %v1127, %v2661
    %v3448 = vmul.f32 %v1128, %v2665
    %v3449 = vmul.f32 %v1129, %v2669
    %v3450 = vmul.f32 %v1130, %v2676
    %v3451 = vmul.f32 %v1131, %v2680
    %v3452 = vmul.f32 %v1132, %v2684
    %v3453 = vmul.f32 %v1133, %v2691
    %v3454 = vmul.f32 %v1134, %v2695
    %v3455 = vmul.f32 %v1135, %v2699
    %v3456 = vmul.f32 %v1136, %v2706
    %v3457 = vmul.f32 %v1137, %v2710
    %v3458 = vmul.f32 %v1138, %v2714
    %v3459 = vmul.f32 %v1139, %v2721
    %v3460 = vmul.f32 %v1140, %v2725
    %v3461 = vmul.f32 %v1141, %v2729
    %v3462 = vmul.f32 %v1142, %v2736
    %v3463 = vmul.f32 %v1143, %v2740
    %v3464 = vmul.f32 %v1144, %v2744
    %v3465 = vmul.f32 %v1145, %v2751
    %v3466 = vmul.f32 %v1146, %v2755
    %v3467 = vmul.f32 %v1147, %v2759
    %v3468 = vmul.f32 %v1148, %v2766
    %v3469 = vmul.f32 %v1149, %v2770
    %v3470 = vmul.f32 %v1150, %v2774
    %v3471 = vmul.f32 %v1151, %v2781
    %v3472 = vmul.f32 %v1152, %v2785
    %v3473 = vmul.f32 %v1153, %v2789
    %v3474 = vmul.f32 %v1154, %v2796
    %v3475 = vmul.f32 %v1155, %v2800
    %v3476 = vmul.f32 %v1156, %v2804
    %v3477 = vmul.f32 %v1157, %v2811
    %v3478 = vmul.f32 %v1158, %v2815
    %v3479 = vmul.f32 %v1159, %v2819
    %v3480 = vmul.f32 %v1160, %v2826
    %v3481 = vmul.f32 %v1161, %v2830
    %v3482 = vmul.f32 %v1162, %v2834
    %v3483 = vmul.f32 %v1163, %v2841
    %v3484 = vmul.f32 %v1164, %v2845
    %v3485 = vmul.f32 %v1165, %v2849
    %v3486 = vmul.f32 %v1166, %v2856
    %v3487 = vmul.f32 %v1167, %v2860
    %v3488 = vmul.f32 %v1168, %v2864
    %v3489 = vmul.f32 %v1169, %v2871
    %v3490 = vmul.f32 %v1170, %v2875
    %v3491 = vmul.f32 %v1171, %v2879
    %v3492 = vmul.f32 %v1172, %v2886
    %v3493 = vmul.f32 %v1173, %v2890
    %v3494 = vmul.f32 %v1174, %v2894
    %v3495 = vmul.f32 %v1175, %v2901
    %v3496 = vmul.f32 %v1176, %v2905
    %v3497 = vmul.f32 %v1177, %v2909
    %v3498 = vmul.f32 %v1178, %v2916
    %v3499 = vmul.f32 %v1179, %v2920
    %v3500 = vmul.f32 %v1180, %v2924
    %v3501 = vmul.f32 %v1181, %v2931
    %v3502 = vmul.f32 %v1182, %v2935
    %v3503 = vmul.f32 %v1183, %v2939
    %v3504 = vmul.f32 %v1184, %v2946
    %v3505 = vmul.f32 %v1185, %v2950
    %v3506 = vmul.f32 %v1186, %v2954
    %v3507 = vmul.f32 %v1187, %v2961
    %v3508 = vmul.f32 %v1188, %v2965
    %v3509 = vmul.f32 %v1189, %v2969
    %v3510 = vmul.f32 %v1190, %v2976
    %v3511 = vmul.f32 %v1191, %v2980
    %v3512 = vmul.f32 %v1192, %v2984
    %v3513 = vmul.f32 %v1193, %v2991
    %v3514 = vmul.f32 %v1194, %v2995
    %v3515 = vmul.f32 %v1195, %v2999
    %v3516 = vmul.f32 %v1196, %v3006
    %v3517 = vmul.f32 %v1197, %v3010
    %v3518 = vmul.f32 %v1198, %v3014
    %v3519 = vmul.f32 %v1199, %v3021
    %v3520 = vmul.f32 %v1200, %v3025
    %v3521 = vmul.f32 %v1201, %v3029
    %v3522 = vmul.f32 %v1202, %v3036
    %v3523 = vmul.f32 %v1203, %v3040
    %v3524 = vmul.f32 %v1204, %v3044
    %v3525 = vmul.f32 %v1205, %v3051
    %v3526 = vmul.f32 %v1206, %v3055
    %v3527 = vmul.f32 %v1207, %v3059
    %v3528 = vmul.f32 %v1208, %v3066
    %v3529 = vmul.f32 %v1209, %v3070
    %v3530 = vmul.f32 %v1210, %v3074
    %v3531 = vmul.f32 %v1211, %v3081
    %v3532 = vmul.f32 %v1212, %v3085
    %v3533 = vmul.f32 %v1213, %v3089
    %v3534 = vmul.f32 %v1214, %v3096
    %v3535 = vmul.f32 %v1215, %v3100
    %v3536 = vmul.f32 %v1216, %v3104
    %v3537 = vmul.f32 %v1217, %v3111
    %v3538 = vmul.f32 %v1218, %v3115
    %v3539 = vmul.f32 %v1219, %v3119
    %v3540 = vmul.f32 %v1220, %v3126
    %v3541 = vmul.f32 %v1221, %v3130
    %v3542 = vmul.f32 %v1222, %v3134
    %v3543 = vmul.f32 %v1223, %v3141
    %v3544 = vmul.f32 %v1224, %v3145
    %v3545 = vmul.f32 %v1225, %v3149
    %v3546 = vmul.f32 %v1226, %v3156
    %v3547 = vmul.f32 %v1227, %v3160
    %v3548 = vmul.f32 %v1228, %v3164
    %v3549 = vadd.f32 %v3165, %v3166
    %v3550 = vadd.f32 %v3549, %v3167
    %v3551 = vrot.slane %v3550, 4
    %v3552 = vadd.f32 %v3550, %v3551
    %v3553 = vrot.slane %v3552, 2
    %v3554 = vadd.f32 %v3552, %v3553
    %v3555 = vrot.slane %v3554, 1
    %v3556 = vadd.f32 %v3554, %v3555
    %v3557 = vadd.f32 %v3168, %v3169
    %v3558 = vadd.f32 %v3557, %v3170
    %v3559 = vrot.slane %v3558, 4
    %v3560 = vadd.f32 %v3558, %v3559
    %v3561 = vrot.slane %v3560, 2
    %v3562 = vadd.f32 %v3560, %v3561
    %v3563 = vrot.slane %v3562, 1
    %v3564 = vadd.f32 %v3562, %v3563
    %v3565 = vadd.f32 %v3171, %v3172
    %v3566 = vadd.f32 %v3565, %v3173
    %v3567 = vrot.slane %v3566, 4
    %v3568 = vadd.f32 %v3566, %v3567
    %v3569 = vrot.slane %v3568, 2
    %v3570 = vadd.f32 %v3568, %v3569
    %v3571 = vrot.slane %v3570, 1
    %v3572 = vadd.f32 %v3570, %v3571
    %v3573 = vadd.f32 %v3174, %v3175
    %v3574 = vadd.f32 %v3573, %v3176
    %v3575 = vrot.slane %v3574, 4
    %v3576 = vadd.f32 %v3574, %v3575
    %v3577 = vrot.slane %v3576, 2
    %v3578 = vadd.f32 %v3576, %v3577
    %v3579 = vrot.slane %v3578, 1
    %v3580 = vadd.f32 %v3578, %v3579
    %v3581 = vadd.f32 %v3177, %v3178
    %v3582 = vadd.f32 %v3581, %v3179
    %v3583 = vrot.slane %v3582, 4
    %v3584 = vadd.f32 %v3582, %v3583
    %v3585 = vrot.slane %v3584, 2
    %v3586 = vadd.f32 %v3584, %v3585
    %v3587 = vrot.slane %v3586, 1
    %v3588 = vadd.f32 %v3586, %v3587
    %v3589 = vadd.f32 %v3180, %v3181
    %v3590 = vadd.f32 %v3589, %v3182
    %v3591 = vrot.slane %v3590, 4
    %v3592 = vadd.f32 %v3590, %v3591
    %v3593 = vrot.slane %v3592, 2
    %v3594 = vadd.f32 %v3592, %v3593
    %v3595 = vrot.slane %v3594, 1
    %v3596 = vadd.f32 %v3594, %v3595
    %v3597 = vadd.f32 %v3183, %v3184
    %v3598 = vadd.f32 %v3597, %v3185
    %v3599 = vrot.slane %v3598, 4
    %v3600 = vadd.f32 %v3598, %v3599
    %v3601 = vrot.slane %v3600, 2
    %v3602 = vadd.f32 %v3600, %v3601
    %v3603 = vrot.slane %v3602, 1
    %v3604 = vadd.f32 %v3602, %v3603
    %v3605 = vadd.f32 %v3186, %v3187
    %v3606 = vadd.f32 %v3605, %v3188
    %v3607 = vrot.slane %v3606, 4
    %v3608 = vadd.f32 %v3606, %v3607
    %v3609 = vrot.slane %v3608, 2
    %v3610 = vadd.f32 %v3608, %v3609
    %v3611 = vrot.slane %v3610, 1
    %v3612 = vadd.f32 %v3610, %v3611
    %v3613 = vadd.f32 %v3189, %v3190
    %v3614 = vadd.f32 %v3613, %v3191
    %v3615 = vrot.slane %v3614, 4
    %v3616 = vadd.f32 %v3614, %v3615
    %v3617 = vrot.slane %v3616, 2
    %v3618 = vadd.f32 %v3616, %v3617
    %v3619 = vrot.slane %v3618, 1
    %v3620 = vadd.f32 %v3618, %v3619
    %v3621 = vadd.f32 %v3192, %v3193
    %v3622 = vadd.f32 %v3621, %v3194
    %v3623 = vrot.slane %v3622, 4
    %v3624 = vadd.f32 %v3622, %v3623
    %v3625 = vrot.slane %v3624, 2
    %v3626 = vadd.f32 %v3624, %v3625
    %v3627 = vrot.slane %v3626, 1
    %v3628 = vadd.f32 %v3626, %v3627
    %v3629 = vadd.f32 %v3195, %v3196
    %v3630 = vadd.f32 %v3629, %v3197
    %v3631 = vrot.slane %v3630, 4
    %v3632 = vadd.f32 %v3630, %v3631
    %v3633 = vrot.slane %v3632, 2
    %v3634 = vadd.f32 %v3632, %v3633
    %v3635 = vrot.slane %v3634, 1
    %v3636 = vadd.f32 %v3634, %v3635
    %v3637 = vadd.f32 %v3198, %v3199
    %v3638 = vadd.f32 %v3637, %v3200
    %v3639 = vrot.slane %v3638, 4
    %v3640 = vadd.f32 %v3638, %v3639
    %v3641 = vrot.slane %v3640, 2
    %v3642 = vadd.f32 %v3640, %v3641
    %v3643 = vrot.slane %v3642, 1
    %v3644 = vadd.f32 %v3642, %v3643
    %v3645 = vadd.f32 %v3201, %v3202
    %v3646 = vadd.f32 %v3645, %v3203
    %v3647 = vrot.slane %v3646, 4
    %v3648 = vadd.f32 %v3646, %v3647
    %v3649 = vrot.slane %v3648, 2
    %v3650 = vadd.f32 %v3648, %v3649
    %v3651 = vrot.slane %v3650, 1
    %v3652 = vadd.f32 %v3650, %v3651
    %v3653 = vadd.f32 %v3204, %v3205
    %v3654 = vadd.f32 %v3653, %v3206
    %v3655 = vrot.slane %v3654, 4
    %v3656 = vadd.f32 %v3654, %v3655
    %v3657 = vrot.slane %v3656, 2
    %v3658 = vadd.f32 %v3656, %v3657
    %v3659 = vrot.slane %v3658, 1
    %v3660 = vadd.f32 %v3658, %v3659
    %v3661 = vadd.f32 %v3207, %v3208
    %v3662 = vadd.f32 %v3661, %v3209
    %v3663 = vrot.slane %v3662, 4
    %v3664 = vadd.f32 %v3662, %v3663
    %v3665 = vrot.slane %v3664, 2
    %v3666 = vadd.f32 %v3664, %v3665
    %v3667 = vrot.slane %v3666, 1
    %v3668 = vadd.f32 %v3666, %v3667
    %v3669 = vadd.f32 %v3210, %v3211
    %v3670 = vadd.f32 %v3669, %v3212
    %v3671 = vrot.slane %v3670, 4
    %v3672 = vadd.f32 %v3670, %v3671
    %v3673 = vrot.slane %v3672, 2
    %v3674 = vadd.f32 %v3672, %v3673
    %v3675 = vrot.slane %v3674, 1
    %v3676 = vadd.f32 %v3674, %v3675
    %v3677 = vadd.f32 %v3213, %v3214
    %v3678 = vadd.f32 %v3677, %v3215
    %v3679 = vrot.slane %v3678, 4
    %v3680 = vadd.f32 %v3678, %v3679
    %v3681 = vrot.slane %v3680, 2
    %v3682 = vadd.f32 %v3680, %v3681
    %v3683 = vrot.slane %v3682, 1
    %v3684 = vadd.f32 %v3682, %v3683
    %v3685 = vadd.f32 %v3216, %v3217
    %v3686 = vadd.f32 %v3685, %v3218
    %v3687 = vrot.slane %v3686, 4
    %v3688 = vadd.f32 %v3686, %v3687
    %v3689 = vrot.slane %v3688, 2
    %v3690 = vadd.f32 %v3688, %v3689
    %v3691 = vrot.slane %v3690, 1
    %v3692 = vadd.f32 %v3690, %v3691
    %v3693 = vadd.f32 %v3219, %v3220
    %v3694 = vadd.f32 %v3693, %v3221
    %v3695 = vrot.slane %v3694, 4
    %v3696 = vadd.f32 %v3694, %v3695
    %v3697 = vrot.slane %v3696, 2
    %v3698 = vadd.f32 %v3696, %v3697
    %v3699 = vrot.slane %v3698, 1
    %v3700 = vadd.f32 %v3698, %v3699
    %v3701 = vadd.f32 %v3222, %v3223
    %v3702 = vadd.f32 %v3701, %v3224
    %v3703 = vrot.slane %v3702, 4
    %v3704 = vadd.f32 %v3702, %v3703
    %v3705 = vrot.slane %v3704, 2
    %v3706 = vadd.f32 %v3704, %v3705
    %v3707 = vrot.slane %v3706, 1
    %v3708 = vadd.f32 %v3706, %v3707
    %v3709 = vadd.f32 %v3225, %v3226
    %v3710 = vadd.f32 %v3709, %v3227
    %v3711 = vrot.slane %v3710, 4
    %v3712 = vadd.f32 %v3710, %v3711
    %v3713 = vrot.slane %v3712, 2
    %v3714 = vadd.f32 %v3712, %v3713
    %v3715 = vrot.slane %v3714, 1
    %v3716 = vadd.f32 %v3714, %v3715
    %v3717 = vadd.f32 %v3228, %v3229
    %v3718 = vadd.f32 %v3717, %v3230
    %v3719 = vrot.slane %v3718, 4
    %v3720 = vadd.f32 %v3718, %v3719
    %v3721 = vrot.slane %v3720, 2
    %v3722 = vadd.f32 %v3720, %v3721
    %v3723 = vrot.slane %v3722, 1
    %v3724 = vadd.f32 %v3722, %v3723
    %v3725 = vadd.f32 %v3231, %v3232
    %v3726 = vadd.f32 %v3725, %v3233
    %v3727 = vrot.slane %v3726, 4
    %v3728 = vadd.f32 %v3726, %v3727
    %v3729 = vrot.slane %v3728, 2
    %v3730 = vadd.f32 %v3728, %v3729
    %v3731 = vrot.slane %v3730, 1
    %v3732 = vadd.f32 %v3730, %v3731
    %v3733 = vadd.f32 %v3234, %v3235
    %v3734 = vadd.f32 %v3733, %v3236
    %v3735 = vrot.slane %v3734, 4
    %v3736 = vadd.f32 %v3734, %v3735
    %v3737 = vrot.slane %v3736, 2
    %v3738 = vadd.f32 %v3736, %v3737
    %v3739 = vrot.slane %v3738, 1
    %v3740 = vadd.f32 %v3738, %v3739
    %v3741 = vadd.f32 %v3237, %v3238
    %v3742 = vadd.f32 %v3741, %v3239
    %v3743 = vrot.slane %v3742, 4
    %v3744 = vadd.f32 %v3742, %v3743
    %v3745 = vrot.slane %v3744, 2
    %v3746 = vadd.f32 %v3744, %v3745
    %v3747 = vrot.slane %v3746, 1
    %v3748 = vadd.f32 %v3746, %v3747
    %v3749 = vadd.f32 %v3240, %v3241
    %v3750 = vadd.f32 %v3749, %v3242
    %v3751 = vrot.slane %v3750, 4
    %v3752 = vadd.f32 %v3750, %v3751
    %v3753 = vrot.slane %v3752, 2
    %v3754 = vadd.f32 %v3752, %v3753
    %v3755 = vrot.slane %v3754, 1
    %v3756 = vadd.f32 %v3754, %v3755
    %v3757 = vadd.f32 %v3243, %v3244
    %v3758 = vadd.f32 %v3757, %v3245
    %v3759 = vrot.slane %v3758, 4
    %v3760 = vadd.f32 %v3758, %v3759
    %v3761 = vrot.slane %v3760, 2
    %v3762 = vadd.f32 %v3760, %v3761
    %v3763 = vrot.slane %v3762, 1
    %v3764 = vadd.f32 %v3762, %v3763
    %v3765 = vadd.f32 %v3246, %v3247
    %v3766 = vadd.f32 %v3765, %v3248
    %v3767 = vrot.slane %v3766, 4
    %v3768 = vadd.f32 %v3766, %v3767
    %v3769 = vrot.slane %v3768, 2
    %v3770 = vadd.f32 %v3768, %v3769
    %v3771 = vrot.slane %v3770, 1
    %v3772 = vadd.f32 %v3770, %v3771
    %v3773 = vadd.f32 %v3249, %v3250
    %v3774 = vadd.f32 %v3773, %v3251
    %v3775 = vrot.slane %v3774, 4
    %v3776 = vadd.f32 %v3774, %v3775
    %v3777 = vrot.slane %v3776, 2
    %v3778 = vadd.f32 %v3776, %v3777
    %v3779 = vrot.slane %v3778, 1
    %v3780 = vadd.f32 %v3778, %v3779
    %v3781 = vadd.f32 %v3252, %v3253
    %v3782 = vadd.f32 %v3781, %v3254
    %v3783 = vrot.slane %v3782, 4
    %v3784 = vadd.f32 %v3782, %v3783
    %v3785 = vrot.slane %v3784, 2
    %v3786 = vadd.f32 %v3784, %v3785
    %v3787 = vrot.slane %v3786, 1
    %v3788 = vadd.f32 %v3786, %v3787
    %v3789 = vadd.f32 %v3255, %v3256
    %v3790 = vadd.f32 %v3789, %v3257
    %v3791 = vrot.slane %v3790, 4
    %v3792 = vadd.f32 %v3790, %v3791
    %v3793 = vrot.slane %v3792, 2
    %v3794 = vadd.f32 %v3792, %v3793
    %v3795 = vrot.slane %v3794, 1
    %v3796 = vadd.f32 %v3794, %v3795
    %v3797 = vadd.f32 %v3258, %v3259
    %v3798 = vadd.f32 %v3797, %v3260
    %v3799 = vrot.slane %v3798, 4
    %v3800 = vadd.f32 %v3798, %v3799
    %v3801 = vrot.slane %v3800, 2
    %v3802 = vadd.f32 %v3800, %v3801
    %v3803 = vrot.slane %v3802, 1
    %v3804 = vadd.f32 %v3802, %v3803
    %v3805 = vadd.f32 %v3261, %v3262
    %v3806 = vadd.f32 %v3805, %v3263
    %v3807 = vrot.slane %v3806, 4
    %v3808 = vadd.f32 %v3806, %v3807
    %v3809 = vrot.slane %v3808, 2
    %v3810 = vadd.f32 %v3808, %v3809
    %v3811 = vrot.slane %v3810, 1
    %v3812 = vadd.f32 %v3810, %v3811
    %v3813 = vadd.f32 %v3264, %v3265
    %v3814 = vadd.f32 %v3813, %v3266
    %v3815 = vrot.slane %v3814, 4
    %v3816 = vadd.f32 %v3814, %v3815
    %v3817 = vrot.slane %v3816, 2
    %v3818 = vadd.f32 %v3816, %v3817
    %v3819 = vrot.slane %v3818, 1
    %v3820 = vadd.f32 %v3818, %v3819
    %v3821 = vadd.f32 %v3267, %v3268
    %v3822 = vadd.f32 %v3821, %v3269
    %v3823 = vrot.slane %v3822, 4
    %v3824 = vadd.f32 %v3822, %v3823
    %v3825 = vrot.slane %v3824, 2
    %v3826 = vadd.f32 %v3824, %v3825
    %v3827 = vrot.slane %v3826, 1
    %v3828 = vadd.f32 %v3826, %v3827
    %v3829 = vadd.f32 %v3270, %v3271
    %v3830 = vadd.f32 %v3829, %v3272
    %v3831 = vrot.slane %v3830, 4
    %v3832 = vadd.f32 %v3830, %v3831
    %v3833 = vrot.slane %v3832, 2
    %v3834 = vadd.f32 %v3832, %v3833
    %v3835 = vrot.slane %v3834, 1
    %v3836 = vadd.f32 %v3834, %v3835
    %v3837 = vadd.f32 %v3273, %v3274
    %v3838 = vadd.f32 %v3837, %v3275
    %v3839 = vrot.slane %v3838, 4
    %v3840 = vadd.f32 %v3838, %v3839
    %v3841 = vrot.slane %v3840, 2
    %v3842 = vadd.f32 %v3840, %v3841
    %v3843 = vrot.slane %v3842, 1
    %v3844 = vadd.f32 %v3842, %v3843
    %v3845 = vadd.f32 %v3276, %v3277
    %v3846 = vadd.f32 %v3845, %v3278
    %v3847 = vrot.slane %v3846, 4
    %v3848 = vadd.f32 %v3846, %v3847
    %v3849 = vrot.slane %v3848, 2
    %v3850 = vadd.f32 %v3848, %v3849
    %v3851 = vrot.slane %v3850, 1
    %v3852 = vadd.f32 %v3850, %v3851
    %v3853 = vadd.f32 %v3279, %v3280
    %v3854 = vadd.f32 %v3853, %v3281
    %v3855 = vrot.slane %v3854, 4
    %v3856 = vadd.f32 %v3854, %v3855
    %v3857 = vrot.slane %v3856, 2
    %v3858 = vadd.f32 %v3856, %v3857
    %v3859 = vrot.slane %v3858, 1
    %v3860 = vadd.f32 %v3858, %v3859
    %v3861 = vadd.f32 %v3282, %v3283
    %v3862 = vadd.f32 %v3861, %v3284
    %v3863 = vrot.slane %v3862, 4
    %v3864 = vadd.f32 %v3862, %v3863
    %v3865 = vrot.slane %v3864, 2
    %v3866 = vadd.f32 %v3864, %v3865
    %v3867 = vrot.slane %v3866, 1
    %v3868 = vadd.f32 %v3866, %v3867
    %v3869 = vadd.f32 %v3285, %v3286
    %v3870 = vadd.f32 %v3869, %v3287
    %v3871 = vrot.slane %v3870, 4
    %v3872 = vadd.f32 %v3870, %v3871
    %v3873 = vrot.slane %v3872, 2
    %v3874 = vadd.f32 %v3872, %v3873
    %v3875 = vrot.slane %v3874, 1
    %v3876 = vadd.f32 %v3874, %v3875
    %v3877 = vadd.f32 %v3288, %v3289
    %v3878 = vadd.f32 %v3877, %v3290
    %v3879 = vrot.slane %v3878, 4
    %v3880 = vadd.f32 %v3878, %v3879
    %v3881 = vrot.slane %v3880, 2
    %v3882 = vadd.f32 %v3880, %v3881
    %v3883 = vrot.slane %v3882, 1
    %v3884 = vadd.f32 %v3882, %v3883
    %v3885 = vadd.f32 %v3291, %v3292
    %v3886 = vadd.f32 %v3885, %v3293
    %v3887 = vrot.slane %v3886, 4
    %v3888 = vadd.f32 %v3886, %v3887
    %v3889 = vrot.slane %v3888, 2
    %v3890 = vadd.f32 %v3888, %v3889
    %v3891 = vrot.slane %v3890, 1
    %v3892 = vadd.f32 %v3890, %v3891
    %v3893 = vadd.f32 %v3294, %v3295
    %v3894 = vadd.f32 %v3893, %v3296
    %v3895 = vrot.slane %v3894, 4
    %v3896 = vadd.f32 %v3894, %v3895
    %v3897 = vrot.slane %v3896, 2
    %v3898 = vadd.f32 %v3896, %v3897
    %v3899 = vrot.slane %v3898, 1
    %v3900 = vadd.f32 %v3898, %v3899
    %v3901 = vadd.f32 %v3297, %v3298
    %v3902 = vadd.f32 %v3901, %v3299
    %v3903 = vrot.slane %v3902, 4
    %v3904 = vadd.f32 %v3902, %v3903
    %v3905 = vrot.slane %v3904, 2
    %v3906 = vadd.f32 %v3904, %v3905
    %v3907 = vrot.slane %v3906, 1
    %v3908 = vadd.f32 %v3906, %v3907
    %v3909 = vadd.f32 %v3300, %v3301
    %v3910 = vadd.f32 %v3909, %v3302
    %v3911 = vrot.slane %v3910, 4
    %v3912 = vadd.f32 %v3910, %v3911
    %v3913 = vrot.slane %v3912, 2
    %v3914 = vadd.f32 %v3912, %v3913
    %v3915 = vrot.slane %v3914, 1
    %v3916 = vadd.f32 %v3914, %v3915
    %v3917 = vadd.f32 %v3303, %v3304
    %v3918 = vadd.f32 %v3917, %v3305
    %v3919 = vrot.slane %v3918, 4
    %v3920 = vadd.f32 %v3918, %v3919
    %v3921 = vrot.slane %v3920, 2
    %v3922 = vadd.f32 %v3920, %v3921
    %v3923 = vrot.slane %v3922, 1
    %v3924 = vadd.f32 %v3922, %v3923
    %v3925 = vadd.f32 %v3306, %v3307
    %v3926 = vadd.f32 %v3925, %v3308
    %v3927 = vrot.slane %v3926, 4
    %v3928 = vadd.f32 %v3926, %v3927
    %v3929 = vrot.slane %v3928, 2
    %v3930 = vadd.f32 %v3928, %v3929
    %v3931 = vrot.slane %v3930, 1
    %v3932 = vadd.f32 %v3930, %v3931
    %v3933 = vadd.f32 %v3309, %v3310
    %v3934 = vadd.f32 %v3933, %v3311
    %v3935 = vrot.slane %v3934, 4
    %v3936 = vadd.f32 %v3934, %v3935
    %v3937 = vrot.slane %v3936, 2
    %v3938 = vadd.f32 %v3936, %v3937
    %v3939 = vrot.slane %v3938, 1
    %v3940 = vadd.f32 %v3938, %v3939
    %v3941 = vadd.f32 %v3312, %v3313
    %v3942 = vadd.f32 %v3941, %v3314
    %v3943 = vrot.slane %v3942, 4
    %v3944 = vadd.f32 %v3942, %v3943
    %v3945 = vrot.slane %v3944, 2
    %v3946 = vadd.f32 %v3944, %v3945
    %v3947 = vrot.slane %v3946, 1
    %v3948 = vadd.f32 %v3946, %v3947
    %v3949 = vadd.f32 %v3315, %v3316
    %v3950 = vadd.f32 %v3949, %v3317
    %v3951 = vrot.slane %v3950, 4
    %v3952 = vadd.f32 %v3950, %v3951
    %v3953 = vrot.slane %v3952, 2
    %v3954 = vadd.f32 %v3952, %v3953
    %v3955 = vrot.slane %v3954, 1
    %v3956 = vadd.f32 %v3954, %v3955
    %v3957 = vadd.f32 %v3318, %v3319
    %v3958 = vadd.f32 %v3957, %v3320
    %v3959 = vrot.slane %v3958, 4
    %v3960 = vadd.f32 %v3958, %v3959
    %v3961 = vrot.slane %v3960, 2
    %v3962 = vadd.f32 %v3960, %v3961
    %v3963 = vrot.slane %v3962, 1
    %v3964 = vadd.f32 %v3962, %v3963
    %v3965 = vadd.f32 %v3321, %v3322
    %v3966 = vadd.f32 %v3965, %v3323
    %v3967 = vrot.slane %v3966, 4
    %v3968 = vadd.f32 %v3966, %v3967
    %v3969 = vrot.slane %v3968, 2
    %v3970 = vadd.f32 %v3968, %v3969
    %v3971 = vrot.slane %v3970, 1
    %v3972 = vadd.f32 %v3970, %v3971
    %v3973 = vadd.f32 %v3324, %v3325
    %v3974 = vadd.f32 %v3973, %v3326
    %v3975 = vrot.slane %v3974, 4
    %v3976 = vadd.f32 %v3974, %v3975
    %v3977 = vrot.slane %v3976, 2
    %v3978 = vadd.f32 %v3976, %v3977
    %v3979 = vrot.slane %v3978, 1
    %v3980 = vadd.f32 %v3978, %v3979
    %v3981 = vadd.f32 %v3327, %v3328
    %v3982 = vadd.f32 %v3981, %v3329
    %v3983 = vrot.slane %v3982, 4
    %v3984 = vadd.f32 %v3982, %v3983
    %v3985 = vrot.slane %v3984, 2
    %v3986 = vadd.f32 %v3984, %v3985
    %v3987 = vrot.slane %v3986, 1
    %v3988 = vadd.f32 %v3986, %v3987
    %v3989 = vadd.f32 %v3330, %v3331
    %v3990 = vadd.f32 %v3989, %v3332
    %v3991 = vrot.slane %v3990, 4
    %v3992 = vadd.f32 %v3990, %v3991
    %v3993 = vrot.slane %v3992, 2
    %v3994 = vadd.f32 %v3992, %v3993
    %v3995 = vrot.slane %v3994, 1
    %v3996 = vadd.f32 %v3994, %v3995
    %v3997 = vadd.f32 %v3333, %v3334
    %v3998 = vadd.f32 %v3997, %v3335
    %v3999 = vrot.slane %v3998, 4
    %v4000 = vadd.f32 %v3998, %v3999
    %v4001 = vrot.slane %v4000, 2
    %v4002 = vadd.f32 %v4000, %v4001
    %v4003 = vrot.slane %v4002, 1
    %v4004 = vadd.f32 %v4002, %v4003
    %v4005 = vadd.f32 %v3336, %v3337
    %v4006 = vadd.f32 %v4005, %v3338
    %v4007 = vrot.slane %v4006, 4
    %v4008 = vadd.f32 %v4006, %v4007
    %v4009 = vrot.slane %v4008, 2
    %v4010 = vadd.f32 %v4008, %v4009
    %v4011 = vrot.slane %v4010, 1
    %v4012 = vadd.f32 %v4010, %v4011
    %v4013 = vadd.f32 %v3339, %v3340
    %v4014 = vadd.f32 %v4013, %v3341
    %v4015 = vrot.slane %v4014, 4
    %v4016 = vadd.f32 %v4014, %v4015
    %v4017 = vrot.slane %v4016, 2
    %v4018 = vadd.f32 %v4016, %v4017
    %v4019 = vrot.slane %v4018, 1
    %v4020 = vadd.f32 %v4018, %v4019
    %v4021 = vadd.f32 %v3342, %v3343
    %v4022 = vadd.f32 %v4021, %v3344
    %v4023 = vrot.slane %v4022, 4
    %v4024 = vadd.f32 %v4022, %v4023
    %v4025 = vrot.slane %v4024, 2
    %v4026 = vadd.f32 %v4024, %v4025
    %v4027 = vrot.slane %v4026, 1
    %v4028 = vadd.f32 %v4026, %v4027
    %v4029 = vadd.f32 %v3345, %v3346
    %v4030 = vadd.f32 %v4029, %v3347
    %v4031 = vrot.slane %v4030, 4
    %v4032 = vadd.f32 %v4030, %v4031
    %v4033 = vrot.slane %v4032, 2
    %v4034 = vadd.f32 %v4032, %v4033
    %v4035 = vrot.slane %v4034, 1
    %v4036 = vadd.f32 %v4034, %v4035
    %v4037 = vadd.f32 %v3348, %v3349
    %v4038 = vadd.f32 %v4037, %v3350
    %v4039 = vrot.slane %v4038, 4
    %v4040 = vadd.f32 %v4038, %v4039
    %v4041 = vrot.slane %v4040, 2
    %v4042 = vadd.f32 %v4040, %v4041
    %v4043 = vrot.slane %v4042, 1
    %v4044 = vadd.f32 %v4042, %v4043
    %v4045 = vadd.f32 %v3351, %v3352
    %v4046 = vadd.f32 %v4045, %v3353
    %v4047 = vrot.slane %v4046, 4
    %v4048 = vadd.f32 %v4046, %v4047
    %v4049 = vrot.slane %v4048, 2
    %v4050 = vadd.f32 %v4048, %v4049
    %v4051 = vrot.slane %v4050, 1
    %v4052 = vadd.f32 %v4050, %v4051
    %v4053 = vadd.f32 %v3354, %v3355
    %v4054 = vadd.f32 %v4053, %v3356
    %v4055 = vrot.slane %v4054, 4
    %v4056 = vadd.f32 %v4054, %v4055
    %v4057 = vrot.slane %v4056, 2
    %v4058 = vadd.f32 %v4056, %v4057
    %v4059 = vrot.slane %v4058, 1
    %v4060 = vadd.f32 %v4058, %v4059
    %v4061 = vadd.f32 %v3357, %v3358
    %v4062 = vadd.f32 %v4061, %v3359
    %v4063 = vrot.slane %v4062, 4
    %v4064 = vadd.f32 %v4062, %v4063
    %v4065 = vrot.slane %v4064, 2
    %v4066 = vadd.f32 %v4064, %v4065
    %v4067 = vrot.slane %v4066, 1
    %v4068 = vadd.f32 %v4066, %v4067
    %v4069 = vadd.f32 %v3360, %v3361
    %v4070 = vadd.f32 %v4069, %v3362
    %v4071 = vrot.slane %v4070, 4
    %v4072 = vadd.f32 %v4070, %v4071
    %v4073 = vrot.slane %v4072, 2
    %v4074 = vadd.f32 %v4072, %v4073
    %v4075 = vrot.slane %v4074, 1
    %v4076 = vadd.f32 %v4074, %v4075
    %v4077 = vadd.f32 %v3363, %v3364
    %v4078 = vadd.f32 %v4077, %v3365
    %v4079 = vrot.slane %v4078, 4
    %v4080 = vadd.f32 %v4078, %v4079
    %v4081 = vrot.slane %v4080, 2
    %v4082 = vadd.f32 %v4080, %v4081
    %v4083 = vrot.slane %v4082, 1
    %v4084 = vadd.f32 %v4082, %v4083
    %v4085 = vadd.f32 %v3366, %v3367
    %v4086 = vadd.f32 %v4085, %v3368
    %v4087 = vrot.slane %v4086, 4
    %v4088 = vadd.f32 %v4086, %v4087
    %v4089 = vrot.slane %v4088, 2
    %v4090 = vadd.f32 %v4088, %v4089
    %v4091 = vrot.slane %v4090, 1
    %v4092 = vadd.f32 %v4090, %v4091
    %v4093 = vadd.f32 %v3369, %v3370
    %v4094 = vadd.f32 %v4093, %v3371
    %v4095 = vrot.slane %v4094, 4
    %v4096 = vadd.f32 %v4094, %v4095
    %v4097 = vrot.slane %v4096, 2
    %v4098 = vadd.f32 %v4096, %v4097
    %v4099 = vrot.slane %v4098, 1
    %v4100 = vadd.f32 %v4098, %v4099
    %v4101 = vadd.f32 %v3372, %v3373
    %v4102 = vadd.f32 %v4101, %v3374
    %v4103 = vrot.slane %v4102, 4
    %v4104 = vadd.f32 %v4102, %v4103
    %v4105 = vrot.slane %v4104, 2
    %v4106 = vadd.f32 %v4104, %v4105
    %v4107 = vrot.slane %v4106, 1
    %v4108 = vadd.f32 %v4106, %v4107
    %v4109 = vadd.f32 %v3375, %v3376
    %v4110 = vadd.f32 %v4109, %v3377
    %v4111 = vrot.slane %v4110, 4
    %v4112 = vadd.f32 %v4110, %v4111
    %v4113 = vrot.slane %v4112, 2
    %v4114 = vadd.f32 %v4112, %v4113
    %v4115 = vrot.slane %v4114, 1
    %v4116 = vadd.f32 %v4114, %v4115
    %v4117 = vadd.f32 %v3378, %v3379
    %v4118 = vadd.f32 %v4117, %v3380
    %v4119 = vrot.slane %v4118, 4
    %v4120 = vadd.f32 %v4118, %v4119
    %v4121 = vrot.slane %v4120, 2
    %v4122 = vadd.f32 %v4120, %v4121
    %v4123 = vrot.slane %v4122, 1
    %v4124 = vadd.f32 %v4122, %v4123
    %v4125 = vadd.f32 %v3381, %v3382
    %v4126 = vadd.f32 %v4125, %v3383
    %v4127 = vrot.slane %v4126, 4
    %v4128 = vadd.f32 %v4126, %v4127
    %v4129 = vrot.slane %v4128, 2
    %v4130 = vadd.f32 %v4128, %v4129
    %v4131 = vrot.slane %v4130, 1
    %v4132 = vadd.f32 %v4130, %v4131
    %v4133 = vadd.f32 %v3384, %v3385
    %v4134 = vadd.f32 %v4133, %v3386
    %v4135 = vrot.slane %v4134, 4
    %v4136 = vadd.f32 %v4134, %v4135
    %v4137 = vrot.slane %v4136, 2
    %v4138 = vadd.f32 %v4136, %v4137
    %v4139 = vrot.slane %v4138, 1
    %v4140 = vadd.f32 %v4138, %v4139
    %v4141 = vadd.f32 %v3387, %v3388
    %v4142 = vadd.f32 %v4141, %v3389
    %v4143 = vrot.slane %v4142, 4
    %v4144 = vadd.f32 %v4142, %v4143
    %v4145 = vrot.slane %v4144, 2
    %v4146 = vadd.f32 %v4144, %v4145
    %v4147 = vrot.slane %v4146, 1
    %v4148 = vadd.f32 %v4146, %v4147
    %v4149 = vadd.f32 %v3390, %v3391
    %v4150 = vadd.f32 %v4149, %v3392
    %v4151 = vrot.slane %v4150, 4
    %v4152 = vadd.f32 %v4150, %v4151
    %v4153 = vrot.slane %v4152, 2
    %v4154 = vadd.f32 %v4152, %v4153
    %v4155 = vrot.slane %v4154, 1
    %v4156 = vadd.f32 %v4154, %v4155
    %v4157 = vadd.f32 %v3393, %v3394
    %v4158 = vadd.f32 %v4157, %v3395
    %v4159 = vrot.slane %v4158, 4
    %v4160 = vadd.f32 %v4158, %v4159
    %v4161 = vrot.slane %v4160, 2
    %v4162 = vadd.f32 %v4160, %v4161
    %v4163 = vrot.slane %v4162, 1
    %v4164 = vadd.f32 %v4162, %v4163
    %v4165 = vadd.f32 %v3396, %v3397
    %v4166 = vadd.f32 %v4165, %v3398
    %v4167 = vrot.slane %v4166, 4
    %v4168 = vadd.f32 %v4166, %v4167
    %v4169 = vrot.slane %v4168, 2
    %v4170 = vadd.f32 %v4168, %v4169
    %v4171 = vrot.slane %v4170, 1
    %v4172 = vadd.f32 %v4170, %v4171
    %v4173 = vadd.f32 %v3399, %v3400
    %v4174 = vadd.f32 %v4173, %v3401
    %v4175 = vrot.slane %v4174, 4
    %v4176 = vadd.f32 %v4174, %v4175
    %v4177 = vrot.slane %v4176, 2
    %v4178 = vadd.f32 %v4176, %v4177
    %v4179 = vrot.slane %v4178, 1
    %v4180 = vadd.f32 %v4178, %v4179
    %v4181 = vadd.f32 %v3402, %v3403
    %v4182 = vadd.f32 %v4181, %v3404
    %v4183 = vrot.slane %v4182, 4
    %v4184 = vadd.f32 %v4182, %v4183
    %v4185 = vrot.slane %v4184, 2
    %v4186 = vadd.f32 %v4184, %v4185
    %v4187 = vrot.slane %v4186, 1
    %v4188 = vadd.f32 %v4186, %v4187
    %v4189 = vadd.f32 %v3405, %v3406
    %v4190 = vadd.f32 %v4189, %v3407
    %v4191 = vrot.slane %v4190, 4
    %v4192 = vadd.f32 %v4190, %v4191
    %v4193 = vrot.slane %v4192, 2
    %v4194 = vadd.f32 %v4192, %v4193
    %v4195 = vrot.slane %v4194, 1
    %v4196 = vadd.f32 %v4194, %v4195
    %v4197 = vadd.f32 %v3408, %v3409
    %v4198 = vadd.f32 %v4197, %v3410
    %v4199 = vrot.slane %v4198, 4
    %v4200 = vadd.f32 %v4198, %v4199
    %v4201 = vrot.slane %v4200, 2
    %v4202 = vadd.f32 %v4200, %v4201
    %v4203 = vrot.slane %v4202, 1
    %v4204 = vadd.f32 %v4202, %v4203
    %v4205 = vadd.f32 %v3411, %v3412
    %v4206 = vadd.f32 %v4205, %v3413
    %v4207 = vrot.slane %v4206, 4
    %v4208 = vadd.f32 %v4206, %v4207
    %v4209 = vrot.slane %v4208, 2
    %v4210 = vadd.f32 %v4208, %v4209
    %v4211 = vrot.slane %v4210, 1
    %v4212 = vadd.f32 %v4210, %v4211
    %v4213 = vadd.f32 %v3414, %v3415
    %v4214 = vadd.f32 %v4213, %v3416
    %v4215 = vrot.slane %v4214, 4
    %v4216 = vadd.f32 %v4214, %v4215
    %v4217 = vrot.slane %v4216, 2
    %v4218 = vadd.f32 %v4216, %v4217
    %v4219 = vrot.slane %v4218, 1
    %v4220 = vadd.f32 %v4218, %v4219
    %v4221 = vadd.f32 %v3417, %v3418
    %v4222 = vadd.f32 %v4221, %v3419
    %v4223 = vrot.slane %v4222, 4
    %v4224 = vadd.f32 %v4222, %v4223
    %v4225 = vrot.slane %v4224, 2
    %v4226 = vadd.f32 %v4224, %v4225
    %v4227 = vrot.slane %v4226, 1
    %v4228 = vadd.f32 %v4226, %v4227
    %v4229 = vadd.f32 %v3420, %v3421
    %v4230 = vadd.f32 %v4229, %v3422
    %v4231 = vrot.slane %v4230, 4
    %v4232 = vadd.f32 %v4230, %v4231
    %v4233 = vrot.slane %v4232, 2
    %v4234 = vadd.f32 %v4232, %v4233
    %v4235 = vrot.slane %v4234, 1
    %v4236 = vadd.f32 %v4234, %v4235
    %v4237 = vadd.f32 %v3423, %v3424
    %v4238 = vadd.f32 %v4237, %v3425
    %v4239 = vrot.slane %v4238, 4
    %v4240 = vadd.f32 %v4238, %v4239
    %v4241 = vrot.slane %v4240, 2
    %v4242 = vadd.f32 %v4240, %v4241
    %v4243 = vrot.slane %v4242, 1
    %v4244 = vadd.f32 %v4242, %v4243
    %v4245 = vadd.f32 %v3426, %v3427
    %v4246 = vadd.f32 %v4245, %v3428
    %v4247 = vrot.slane %v4246, 4
    %v4248 = vadd.f32 %v4246, %v4247
    %v4249 = vrot.slane %v4248, 2
    %v4250 = vadd.f32 %v4248, %v4249
    %v4251 = vrot.slane %v4250, 1
    %v4252 = vadd.f32 %v4250, %v4251
    %v4253 = vadd.f32 %v3429, %v3430
    %v4254 = vadd.f32 %v4253, %v3431
    %v4255 = vrot.slane %v4254, 4
    %v4256 = vadd.f32 %v4254, %v4255
    %v4257 = vrot.slane %v4256, 2
    %v4258 = vadd.f32 %v4256, %v4257
    %v4259 = vrot.slane %v4258, 1
    %v4260 = vadd.f32 %v4258, %v4259
    %v4261 = vadd.f32 %v3432, %v3433
    %v4262 = vadd.f32 %v4261, %v3434
    %v4263 = vrot.slane %v4262, 4
    %v4264 = vadd.f32 %v4262, %v4263
    %v4265 = vrot.slane %v4264, 2
    %v4266 = vadd.f32 %v4264, %v4265
    %v4267 = vrot.slane %v4266, 1
    %v4268 = vadd.f32 %v4266, %v4267
    %v4269 = vadd.f32 %v3435, %v3436
    %v4270 = vadd.f32 %v4269, %v3437
    %v4271 = vrot.slane %v4270, 4
    %v4272 = vadd.f32 %v4270, %v4271
    %v4273 = vrot.slane %v4272, 2
    %v4274 = vadd.f32 %v4272, %v4273
    %v4275 = vrot.slane %v4274, 1
    %v4276 = vadd.f32 %v4274, %v4275
    %v4277 = vadd.f32 %v3438, %v3439
    %v4278 = vadd.f32 %v4277, %v3440
    %v4279 = vrot.slane %v4278, 4
    %v4280 = vadd.f32 %v4278, %v4279
    %v4281 = vrot.slane %v4280, 2
    %v4282 = vadd.f32 %v4280, %v4281
    %v4283 = vrot.slane %v4282, 1
    %v4284 = vadd.f32 %v4282, %v4283
    %v4285 = vadd.f32 %v3441, %v3442
    %v4286 = vadd.f32 %v4285, %v3443
    %v4287 = vrot.slane %v4286, 4
    %v4288 = vadd.f32 %v4286, %v4287
    %v4289 = vrot.slane %v4288, 2
    %v4290 = vadd.f32 %v4288, %v4289
    %v4291 = vrot.slane %v4290, 1
    %v4292 = vadd.f32 %v4290, %v4291
    %v4293 = vadd.f32 %v3444, %v3445
    %v4294 = vadd.f32 %v4293, %v3446
    %v4295 = vrot.slane %v4294, 4
    %v4296 = vadd.f32 %v4294, %v4295
    %v4297 = vrot.slane %v4296, 2
    %v4298 = vadd.f32 %v4296, %v4297
    %v4299 = vrot.slane %v4298, 1
    %v4300 = vadd.f32 %v4298, %v4299
    %v4301 = vadd.f32 %v3447, %v3448
    %v4302 = vadd.f32 %v4301, %v3449
    %v4303 = vrot.slane %v4302, 4
    %v4304 = vadd.f32 %v4302, %v4303
    %v4305 = vrot.slane %v4304, 2
    %v4306 = vadd.f32 %v4304, %v4305
    %v4307 = vrot.slane %v4306, 1
    %v4308 = vadd.f32 %v4306, %v4307
    %v4309 = vadd.f32 %v3450, %v3451
    %v4310 = vadd.f32 %v4309, %v3452
    %v4311 = vrot.slane %v4310, 4
    %v4312 = vadd.f32 %v4310, %v4311
    %v4313 = vrot.slane %v4312, 2
    %v4314 = vadd.f32 %v4312, %v4313
    %v4315 = vrot.slane %v4314, 1
    %v4316 = vadd.f32 %v4314, %v4315
    %v4317 = vadd.f32 %v3453, %v3454
    %v4318 = vadd.f32 %v4317, %v3455
    %v4319 = vrot.slane %v4318, 4
    %v4320 = vadd.f32 %v4318, %v4319
    %v4321 = vrot.slane %v4320, 2
    %v4322 = vadd.f32 %v4320, %v4321
    %v4323 = vrot.slane %v4322, 1
    %v4324 = vadd.f32 %v4322, %v4323
    %v4325 = vadd.f32 %v3456, %v3457
    %v4326 = vadd.f32 %v4325, %v3458
    %v4327 = vrot.slane %v4326, 4
    %v4328 = vadd.f32 %v4326, %v4327
    %v4329 = vrot.slane %v4328, 2
    %v4330 = vadd.f32 %v4328, %v4329
    %v4331 = vrot.slane %v4330, 1
    %v4332 = vadd.f32 %v4330, %v4331
    %v4333 = vadd.f32 %v3459, %v3460
    %v4334 = vadd.f32 %v4333, %v3461
    %v4335 = vrot.slane %v4334, 4
    %v4336 = vadd.f32 %v4334, %v4335
    %v4337 = vrot.slane %v4336, 2
    %v4338 = vadd.f32 %v4336, %v4337
    %v4339 = vrot.slane %v4338, 1
    %v4340 = vadd.f32 %v4338, %v4339
    %v4341 = vadd.f32 %v3462, %v3463
    %v4342 = vadd.f32 %v4341, %v3464
    %v4343 = vrot.slane %v4342, 4
    %v4344 = vadd.f32 %v4342, %v4343
    %v4345 = vrot.slane %v4344, 2
    %v4346 = vadd.f32 %v4344, %v4345
    %v4347 = vrot.slane %v4346, 1
    %v4348 = vadd.f32 %v4346, %v4347
    %v4349 = vadd.f32 %v3465, %v3466
    %v4350 = vadd.f32 %v4349, %v3467
    %v4351 = vrot.slane %v4350, 4
    %v4352 = vadd.f32 %v4350, %v4351
    %v4353 = vrot.slane %v4352, 2
    %v4354 = vadd.f32 %v4352, %v4353
    %v4355 = vrot.slane %v4354, 1
    %v4356 = vadd.f32 %v4354, %v4355
    %v4357 = vadd.f32 %v3468, %v3469
    %v4358 = vadd.f32 %v4357, %v3470
    %v4359 = vrot.slane %v4358, 4
    %v4360 = vadd.f32 %v4358, %v4359
    %v4361 = vrot.slane %v4360, 2
    %v4362 = vadd.f32 %v4360, %v4361
    %v4363 = vrot.slane %v4362, 1
    %v4364 = vadd.f32 %v4362, %v4363
    %v4365 = vadd.f32 %v3471, %v3472
    %v4366 = vadd.f32 %v4365, %v3473
    %v4367 = vrot.slane %v4366, 4
    %v4368 = vadd.f32 %v4366, %v4367
    %v4369 = vrot.slane %v4368, 2
    %v4370 = vadd.f32 %v4368, %v4369
    %v4371 = vrot.slane %v4370, 1
    %v4372 = vadd.f32 %v4370, %v4371
    %v4373 = vadd.f32 %v3474, %v3475
    %v4374 = vadd.f32 %v4373, %v3476
    %v4375 = vrot.slane %v4374, 4
    %v4376 = vadd.f32 %v4374, %v4375
    %v4377 = vrot.slane %v4376, 2
    %v4378 = vadd.f32 %v4376, %v4377
    %v4379 = vrot.slane %v4378, 1
    %v4380 = vadd.f32 %v4378, %v4379
    %v4381 = vadd.f32 %v3477, %v3478
    %v4382 = vadd.f32 %v4381, %v3479
    %v4383 = vrot.slane %v4382, 4
    %v4384 = vadd.f32 %v4382, %v4383
    %v4385 = vrot.slane %v4384, 2
    %v4386 = vadd.f32 %v4384, %v4385
    %v4387 = vrot.slane %v4386, 1
    %v4388 = vadd.f32 %v4386, %v4387
    %v4389 = vadd.f32 %v3480, %v3481
    %v4390 = vadd.f32 %v4389, %v3482
    %v4391 = vrot.slane %v4390, 4
    %v4392 = vadd.f32 %v4390, %v4391
    %v4393 = vrot.slane %v4392, 2
    %v4394 = vadd.f32 %v4392, %v4393
    %v4395 = vrot.slane %v4394, 1
    %v4396 = vadd.f32 %v4394, %v4395
    %v4397 = vadd.f32 %v3483, %v3484
    %v4398 = vadd.f32 %v4397, %v3485
    %v4399 = vrot.slane %v4398, 4
    %v4400 = vadd.f32 %v4398, %v4399
    %v4401 = vrot.slane %v4400, 2
    %v4402 = vadd.f32 %v4400, %v4401
    %v4403 = vrot.slane %v4402, 1
    %v4404 = vadd.f32 %v4402, %v4403
    %v4405 = vadd.f32 %v3486, %v3487
    %v4406 = vadd.f32 %v4405, %v3488
    %v4407 = vrot.slane %v4406, 4
    %v4408 = vadd.f32 %v4406, %v4407
    %v4409 = vrot.slane %v4408, 2
    %v4410 = vadd.f32 %v4408, %v4409
    %v4411 = vrot.slane %v4410, 1
    %v4412 = vadd.f32 %v4410, %v4411
    %v4413 = vadd.f32 %v3489, %v3490
    %v4414 = vadd.f32 %v4413, %v3491
    %v4415 = vrot.slane %v4414, 4
    %v4416 = vadd.f32 %v4414, %v4415
    %v4417 = vrot.slane %v4416, 2
    %v4418 = vadd.f32 %v4416, %v4417
    %v4419 = vrot.slane %v4418, 1
    %v4420 = vadd.f32 %v4418, %v4419
    %v4421 = vadd.f32 %v3492, %v3493
    %v4422 = vadd.f32 %v4421, %v3494
    %v4423 = vrot.slane %v4422, 4
    %v4424 = vadd.f32 %v4422, %v4423
    %v4425 = vrot.slane %v4424, 2
    %v4426 = vadd.f32 %v4424, %v4425
    %v4427 = vrot.slane %v4426, 1
    %v4428 = vadd.f32 %v4426, %v4427
    %v4429 = vadd.f32 %v3495, %v3496
    %v4430 = vadd.f32 %v4429, %v3497
    %v4431 = vrot.slane %v4430, 4
    %v4432 = vadd.f32 %v4430, %v4431
    %v4433 = vrot.slane %v4432, 2
    %v4434 = vadd.f32 %v4432, %v4433
    %v4435 = vrot.slane %v4434, 1
    %v4436 = vadd.f32 %v4434, %v4435
    %v4437 = vadd.f32 %v3498, %v3499
    %v4438 = vadd.f32 %v4437, %v3500
    %v4439 = vrot.slane %v4438, 4
    %v4440 = vadd.f32 %v4438, %v4439
    %v4441 = vrot.slane %v4440, 2
    %v4442 = vadd.f32 %v4440, %v4441
    %v4443 = vrot.slane %v4442, 1
    %v4444 = vadd.f32 %v4442, %v4443
    %v4445 = vadd.f32 %v3501, %v3502
    %v4446 = vadd.f32 %v4445, %v3503
    %v4447 = vrot.slane %v4446, 4
    %v4448 = vadd.f32 %v4446, %v4447
    %v4449 = vrot.slane %v4448, 2
    %v4450 = vadd.f32 %v4448, %v4449
    %v4451 = vrot.slane %v4450, 1
    %v4452 = vadd.f32 %v4450, %v4451
    %v4453 = vadd.f32 %v3504, %v3505
    %v4454 = vadd.f32 %v4453, %v3506
    %v4455 = vrot.slane %v4454, 4
    %v4456 = vadd.f32 %v4454, %v4455
    %v4457 = vrot.slane %v4456, 2
    %v4458 = vadd.f32 %v4456, %v4457
    %v4459 = vrot.slane %v4458, 1
    %v4460 = vadd.f32 %v4458, %v4459
    %v4461 = vadd.f32 %v3507, %v3508
    %v4462 = vadd.f32 %v4461, %v3509
    %v4463 = vrot.slane %v4462, 4
    %v4464 = vadd.f32 %v4462, %v4463
    %v4465 = vrot.slane %v4464, 2
    %v4466 = vadd.f32 %v4464, %v4465
    %v4467 = vrot.slane %v4466, 1
    %v4468 = vadd.f32 %v4466, %v4467
    %v4469 = vadd.f32 %v3510, %v3511
    %v4470 = vadd.f32 %v4469, %v3512
    %v4471 = vrot.slane %v4470, 4
    %v4472 = vadd.f32 %v4470, %v4471
    %v4473 = vrot.slane %v4472, 2
    %v4474 = vadd.f32 %v4472, %v4473
    %v4475 = vrot.slane %v4474, 1
    %v4476 = vadd.f32 %v4474, %v4475
    %v4477 = vadd.f32 %v3513, %v3514
    %v4478 = vadd.f32 %v4477, %v3515
    %v4479 = vrot.slane %v4478, 4
    %v4480 = vadd.f32 %v4478, %v4479
    %v4481 = vrot.slane %v4480, 2
    %v4482 = vadd.f32 %v4480, %v4481
    %v4483 = vrot.slane %v4482, 1
    %v4484 = vadd.f32 %v4482, %v4483
    %v4485 = vadd.f32 %v3516, %v3517
    %v4486 = vadd.f32 %v4485, %v3518
    %v4487 = vrot.slane %v4486, 4
    %v4488 = vadd.f32 %v4486, %v4487
    %v4489 = vrot.slane %v4488, 2
    %v4490 = vadd.f32 %v4488, %v4489
    %v4491 = vrot.slane %v4490, 1
    %v4492 = vadd.f32 %v4490, %v4491
    %v4493 = vadd.f32 %v3519, %v3520
    %v4494 = vadd.f32 %v4493, %v3521
    %v4495 = vrot.slane %v4494, 4
    %v4496 = vadd.f32 %v4494, %v4495
    %v4497 = vrot.slane %v4496, 2
    %v4498 = vadd.f32 %v4496, %v4497
    %v4499 = vrot.slane %v4498, 1
    %v4500 = vadd.f32 %v4498, %v4499
    %v4501 = vadd.f32 %v3522, %v3523
    %v4502 = vadd.f32 %v4501, %v3524
    %v4503 = vrot.slane %v4502, 4
    %v4504 = vadd.f32 %v4502, %v4503
    %v4505 = vrot.slane %v4504, 2
    %v4506 = vadd.f32 %v4504, %v4505
    %v4507 = vrot.slane %v4506, 1
    %v4508 = vadd.f32 %v4506, %v4507
    %v4509 = vadd.f32 %v3525, %v3526
    %v4510 = vadd.f32 %v4509, %v3527
    %v4511 = vrot.slane %v4510, 4
    %v4512 = vadd.f32 %v4510, %v4511
    %v4513 = vrot.slane %v4512, 2
    %v4514 = vadd.f32 %v4512, %v4513
    %v4515 = vrot.slane %v4514, 1
    %v4516 = vadd.f32 %v4514, %v4515
    %v4517 = vadd.f32 %v3528, %v3529
    %v4518 = vadd.f32 %v4517, %v3530
    %v4519 = vrot.slane %v4518, 4
    %v4520 = vadd.f32 %v4518, %v4519
    %v4521 = vrot.slane %v4520, 2
    %v4522 = vadd.f32 %v4520, %v4521
    %v4523 = vrot.slane %v4522, 1
    %v4524 = vadd.f32 %v4522, %v4523
    %v4525 = vadd.f32 %v3531, %v3532
    %v4526 = vadd.f32 %v4525, %v3533
    %v4527 = vrot.slane %v4526, 4
    %v4528 = vadd.f32 %v4526, %v4527
    %v4529 = vrot.slane %v4528, 2
    %v4530 = vadd.f32 %v4528, %v4529
    %v4531 = vrot.slane %v4530, 1
    %v4532 = vadd.f32 %v4530, %v4531
    %v4533 = vadd.f32 %v3534, %v3535
    %v4534 = vadd.f32 %v4533, %v3536
    %v4535 = vrot.slane %v4534, 4
    %v4536 = vadd.f32 %v4534, %v4535
    %v4537 = vrot.slane %v4536, 2
    %v4538 = vadd.f32 %v4536, %v4537
    %v4539 = vrot.slane %v4538, 1
    %v4540 = vadd.f32 %v4538, %v4539
    %v4541 = vadd.f32 %v3537, %v3538
    %v4542 = vadd.f32 %v4541, %v3539
    %v4543 = vrot.slane %v4542, 4
    %v4544 = vadd.f32 %v4542, %v4543
    %v4545 = vrot.slane %v4544, 2
    %v4546 = vadd.f32 %v4544, %v4545
    %v4547 = vrot.slane %v4546, 1
    %v4548 = vadd.f32 %v4546, %v4547
    %v4549 = vadd.f32 %v3540, %v3541
    %v4550 = vadd.f32 %v4549, %v3542
    %v4551 = vrot.slane %v4550, 4
    %v4552 = vadd.f32 %v4550, %v4551
    %v4553 = vrot.slane %v4552, 2
    %v4554 = vadd.f32 %v4552, %v4553
    %v4555 = vrot.slane %v4554, 1
    %v4556 = vadd.f32 %v4554, %v4555
    %v4557 = vadd.f32 %v3543, %v3544
    %v4558 = vadd.f32 %v4557, %v3545
    %v4559 = vrot.slane %v4558, 4
    %v4560 = vadd.f32 %v4558, %v4559
    %v4561 = vrot.slane %v4560, 2
    %v4562 = vadd.f32 %v4560, %v4561
    %v4563 = vrot.slane %v4562, 1
    %v4564 = vadd.f32 %v4562, %v4563
    %v4565 = vadd.f32 %v3546, %v3547
    %v4566 = vadd.f32 %v4565, %v3548
    %v4567 = vrot.slane %v4566, 4
    %v4568 = vadd.f32 %v4566, %v4567
    %v4569 = vrot.slane %v4568, 2
    %v4570 = vadd.f32 %v4568, %v4569
    %v4571 = vrot.slane %v4570, 1
    %v4572 = vadd.f32 %v4570, %v4571
    %v4573 = vpack.c.bf16 %v3556, %v3556
    %v4574 = vpack.c.bf16 %v3564, %v3564
    %v4575 = vpack.c.bf16 %v3572, %v3572
    %v4576 = vpack.c.bf16 %v3580, %v3580
    %v4577 = vpack.c.bf16 %v3588, %v3588
    %v4578 = vpack.c.bf16 %v3596, %v3596
    %v4579 = vpack.c.bf16 %v3604, %v3604
    %v4580 = vpack.c.bf16 %v3612, %v3612
    %v4581 = vpack.c.bf16 %v3620, %v3620
    %v4582 = vpack.c.bf16 %v3628, %v3628
    %v4583 = vpack.c.bf16 %v3636, %v3636
    %v4584 = vpack.c.bf16 %v3644, %v3644
    %v4585 = vpack.c.bf16 %v3652, %v3652
    %v4586 = vpack.c.bf16 %v3660, %v3660
    %v4587 = vpack.c.bf16 %v3668, %v3668
    %v4588 = vpack.c.bf16 %v3676, %v3676
    %v4589 = vpack.c.bf16 %v3684, %v3684
    %v4590 = vpack.c.bf16 %v3692, %v3692
    %v4591 = vpack.c.bf16 %v3700, %v3700
    %v4592 = vpack.c.bf16 %v3708, %v3708
    %v4593 = vpack.c.bf16 %v3716, %v3716
    %v4594 = vpack.c.bf16 %v3724, %v3724
    %v4595 = vpack.c.bf16 %v3732, %v3732
    %v4596 = vpack.c.bf16 %v3740, %v3740
    %v4597 = vpack.c.bf16 %v3748, %v3748
    %v4598 = vpack.c.bf16 %v3756, %v3756
    %v4599 = vpack.c.bf16 %v3764, %v3764
    %v4600 = vpack.c.bf16 %v3772, %v3772
    %v4601 = vpack.c.bf16 %v3780, %v3780
    %v4602 = vpack.c.bf16 %v3788, %v3788
    %v4603 = vpack.c.bf16 %v3796, %v3796
    %v4604 = vpack.c.bf16 %v3804, %v3804
    %v4605 = vpack.c.bf16 %v3812, %v3812
    %v4606 = vpack.c.bf16 %v3820, %v3820
    %v4607 = vpack.c.bf16 %v3828, %v3828
    %v4608 = vpack.c.bf16 %v3836, %v3836
    %v4609 = vpack.c.bf16 %v3844, %v3844
    %v4610 = vpack.c.bf16 %v3852, %v3852
    %v4611 = vpack.c.bf16 %v3860, %v3860
    %v4612 = vpack.c.bf16 %v3868, %v3868
    %v4613 = vpack.c.bf16 %v3876, %v3876
    %v4614 = vpack.c.bf16 %v3884, %v3884
    %v4615 = vpack.c.bf16 %v3892, %v3892
    %v4616 = vpack.c.bf16 %v3900, %v3900
    %v4617 = vpack.c.bf16 %v3908, %v3908
    %v4618 = vpack.c.bf16 %v3916, %v3916
    %v4619 = vpack.c.bf16 %v3924, %v3924
    %v4620 = vpack.c.bf16 %v3932, %v3932
    %v4621 = vpack.c.bf16 %v3940, %v3940
    %v4622 = vpack.c.bf16 %v3948, %v3948
    %v4623 = vpack.c.bf16 %v3956, %v3956
    %v4624 = vpack.c.bf16 %v3964, %v3964
    %v4625 = vpack.c.bf16 %v3972, %v3972
    %v4626 = vpack.c.bf16 %v3980, %v3980
    %v4627 = vpack.c.bf16 %v3988, %v3988
    %v4628 = vpack.c.bf16 %v3996, %v3996
    %v4629 = vpack.c.bf16 %v4004, %v4004
    %v4630 = vpack.c.bf16 %v4012, %v4012
    %v4631 = vpack.c.bf16 %v4020, %v4020
    %v4632 = vpack.c.bf16 %v4028, %v4028
    %v4633 = vpack.c.bf16 %v4036, %v4036
    %v4634 = vpack.c.bf16 %v4044, %v4044
    %v4635 = vpack.c.bf16 %v4052, %v4052
    %v4636 = vpack.c.bf16 %v4060, %v4060
    %v4637 = vpack.c.bf16 %v4068, %v4068
    %v4638 = vpack.c.bf16 %v4076, %v4076
    %v4639 = vpack.c.bf16 %v4084, %v4084
    %v4640 = vpack.c.bf16 %v4092, %v4092
    %v4641 = vpack.c.bf16 %v4100, %v4100
    %v4642 = vpack.c.bf16 %v4108, %v4108
    %v4643 = vpack.c.bf16 %v4116, %v4116
    %v4644 = vpack.c.bf16 %v4124, %v4124
    %v4645 = vpack.c.bf16 %v4132, %v4132
    %v4646 = vpack.c.bf16 %v4140, %v4140
    %v4647 = vpack.c.bf16 %v4148, %v4148
    %v4648 = vpack.c.bf16 %v4156, %v4156
    %v4649 = vpack.c.bf16 %v4164, %v4164
    %v4650 = vpack.c.bf16 %v4172, %v4172
    %v4651 = vpack.c.bf16 %v4180, %v4180
    %v4652 = vpack.c.bf16 %v4188, %v4188
    %v4653 = vpack.c.bf16 %v4196, %v4196
    %v4654 = vpack.c.bf16 %v4204, %v4204
    %v4655 = vpack.c.bf16 %v4212, %v4212
    %v4656 = vpack.c.bf16 %v4220, %v4220
    %v4657 = vpack.c.bf16 %v4228, %v4228
    %v4658 = vpack.c.bf16 %v4236, %v4236
    %v4659 = vpack.c.bf16 %v4244, %v4244
    %v4660 = vpack.c.bf16 %v4252, %v4252
    %v4661 = vpack.c.bf16 %v4260, %v4260
    %v4662 = vpack.c.bf16 %v4268, %v4268
    %v4663 = vpack.c.bf16 %v4276, %v4276
    %v4664 = vpack.c.bf16 %v4284, %v4284
    %v4665 = vpack.c.bf16 %v4292, %v4292
    %v4666 = vpack.c.bf16 %v4300, %v4300
    %v4667 = vpack.c.bf16 %v4308, %v4308
    %v4668 = vpack.c.bf16 %v4316, %v4316
    %v4669 = vpack.c.bf16 %v4324, %v4324
    %v4670 = vpack.c.bf16 %v4332, %v4332
    %v4671 = vpack.c.bf16 %v4340, %v4340
    %v4672 = vpack.c.bf16 %v4348, %v4348
    %v4673 = vpack.c.bf16 %v4356, %v4356
    %v4674 = vpack.c.bf16 %v4364, %v4364
    %v4675 = vpack.c.bf16 %v4372, %v4372
    %v4676 = vpack.c.bf16 %v4380, %v4380
    %v4677 = vpack.c.bf16 %v4388, %v4388
    %v4678 = vpack.c.bf16 %v4396, %v4396
    %v4679 = vpack.c.bf16 %v4404, %v4404
    %v4680 = vpack.c.bf16 %v4412, %v4412
    %v4681 = vpack.c.bf16 %v4420, %v4420
    %v4682 = vpack.c.bf16 %v4428, %v4428
    %v4683 = vpack.c.bf16 %v4436, %v4436
    %v4684 = vpack.c.bf16 %v4444, %v4444
    %v4685 = vpack.c.bf16 %v4452, %v4452
    %v4686 = vpack.c.bf16 %v4460, %v4460
    %v4687 = vpack.c.bf16 %v4468, %v4468
    %v4688 = vpack.c.bf16 %v4476, %v4476
    %v4689 = vpack.c.bf16 %v4484, %v4484
    %v4690 = vpack.c.bf16 %v4492, %v4492
    %v4691 = vpack.c.bf16 %v4500, %v4500
    %v4692 = vpack.c.bf16 %v4508, %v4508
    %v4693 = vpack.c.bf16 %v4516, %v4516
    %v4694 = vpack.c.bf16 %v4524, %v4524
    %v4695 = vpack.c.bf16 %v4532, %v4532
    %v4696 = vpack.c.bf16 %v4540, %v4540
    %v4697 = vpack.c.bf16 %v4548, %v4548
    %v4698 = vpack.c.bf16 %v4556, %v4556
    %v4699 = vpack.c.bf16 %v4564, %v4564
    %v4700 = vpack.c.bf16 %v4572, %v4572
    %v4701 = vld [vmem:[#allocation9] sm:$0xf]
    %v4702 = vld [vmem:[#allocation9 + $0x4] sm:$0xf]
    %v4703 = vld [vmem:[#allocation9 + $0x8] sm:$0xf]
    %v4704 = vld [vmem:[#allocation9 + $0xc] sm:$0xf]
    %v4705 = vld [vmem:[#allocation9 + $0x10] sm:$0xf]
    %v4706 = vld [vmem:[#allocation9 + $0x14] sm:$0xf]
    %v4707 = vld [vmem:[#allocation9 + $0x18] sm:$0xf]
    %v4708 = vld [vmem:[#allocation9 + $0x1c] sm:$0xf]
    %v4709 = vld [vmem:[#allocation9 + $0x20] sm:$0xf]
    %v4710 = vld [vmem:[#allocation9 + $0x24] sm:$0xf]
    %v4711 = vld [vmem:[#allocation9 + $0x28] sm:$0xf]
    %v4712 = vld [vmem:[#allocation9 + $0x2c] sm:$0xf]
    %v4713 = vld [vmem:[#allocation9 + $0x30] sm:$0xf]
    %v4714 = vld [vmem:[#allocation9 + $0x34] sm:$0xf]
    %v4715 = vld [vmem:[#allocation9 + $0x38] sm:$0xf]
    %v4716 = vld [vmem:[#allocation9 + $0x3c] sm:$0xf]
    %v4845 = vunpack.c.l.b16 %v4573
    %v4846 = vunpack.c.l.b16 %v4574
    %v4847 = vunpack.c.l.b16 %v4575
    %v4848 = vunpack.c.l.b16 %v4576
    %v4849 = vunpack.c.l.b16 %v4577
    %v4850 = vunpack.c.l.b16 %v4578
    %v4851 = vunpack.c.l.b16 %v4579
    %v4852 = vunpack.c.l.b16 %v4580
    %v4853 = vunpack.c.l.b16 %v4581
    %v4854 = vunpack.c.l.b16 %v4582
    %v4855 = vunpack.c.l.b16 %v4583
    %v4856 = vunpack.c.l.b16 %v4584
    %v4857 = vunpack.c.l.b16 %v4585
    %v4858 = vunpack.c.l.b16 %v4586
    %v4859 = vunpack.c.l.b16 %v4587
    %v4860 = vunpack.c.l.b16 %v4588
    %v4861 = vunpack.c.l.b16 %v4589
    %v4862 = vunpack.c.l.b16 %v4590
    %v4863 = vunpack.c.l.b16 %v4591
    %v4864 = vunpack.c.l.b16 %v4592
    %v4865 = vunpack.c.l.b16 %v4593
    %v4866 = vunpack.c.l.b16 %v4594
    %v4867 = vunpack.c.l.b16 %v4595
    %v4868 = vunpack.c.l.b16 %v4596
    %v4869 = vunpack.c.l.b16 %v4597
    %v4870 = vunpack.c.l.b16 %v4598
    %v4871 = vunpack.c.l.b16 %v4599
    %v4872 = vunpack.c.l.b16 %v4600
    %v4873 = vunpack.c.l.b16 %v4601
    %v4874 = vunpack.c.l.b16 %v4602
    %v4875 = vunpack.c.l.b16 %v4603
    %v4876 = vunpack.c.l.b16 %v4604
    %v4877 = vunpack.c.l.b16 %v4605
    %v4878 = vunpack.c.l.b16 %v4606
    %v4879 = vunpack.c.l.b16 %v4607
    %v4880 = vunpack.c.l.b16 %v4608
    %v4881 = vunpack.c.l.b16 %v4609
    %v4882 = vunpack.c.l.b16 %v4610
    %v4883 = vunpack.c.l.b16 %v4611
    %v4884 = vunpack.c.l.b16 %v4612
    %v4885 = vunpack.c.l.b16 %v4613
    %v4886 = vunpack.c.l.b16 %v4614
    %v4887 = vunpack.c.l.b16 %v4615
    %v4888 = vunpack.c.l.b16 %v4616
    %v4889 = vunpack.c.l.b16 %v4617
    %v4890 = vunpack.c.l.b16 %v4618
    %v4891 = vunpack.c.l.b16 %v4619
    %v4892 = vunpack.c.l.b16 %v4620
    %v4893 = vunpack.c.l.b16 %v4621
    %v4894 = vunpack.c.l.b16 %v4622
    %v4895 = vunpack.c.l.b16 %v4623
    %v4896 = vunpack.c.l.b16 %v4624
    %v4897 = vunpack.c.l.b16 %v4625
    %v4898 = vunpack.c.l.b16 %v4626
    %v4899 = vunpack.c.l.b16 %v4627
    %v4900 = vunpack.c.l.b16 %v4628
    %v4901 = vunpack.c.l.b16 %v4629
    %v4902 = vunpack.c.l.b16 %v4630
    %v4903 = vunpack.c.l.b16 %v4631
    %v4904 = vunpack.c.l.b16 %v4632
    %v4905 = vunpack.c.l.b16 %v4633
    %v4906 = vunpack.c.l.b16 %v4634
    %v4907 = vunpack.c.l.b16 %v4635
    %v4908 = vunpack.c.l.b16 %v4636
    %v4909 = vunpack.c.l.b16 %v4637
    %v4910 = vunpack.c.l.b16 %v4638
    %v4911 = vunpack.c.l.b16 %v4639
    %v4912 = vunpack.c.l.b16 %v4640
    %v4913 = vunpack.c.l.b16 %v4641
    %v4914 = vunpack.c.l.b16 %v4642
    %v4915 = vunpack.c.l.b16 %v4643
    %v4916 = vunpack.c.l.b16 %v4644
    %v4917 = vunpack.c.l.b16 %v4645
    %v4918 = vunpack.c.l.b16 %v4646
    %v4919 = vunpack.c.l.b16 %v4647
    %v4920 = vunpack.c.l.b16 %v4648
    %v4921 = vunpack.c.l.b16 %v4649
    %v4922 = vunpack.c.l.b16 %v4650
    %v4923 = vunpack.c.l.b16 %v4651
    %v4924 = vunpack.c.l.b16 %v4652
    %v4925 = vunpack.c.l.b16 %v4653
    %v4926 = vunpack.c.l.b16 %v4654
    %v4927 = vunpack.c.l.b16 %v4655
    %v4928 = vunpack.c.l.b16 %v4656
    %v4929 = vunpack.c.l.b16 %v4657
    %v4930 = vunpack.c.l.b16 %v4658
    %v4931 = vunpack.c.l.b16 %v4659
    %v4932 = vunpack.c.l.b16 %v4660
    %v4933 = vunpack.c.l.b16 %v4661
    %v4934 = vunpack.c.l.b16 %v4662
    %v4935 = vunpack.c.l.b16 %v4663
    %v4936 = vunpack.c.l.b16 %v4664
    %v4937 = vunpack.c.l.b16 %v4665
    %v4938 = vunpack.c.l.b16 %v4666
    %v4939 = vunpack.c.l.b16 %v4667
    %v4940 = vunpack.c.l.b16 %v4668
    %v4941 = vunpack.c.l.b16 %v4669
    %v4942 = vunpack.c.l.b16 %v4670
    %v4943 = vunpack.c.l.b16 %v4671
    %v4944 = vunpack.c.l.b16 %v4672
    %v4945 = vunpack.c.l.b16 %v4673
    %v4946 = vunpack.c.l.b16 %v4674
    %v4947 = vunpack.c.l.b16 %v4675
    %v4948 = vunpack.c.l.b16 %v4676
    %v4949 = vunpack.c.l.b16 %v4677
    %v4950 = vunpack.c.l.b16 %v4678
    %v4951 = vunpack.c.l.b16 %v4679
    %v4952 = vunpack.c.l.b16 %v4680
    %v4953 = vunpack.c.l.b16 %v4681
    %v4954 = vunpack.c.l.b16 %v4682
    %v4955 = vunpack.c.l.b16 %v4683
    %v4956 = vunpack.c.l.b16 %v4684
    %v4957 = vunpack.c.l.b16 %v4685
    %v4958 = vunpack.c.l.b16 %v4686
    %v4959 = vunpack.c.l.b16 %v4687
    %v4960 = vunpack.c.l.b16 %v4688
    %v4961 = vunpack.c.l.b16 %v4689
    %v4962 = vunpack.c.l.b16 %v4690
    %v4963 = vunpack.c.l.b16 %v4691
    %v4964 = vunpack.c.l.b16 %v4692
    %v4965 = vunpack.c.l.b16 %v4693
    %v4966 = vunpack.c.l.b16 %v4694
    %v4967 = vunpack.c.l.b16 %v4695
    %v4968 = vunpack.c.l.b16 %v4696
    %v4969 = vunpack.c.l.b16 %v4697
    %v4970 = vunpack.c.l.b16 %v4698
    %v4971 = vunpack.c.l.b16 %v4699
    %v4972 = vunpack.c.l.b16 %v4700
    %vm4973 = vcmask 1041409
    %v4974 = vsel %vm4973, %v4846, %v4845
    %vm4975 = vcmask 1042434
    %v4976 = vsel %vm4975, %v4847, %v4974
    %vm4977 = vcmask 1043459
    %v4978 = vsel %vm4977, %v4848, %v4976
    %vm4979 = vcmask 1044484
    %v4980 = vsel %vm4979, %v4849, %v4978
    %vm4981 = vcmask 1045509
    %v4982 = vsel %vm4981, %v4850, %v4980
    %vm4983 = vcmask 1046534
    %v4984 = vsel %vm4983, %v4851, %v4982
    %vm4985 = vcmask 1047559
    %v4986 = vsel %vm4985, %v4852, %v4984
    %v4987 = vsel %vm4973, %v4854, %v4853
    %v4988 = vsel %vm4975, %v4855, %v4987
    %v4989 = vsel %vm4977, %v4856, %v4988
    %v4990 = vsel %vm4979, %v4857, %v4989
    %v4991 = vsel %vm4981, %v4858, %v4990
    %v4992 = vsel %vm4983, %v4859, %v4991
    %v4993 = vsel %vm4985, %v4860, %v4992
    %v4994 = vsel %vm4973, %v4862, %v4861
    %v4995 = vsel %vm4975, %v4863, %v4994
    %v4996 = vsel %vm4977, %v4864, %v4995
    %v4997 = vsel %vm4979, %v4865, %v4996
    %v4998 = vsel %vm4981, %v4866, %v4997
    %v4999 = vsel %vm4983, %v4867, %v4998
    %v5000 = vsel %vm4985, %v4868, %v4999
    %v5001 = vsel %vm4973, %v4870, %v4869
    %v5002 = vsel %vm4975, %v4871, %v5001
    %v5003 = vsel %vm4977, %v4872, %v5002
    %v5004 = vsel %vm4979, %v4873, %v5003
    %v5005 = vsel %vm4981, %v4874, %v5004
    %v5006 = vsel %vm4983, %v4875, %v5005
    %v5007 = vsel %vm4985, %v4876, %v5006
    %v5008 = vsel %vm4973, %v4878, %v4877
    %v5009 = vsel %vm4975, %v4879, %v5008
    %v5010 = vsel %vm4977, %v4880, %v5009
    %v5011 = vsel %vm4979, %v4881, %v5010
    %v5012 = vsel %vm4981, %v4882, %v5011
    %v5013 = vsel %vm4983, %v4883, %v5012
    %v5014 = vsel %vm4985, %v4884, %v5013
    %v5015 = vsel %vm4973, %v4886, %v4885
    %v5016 = vsel %vm4975, %v4887, %v5015
    %v5017 = vsel %vm4977, %v4888, %v5016
    %v5018 = vsel %vm4979, %v4889, %v5017
    %v5019 = vsel %vm4981, %v4890, %v5018
    %v5020 = vsel %vm4983, %v4891, %v5019
    %v5021 = vsel %vm4985, %v4892, %v5020
    %v5022 = vsel %vm4973, %v4894, %v4893
    %v5023 = vsel %vm4975, %v4895, %v5022
    %v5024 = vsel %vm4977, %v4896, %v5023
    %v5025 = vsel %vm4979, %v4897, %v5024
    %v5026 = vsel %vm4981, %v4898, %v5025
    %v5027 = vsel %vm4983, %v4899, %v5026
    %v5028 = vsel %vm4985, %v4900, %v5027
    %v5029 = vsel %vm4973, %v4902, %v4901
    %v5030 = vsel %vm4975, %v4903, %v5029
    %v5031 = vsel %vm4977, %v4904, %v5030
    %v5032 = vsel %vm4979, %v4905, %v5031
    %v5033 = vsel %vm4981, %v4906, %v5032
    %v5034 = vsel %vm4983, %v4907, %v5033
    %v5035 = vsel %vm4985, %v4908, %v5034
    %v5036 = vsel %vm4973, %v4910, %v4909
    %v5037 = vsel %vm4975, %v4911, %v5036
    %v5038 = vsel %vm4977, %v4912, %v5037
    %v5039 = vsel %vm4979, %v4913, %v5038
    %v5040 = vsel %vm4981, %v4914, %v5039
    %v5041 = vsel %vm4983, %v4915, %v5040
    %v5042 = vsel %vm4985, %v4916, %v5041
    %v5043 = vsel %vm4973, %v4918, %v4917
    %v5044 = vsel %vm4975, %v4919, %v5043
    %v5045 = vsel %vm4977, %v4920, %v5044
    %v5046 = vsel %vm4979, %v4921, %v5045
    %v5047 = vsel %vm4981, %v4922, %v5046
    %v5048 = vsel %vm4983, %v4923, %v5047
    %v5049 = vsel %vm4985, %v4924, %v5048
    %v5050 = vsel %vm4973, %v4926, %v4925
    %v5051 = vsel %vm4975, %v4927, %v5050
    %v5052 = vsel %vm4977, %v4928, %v5051
    %v5053 = vsel %vm4979, %v4929, %v5052
    %v5054 = vsel %vm4981, %v4930, %v5053
    %v5055 = vsel %vm4983, %v4931, %v5054
    %v5056 = vsel %vm4985, %v4932, %v5055
    %v5057 = vsel %vm4973, %v4934, %v4933
    %v5058 = vsel %vm4975, %v4935, %v5057
    %v5059 = vsel %vm4977, %v4936, %v5058
    %v5060 = vsel %vm4979, %v4937, %v5059
    %v5061 = vsel %vm4981, %v4938, %v5060
    %v5062 = vsel %vm4983, %v4939, %v5061
    %v5063 = vsel %vm4985, %v4940, %v5062
    %v5064 = vsel %vm4973, %v4942, %v4941
    %v5065 = vsel %vm4975, %v4943, %v5064
    %v5066 = vsel %vm4977, %v4944, %v5065
    %v5067 = vsel %vm4979, %v4945, %v5066
    %v5068 = vsel %vm4981, %v4946, %v5067
    %v5069 = vsel %vm4983, %v4947, %v5068
    %v5070 = vsel %vm4985, %v4948, %v5069
    %v5071 = vsel %vm4973, %v4950, %v4949
    %v5072 = vsel %vm4975, %v4951, %v5071
    %v5073 = vsel %vm4977, %v4952, %v5072
    %v5074 = vsel %vm4979, %v4953, %v5073
    %v5075 = vsel %vm4981, %v4954, %v5074
    %v5076 = vsel %vm4983, %v4955, %v5075
    %v5077 = vsel %vm4985, %v4956, %v5076
    %v5078 = vsel %vm4973, %v4958, %v4957
    %v5079 = vsel %vm4975, %v4959, %v5078
    %v5080 = vsel %vm4977, %v4960, %v5079
    %v5081 = vsel %vm4979, %v4961, %v5080
    %v5082 = vsel %vm4981, %v4962, %v5081
    %v5083 = vsel %vm4983, %v4963, %v5082
    %v5084 = vsel %vm4985, %v4964, %v5083
    %v5085 = vsel %vm4973, %v4966, %v4965
    %v5086 = vsel %vm4975, %v4967, %v5085
    %v5087 = vsel %vm4977, %v4968, %v5086
    %v5088 = vsel %vm4979, %v4969, %v5087
    %v5089 = vsel %vm4981, %v4970, %v5088
    %v5090 = vsel %vm4983, %v4971, %v5089
    %v5091 = vsel %vm4985, %v4972, %v5090
    %v5092 = vpack.c.b16 %v4993, %v4986
    %v5093 = vpack.c.b16 %v5007, %v5000
    %v5094 = vpack.c.b16 %v5021, %v5014
    %v5095 = vpack.c.b16 %v5035, %v5028
    %v5096 = vpack.c.b16 %v5049, %v5042
    %v5097 = vpack.c.b16 %v5063, %v5056
    %v5098 = vpack.c.b16 %v5077, %v5070
    %v5099 = vpack.c.b16 %v5091, %v5084
    %v5124 = vunpack.c.l.b16 %v4701
    %v5125 = vunpack.c.l.b16 %v4702
    %v5126 = vunpack.c.l.b16 %v4703
    %v5127 = vunpack.c.l.b16 %v4704
    %v5128 = vunpack.c.l.b16 %v4705
    %v5129 = vunpack.c.l.b16 %v4706
    %v5130 = vunpack.c.l.b16 %v4707
    %v5131 = vunpack.c.l.b16 %v4708
    %v5132 = vunpack.c.l.b16 %v4709
    %v5133 = vunpack.c.l.b16 %v4710
    %v5134 = vunpack.c.l.b16 %v4711
    %v5135 = vunpack.c.l.b16 %v4712
    %v5136 = vunpack.c.l.b16 %v4713
    %v5137 = vunpack.c.l.b16 %v4714
    %v5138 = vunpack.c.l.b16 %v4715
    %v5139 = vunpack.c.l.b16 %v4716
    %v5140 = vpack.c.b16 %v5125, %v5124
    %v5141 = vpack.c.b16 %v5127, %v5126
    %v5142 = vpack.c.b16 %v5129, %v5128
    %v5143 = vpack.c.b16 %v5131, %v5130
    %v5144 = vpack.c.b16 %v5133, %v5132
    %v5145 = vpack.c.b16 %v5135, %v5134
    %v5146 = vpack.c.b16 %v5137, %v5136
    %v5147 = vpack.c.b16 %v5139, %v5138
    %5156 = vmatprep.subr.bf16.mxu0 0
    %5157 = vmatpush1.bf16.msra.mxu0 %v5140
    %5158 = vmatprep.subr.bf16.mxu0 0
    %5159 = vmatpush1.bf16.msra.mxu0 %v5141
    %5160 = vmatprep.subr.bf16.mxu0 0
    %5161 = vmatpush1.bf16.msra.mxu0 %v5142
    %5162 = vmatprep.subr.bf16.mxu0 0
    %5163 = vmatpush1.bf16.msra.mxu0 %v5143
    %5164 = vmatprep.subr.bf16.mxu0 0
    %5165 = vmatpush1.bf16.msra.mxu0 %v5144
    %5166 = vmatprep.subr.bf16.mxu0 0
    %5167 = vmatpush1.bf16.msra.mxu0 %v5145
    %5168 = vmatprep.subr.bf16.mxu0 0
    %5169 = vmatpush1.bf16.msra.mxu0 %v5146
    %5170 = vmatprep.subr.bf16.mxu0 0
    %5171 = vmatpush1.bf16.msra.mxu0 %v5147
    %5172 = vmatprep.subr.bf16.mxu0 0
    %5173 = vmatpush1.bf16.msra.mxu0 0
    %5174 = vmatprep.subr.bf16.mxu0 0
    %5175 = vmatpush1.bf16.msra.mxu0 0
    %5176 = vmatprep.subr.bf16.mxu0 0
    %5177 = vmatpush1.bf16.msra.mxu0 0
    %5178 = vmatprep.subr.bf16.mxu0 0
    %5179 = vmatpush1.bf16.msra.mxu0 0
    %5180 = vmatprep.subr.bf16.mxu0 0
    %5181 = vmatpush1.bf16.msra.mxu0 0
    %5182 = vmatprep.subr.bf16.mxu0 0
    %5183 = vmatpush1.bf16.msra.mxu0 0
    %5184 = vmatprep.subr.bf16.mxu0 0
    %5185 = vmatpush1.bf16.msra.mxu0 0
    %5186 = vmatprep.subr.bf16.mxu0 0
    %5187 = vmatpush1.bf16.msra.mxu0 0
    %5188 = vmatprep.mubr.bf16.mxu0 0
    %5189 = vmatmul.mubr.bf16.gmra.mrb[0].mxu0 %v5092
    %v5190 = vpop.f32.mrb[0].mxu0
    %v5191 = vadd.f32 0.0, %v5190
    %v5192 = vpop.f32.mrb[0].mxu0
    %v5193 = vpop.f32.mrb[0].mxu0
    %v5194 = vadd.f32 0.0, %v5193
    %v5195 = vpop.f32.mrb[0].mxu0
    %5196 = vmatprep.mubr.bf16.mxu0 0
    %5197 = vmatmul.mubr.bf16.gmra.mrb[0].mxu0 %v5093
    %v5198 = vpop.f32.mrb[0].mxu0
    %v5199 = vadd.f32 0.0, %v5198
    %v5200 = vpop.f32.mrb[0].mxu0
    %v5201 = vpop.f32.mrb[0].mxu0
    %v5202 = vadd.f32 0.0, %v5201
    %v5203 = vpop.f32.mrb[0].mxu0
    %5204 = vmatprep.mubr.bf16.mxu0 0
    %5205 = vmatmul.mubr.bf16.gmra.mrb[0].mxu0 %v5094
    %v5206 = vpop.f32.mrb[0].mxu0
    %v5207 = vadd.f32 0.0, %v5206
    %v5208 = vpop.f32.mrb[0].mxu0
    %v5209 = vpop.f32.mrb[0].mxu0
    %v5210 = vadd.f32 0.0, %v5209
    %v5211 = vpop.f32.mrb[0].mxu0
    %5212 = vmatprep.mubr.bf16.mxu0 0
    %5213 = vmatmul.mubr.bf16.gmra.mrb[0].mxu0 %v5095
    %v5214 = vpop.f32.mrb[0].mxu0
    %v5215 = vadd.f32 0.0, %v5214
    %v5216 = vpop.f32.mrb[0].mxu0
    %v5217 = vpop.f32.mrb[0].mxu0
    %v5218 = vadd.f32 0.0, %v5217
    %v5219 = vpop.f32.mrb[0].mxu0
    %5220 = vmatprep.mubr.bf16.mxu0 0
    %5221 = vmatmul.mubr.bf16.gmra.mrb[0].mxu0 %v5096
    %v5222 = vpop.f32.mrb[0].mxu0
    %v5223 = vadd.f32 0.0, %v5222
    %v5224 = vpop.f32.mrb[0].mxu0
    %v5225 = vpop.f32.mrb[0].mxu0
    %v5226 = vadd.f32 0.0, %v5225
    %v5227 = vpop.f32.mrb[0].mxu0
    %5228 = vmatprep.mubr.bf16.mxu0 0
    %5229 = vmatmul.mubr.bf16.gmra.mrb[0].mxu0 %v5097
    %v5230 = vpop.f32.mrb[0].mxu0
    %v5231 = vadd.f32 0.0, %v5230
    %v5232 = vpop.f32.mrb[0].mxu0
    %v5233 = vpop.f32.mrb[0].mxu0
    %v5234 = vadd.f32 0.0, %v5233
    %v5235 = vpop.f32.mrb[0].mxu0
    %5236 = vmatprep.mubr.bf16.mxu0 0
    %5237 = vmatmul.mubr.bf16.gmra.mrb[0].mxu0 %v5098
    %v5238 = vpop.f32.mrb[0].mxu0
    %v5239 = vadd.f32 0.0, %v5238
    %v5240 = vpop.f32.mrb[0].mxu0
    %v5241 = vpop.f32.mrb[0].mxu0
    %v5242 = vadd.f32 0.0, %v5241
    %v5243 = vpop.f32.mrb[0].mxu0
    %5244 = vmatprep.mubr.bf16.mxu0 0
    %5245 = vmatmul.mubr.bf16.gmra.mrb[0].mxu0 %v5099
    %v5246 = vpop.f32.mrb[0].mxu0
    %v5247 = vadd.f32 0.0, %v5246
    %v5248 = vpop.f32.mrb[0].mxu0
    %v5249 = vpop.f32.mrb[0].mxu0
    %v5250 = vadd.f32 0.0, %v5249
    %v5251 = vpop.f32.mrb[0].mxu0
    %5252 = vdwg.mxu0
    %v5253 = vmul.f32 %v5191, %v5191
    %v5254 = vmul.f32 %v5194, %v5194
    %v5255 = vmul.f32 %v5199, %v5199
    %v5256 = vmul.f32 %v5202, %v5202
    %v5257 = vmul.f32 %v5207, %v5207
    %v5258 = vmul.f32 %v5210, %v5210
    %v5259 = vmul.f32 %v5215, %v5215
    %v5260 = vmul.f32 %v5218, %v5218
    %v5261 = vmul.f32 %v5223, %v5223
    %v5262 = vmul.f32 %v5226, %v5226
    %v5263 = vmul.f32 %v5231, %v5231
    %v5264 = vmul.f32 %v5234, %v5234
    %v5265 = vmul.f32 %v5239, %v5239
    %v5266 = vmul.f32 %v5242, %v5242
    %v5267 = vmul.f32 %v5247, %v5247
    %v5268 = vmul.f32 %v5250, %v5250
    %5269 = vadd.xlane.f32.xlu0 %v5253
    %v5270 = vpop.xlane.xlu0 %5269
    %5271 = vadd.xlane.f32.xlu0 %v5254
    %v5272 = vpop.xlane.xlu0 %5271
    %5273 = vadd.xlane.f32.xlu0 %v5255
    %v5274 = vpop.xlane.xlu0 %5273
    %5275 = vadd.xlane.f32.xlu0 %v5256
    %v5276 = vpop.xlane.xlu0 %5275
    %5277 = vadd.xlane.f32.xlu0 %v5257
    %v5278 = vpop.xlane.xlu0 %5277
    %5279 = vadd.xlane.f32.xlu0 %v5258
    %v5280 = vpop.xlane.xlu0 %5279
    %5281 = vadd.xlane.f32.xlu0 %v5259
    %v5282 = vpop.xlane.xlu0 %5281
    %5283 = vadd.xlane.f32.xlu0 %v5260
    %v5284 = vpop.xlane.xlu0 %5283
    %5285 = vadd.xlane.f32.xlu0 %v5261
    %v5286 = vpop.xlane.xlu0 %5285
    %5287 = vadd.xlane.f32.xlu0 %v5262
    %v5288 = vpop.xlane.xlu0 %5287
    %5289 = vadd.xlane.f32.xlu0 %v5263
    %v5290 = vpop.xlane.xlu0 %5289
    %5291 = vadd.xlane.f32.xlu0 %v5264
    %v5292 = vpop.xlane.xlu0 %5291
    %5293 = vadd.xlane.f32.xlu0 %v5265
    %v5294 = vpop.xlane.xlu0 %5293
    %5295 = vadd.xlane.f32.xlu0 %v5266
    %v5296 = vpop.xlane.xlu0 %5295
    %5297 = vadd.xlane.f32.xlu0 %v5267
    %v5298 = vpop.xlane.xlu0 %5297
    %5299 = vadd.xlane.f32.xlu0 %v5268
    %v5300 = vpop.xlane.xlu0 %5299
    %v5301 = vmax.f32 %v5270, 1e-24
    %v5302 = vmax.f32 %v5272, 1e-24
    %v5303 = vmax.f32 %v5274, 1e-24
    %v5304 = vmax.f32 %v5276, 1e-24
    %v5305 = vmax.f32 %v5278, 1e-24
    %v5306 = vmax.f32 %v5280, 1e-24
    %v5307 = vmax.f32 %v5282, 1e-24
    %v5308 = vmax.f32 %v5284, 1e-24
    %v5309 = vmax.f32 %v5286, 1e-24
    %v5310 = vmax.f32 %v5288, 1e-24
    %v5311 = vmax.f32 %v5290, 1e-24
    %v5312 = vmax.f32 %v5292, 1e-24
    %v5313 = vmax.f32 %v5294, 1e-24
    %v5314 = vmax.f32 %v5296, 1e-24
    %v5315 = vmax.f32 %v5298, 1e-24
    %v5316 = vmax.f32 %v5300, 1e-24
    %v5317 = vrsqrt.pop %v5301
    %v5318 = vrsqrt.pop %v5302
    %v5319 = vrsqrt.pop %v5303
    %v5320 = vrsqrt.pop %v5304
    %v5321 = vrsqrt.pop %v5305
    %v5322 = vrsqrt.pop %v5306
    %v5323 = vrsqrt.pop %v5307
    %v5324 = vrsqrt.pop %v5308
    %v5325 = vrsqrt.pop %v5309
    %v5326 = vrsqrt.pop %v5310
    %v5327 = vrsqrt.pop %v5311
    %v5328 = vrsqrt.pop %v5312
    %v5329 = vrsqrt.pop %v5313
    %v5330 = vrsqrt.pop %v5314
    %v5331 = vrsqrt.pop %v5315
    %v5332 = vrsqrt.pop %v5316
    %s5333 = sld [smem:[#allocation3]]
    %v5334 = vstv %s5333
    %v5335 = vmul.f32 %v5317, %v5334
    %v5336 = vmul.f32 %v5318, %v5334
    %v5337 = vmul.f32 %v5319, %v5334
    %v5338 = vmul.f32 %v5320, %v5334
    %v5339 = vmul.f32 %v5321, %v5334
    %v5340 = vmul.f32 %v5322, %v5334
    %v5341 = vmul.f32 %v5323, %v5334
    %v5342 = vmul.f32 %v5324, %v5334
    %v5343 = vmul.f32 %v5325, %v5334
    %v5344 = vmul.f32 %v5326, %v5334
    %v5345 = vmul.f32 %v5327, %v5334
    %v5346 = vmul.f32 %v5328, %v5334
    %v5347 = vmul.f32 %v5329, %v5334
    %v5348 = vmul.f32 %v5330, %v5334
    %v5349 = vmul.f32 %v5331, %v5334
    %v5350 = vmul.f32 %v5332, %v5334
    %v5351 = vmul.f32 %v5191, %v5335
    %v5352 = vmul.f32 %v5194, %v5336
    %v5353 = vmul.f32 %v5199, %v5337
    %v5354 = vmul.f32 %v5202, %v5338
    %v5355 = vmul.f32 %v5207, %v5339
    %v5356 = vmul.f32 %v5210, %v5340
    %v5357 = vmul.f32 %v5215, %v5341
    %v5358 = vmul.f32 %v5218, %v5342
    %v5359 = vmul.f32 %v5223, %v5343
    %v5360 = vmul.f32 %v5226, %v5344
    %v5361 = vmul.f32 %v5231, %v5345
    %v5362 = vmul.f32 %v5234, %v5346
    %v5363 = vmul.f32 %v5239, %v5347
    %v5364 = vmul.f32 %v5242, %v5348
    %v5365 = vmul.f32 %v5247, %v5349
    %v5366 = vmul.f32 %v5250, %v5350
    %v5367 = vpack.c.bf16 %v5352, %v5351
    %v5368 = vpack.c.bf16 %v5354, %v5353
    %v5369 = vpack.c.bf16 %v5356, %v5355
    %v5370 = vpack.c.bf16 %v5358, %v5357
    %v5371 = vpack.c.bf16 %v5360, %v5359
    %v5372 = vpack.c.bf16 %v5362, %v5361
    %v5373 = vpack.c.bf16 %v5364, %v5363
    %v5374 = vpack.c.bf16 %v5366, %v5365
    %v5375 = vld [vmem:[#allocation10] sm:$0x3]
    %v5376 = vpack.c.bf16 %v5375, %v5375
    %5377 = vmatprep.subr.bf16.mxu0 0
    %5378 = vmatpush1.bf16.xpose.msra.mxu0 %v5367
    %5379 = vmatprep.subr.bf16.mxu0 0
    %5380 = vmatpush1.bf16.xpose.msra.mxu0 %v5368
    %5381 = vmatprep.subr.bf16.mxu0 0
    %5382 = vmatpush1.bf16.xpose.msra.mxu0 %v5369
    %5383 = vmatprep.subr.bf16.mxu0 0
    %5384 = vmatpush1.bf16.xpose.msra.mxu0 %v5370
    %5385 = vmatprep.subr.bf16.mxu0 0
    %5386 = vmatpush1.bf16.xpose.msra.mxu0 %v5371
    %5387 = vmatprep.subr.bf16.mxu0 0
    %5388 = vmatpush1.bf16.xpose.msra.mxu0 %v5372
    %5389 = vmatprep.subr.bf16.mxu0 0
    %5390 = vmatpush1.bf16.xpose.msra.mxu0 %v5373
    %5391 = vmatprep.subr.bf16.mxu0 0
    %5392 = vmatpush1.bf16.xpose.msra.mxu0 %v5374
    %5393 = vmatprep.subr.bf16.mxu0 0
    %5394 = vmatpush1.bf16.xpose.msra.mxu0 0
    %5395 = vmatprep.subr.bf16.mxu0 0
    %5396 = vmatpush1.bf16.xpose.msra.mxu0 0
    %5397 = vmatprep.subr.bf16.mxu0 0
    %5398 = vmatpush1.bf16.xpose.msra.mxu0 0
    %5399 = vmatprep.subr.bf16.mxu0 0
    %5400 = vmatpush1.bf16.xpose.msra.mxu0 0
    %5401 = vmatprep.subr.bf16.mxu0 0
    %5402 = vmatpush1.bf16.xpose.msra.mxu0 0
    %5403 = vmatprep.subr.bf16.mxu0 0
    %5404 = vmatpush1.bf16.xpose.msra.mxu0 0
    %5405 = vmatprep.subr.bf16.mxu0 0
    %5406 = vmatpush1.bf16.xpose.msra.mxu0 0
    %5407 = vmatprep.subr.bf16.mxu0 0
    %5408 = vmatpush1.bf16.xpose.msra.mxu0 0
    %5409 = vmatprep.mubr.bf16.mxu0 0
    %5410 = vmatmul.mubr.bf16.gmra.mrb[0].mxu0 %v5376
    %v5411 = vpop.f32.mrb[0].mxu0
    %v5412 = vadd.f32 0.0, %v5411
    %v5413 = vpop.f32.mrb[0].mxu0
    %v5414 = vpop.f32.mrb[0].mxu0
    %v5415 = vpop.f32.mrb[0].mxu0
    %5416 = vdwg.mxu0
    %5417 = vst [vmem:[#allocation12] sm:$0x3] %v5412
    // Predicated region
    $region38: #{tpu_custom_call.1} parent=1 // pred_check
      _
    $region39: #{tpu_custom_call.1} parent=1 // pred_check_branch
      %5419 = sbr.rel (0) target = $region41
    $region40: #{tpu_custom_call.1} parent=1 // pred_region
      %s5421 = ssub.s32 32, 32
      %5422 = vsyncadd [#allocation6], %s5421
      %s5424 = sshll.u32 [#allocation12], 4
      %s5425 = int_to_ptr.vmem [resolvable:$true] %s5424
      %5427 = dma.vmem_to_hbm [thread:$0]  %s5425, 32, %s6, [#allocation6]
    $region41: #{tpu_custom_call.1} parent=1 // pred_fallthru
      _
    // Predicated region
    $region42: #{tpu_custom_call.1} parent=1 // pred_check
      _
    $region43: #{tpu_custom_call.1} parent=1 // pred_check_branch
      %5429 = sbr.rel (0) target = $region45
    $region44: #{tpu_custom_call.1} parent=1 // pred_region
      %5430 = dma.done [#allocation6], 32
    $region45: #{tpu_custom_call.1} parent=1 // pred_fallthru
      _
    %5431 = vsyncpa [#allocation5], 1
    %5432 = vsyncpa [#allocation8], 1
    %5433 = vsyncpa [#allocation11], 1
    %5434 = vsyncpa [#allocation6], 1

</llo_original>
